<compile_context>
chip_gen: v7x
topology: tpu7x:2x2x1
jax: 0.10.0
libtpu: 0.0.40
codegen_flags: <defaults>
</compile_context>

<pallas_src>
import jax
import jax.numpy as jnp
from jax.experimental import pallas as pl
from jax.experimental.pallas import tpu as pltpu

LANE = 128


def _round_up(x, m):
    return ((x + m - 1) // m) * m


def _tc_count():
    """Number of TensorCores sharing the grid (v7x exposes 2 per chip)."""
    try:
        kind = jax.devices()[0].device_kind.lower()
    except Exception:
        return 1
    return 2 if ("v7" in kind or "7x" in kind) else 1


def _choose_tiles(k_pad, coutp, M, n_tc, budget_bytes=32 * 2 ** 20):
    """Pick (row_tiles, col_tiles, padded_M) for the fused conv+pool GEMM grid.

    Prefer a single step on single-TC chips (v5e/v6e: per-step overhead only),
    split the M (lane) axis on v7x, and fall back to splitting output rows when
    M is a single lane tile.  The per-step working set is capped so tiles that
    fit v6e's 128 MiB VMEM cannot blow v7x's 64 MiB.
    """
    mp = _round_up(max(M, LANE), LANE)
    max_nc = mp // LANE
    nc = n_tc if (n_tc > 1 and max_nc >= n_tc) else 1
    nr = 1
    if n_tc > 1 and nc == 1 and coutp >= 8 * n_tc and coutp % (8 * n_tc) == 0:
        nr = n_tc

    def step_bytes(nc_):
        mp_ = _round_up(mp, nc_ * LANE)
        tm = mp_ // nc_
        tr = coutp // nr
        return (2 * k_pad * 8 * tm * 2      # double-buffered bf16 patch block
                + 2 * tr * k_pad * 2        # double-buffered bf16 weight block
                + tr * 8 * tm * 4           # f32 pre-pool GEMM result
                + 2 * tr * tm * 2           # double-buffered bf16 output block
                + 2 * 3 * coutp * 4)        # affine block

    while step_bytes(nc) > budget_bytes and nc < max_nc:
        nc += 1
    mp = _round_up(mp, nc * LANE)
    return nr, nc, mp


# ----------------------------------------------------------------------------
# Pallas kernels
# ----------------------------------------------------------------------------
def _conv_pool_kernel(p_ref, w_ref, aff_ref, o_ref):
    """Fused Conv3d(k=3) + bias + ReLU + BatchNorm(eval) + MaxPool3d(2,2).

    p_ref:   (k_pad, 8*tm) bf16  im2col patches; the 8 pooling taps laid along lanes
    w_ref:   (tr, k_pad)   bf16  conv weights flattened over (Cin,3,3,3)
    aff_ref: (3, tr, 1)    f32   [bias; bn_scale; bn_shift]
    o_ref:   (tr, tm)      bf16  pooled output (lane-dense)
    """
    tm = o_ref.shape[1]
    # ONE long MXU dot covering all eight 2x2x2 pooling candidates.
    y = jnp.dot(w_ref[...], p_ref[...], preferred_element_type=jnp.float32)
    # Pool on the VPU over the eight lane-aligned tap slices.  ReLU(.+bias) is
    # monotone, so it commutes with max/min; the BN affine is applied once after
    # the pool using max for scale>=0 and min for scale<0 (negative gamma safe).
    hi = y[:, 0:tm]
    lo = y[:, 0:tm]
    for t in range(1, 8):
        s = y[:, t * tm:(t + 1) * tm]
        hi = jnp.maximum(hi, s)
        lo = jnp.minimum(lo, s)
    bias, scale, shift = aff_ref[0], aff_ref[1], aff_ref[2]
    z = jnp.where(scale >= 0.0, hi, lo)
    o_ref[...] = (jnp.maximum(z + bias, 0.0) * scale + shift).astype(o_ref.dtype)


def _heads_kernel(x_ref, w1_ref, b1_ref, w2_ref, b2_ref, w3_ref, b3_ref,
                  m_ref, o_ref):
    """All four branch MLP heads fused as one block-diagonal 3-layer MLP."""
    h = jnp.dot(x_ref[...], w1_ref[...], preferred_element_type=jnp.float32)
    h = jnp.maximum(h + b1_ref[...], 0.0).astype(jnp.bfloat16)
    # TODO(synk): Dropout is identity at inference time; train-mode masks omitted.
    h = jnp.dot(h, w2_ref[...], preferred_element_type=jnp.float32)
    h = jnp.maximum(h + b2_ref[...], 0.0).astype(jnp.bfloat16)
    y = jnp.dot(h, w3_ref[...], preferred_element_type=jnp.float32) + b3_ref[...]
    o_ref[...] = jnp.where(m_ref[...] > 0.5, jax.nn.sigmoid(y), y)


# ----------------------------------------------------------------------------
# Glue (plain JAX) + Pallas wrappers
# ----------------------------------------------------------------------------
def _im2col_pooled(x_cm, k_pad, nc, mp):
    """(C,N,D,H,W) channel-major -> (k_pad, nc*8*tm) bf16 patches.

    Column layout is (tile, tap, m): each grid column-block holds all eight
    2x2x2 pooling candidates (taps) for its tm output positions, so the kernel
    does one long MXU dot followed by lane-sliced maxima.  K rows are ordered
    (c, kd, kh, kw) to match Conv3d weight.reshape(Cout, Cin*27); m is ordered
    (n, dp, hp, wp).
    """
    x = x_cm.astype(jnp.bfloat16)
    C, N, D, H, W = x.shape
    Do, Ho, Wo = D - 2, H - 2, W - 2
    Dp, Hp, Wp = Do // 2, Ho // 2, Wo // 2
    K, M = C * 27, N * Dp * Hp * Wp
    tm = mp // nc
    offs = []
    for kd in range(3):
        for kh in range(3):
            for kw in range(3):
                offs.append(x[:, :, kd:kd + Do, kh:kh + Ho, kw:kw + Wo])
    p = jnp.stack(offs, axis=1).reshape(K, N, Do, Ho, Wo)
    taps = []
    for dz in range(2):
        for dy in range(2):
            for dx in range(2):
                q = p[:, :, dz:dz + 2 * Dp:2, dy:dy + 2 * Hp:2, dx:dx + 2 * Wp:2]
                taps.append(q.reshape(K, M))
    pat = jnp.stack(taps, axis=0)                                  # (8, K, M)
    pat = jnp.pad(pat, ((0, 0), (0, k_pad - K), (0, mp - M)))
    pat = pat.reshape(8, k_pad, nc, tm).transpose(1, 2, 0, 3)      # (k_pad, nc, 8, tm)
    return pat.reshape(k_pad, nc * 8 * tm)


def _bn_fold(p, eps=1e-5):
    scale = p["gamma"] / jnp.sqrt(p["var"] + eps)
    shift = p["beta"] - p["mean"] * scale
    return scale, shift


def conv_relu_bn_pool(x_cm, p):
    """Conv3d(k=3) -> ReLU -> BatchNorm3d(eval) -> MaxPool3d(2,2), channel-major.

    x_cm: (C, N, D, H, W).  Returns (Cout, N, Dp, Hp, Wp) in bf16.
    """
    cout, cin = p["w"].shape[0], p["w"].shape[1]
    C, N, D, H, W = x_cm.shape
    Dp, Hp, Wp = (D - 2) // 2, (H - 2) // 2, (W - 2) // 2
    M = N * Dp * Hp * Wp
    k = cin * 27
    k_pad = _round_up(k, 16)          # bf16 sublane packing (16 rows / vreg)
    coutp = _round_up(cout, 8)        # unmasked sublane stores / full weight vregs
    nr, nc, mp = _choose_tiles(k_pad, coutp, M, _tc_count())
    tm, tr = mp // nc, coutp // nr

    patches = _im2col_pooled(x_cm, k_pad, nc, mp)                  # (k_pad, nc*8*tm)
    wmat = jnp.pad(p["w"].reshape(cout, k).astype(jnp.bfloat16),
                   ((0, coutp - cout), (0, k_pad - k)))
    scale, shift = _bn_fold(p)
    aff = jnp.stack([p["b"], scale, shift], axis=0).astype(jnp.float32)
    aff = jnp.pad(aff, ((0, 0), (0, coutp - cout))).reshape(3, coutp, 1)

    out = pl.pallas_call(
        _conv_pool_kernel,
        out_shape=jax.ShapeDtypeStruct((coutp, mp), jnp.bfloat16),
        grid_spec=pltpu.PrefetchScalarGridSpec(
            num_scalar_prefetch=0,
            grid=(nr, nc),
            in_specs=[
                pl.BlockSpec((k_pad, 8 * tm), lambda r, c: (0, c)),
                pl.BlockSpec((tr, k_pad), lambda r, c: (r, 0)),
                pl.BlockSpec((3, tr, 1), lambda r, c: (0, r, 0)),
            ],
            out_specs=pl.BlockSpec((tr, tm), lambda r, c: (r, c)),
        ),
        compiler_params=pltpu.CompilerParams(
            dimension_semantics=("parallel", "parallel"),
            vmem_limit_bytes=64 * 2 ** 20),
    )(patches, wmat, aff)
    return out[:cout, :M].reshape(cout, N, Dp, Hp, Wp)


def fused_heads(x, w1, b1, w2, b2, w3, b3, sig_mask):
    """One Pallas call for all four Flatten->Linear->ReLU->Linear->ReLU->Linear heads."""
    N, F = x.shape
    Np = _round_up(max(N, 16), 16)                 # bf16 sublane quantum
    Fp = _round_up(F, LANE)
    H1, H2, O = w1.shape[1], w2.shape[1], w3.shape[1]
    H1p, H2p, Op = (_round_up(v, LANE) for v in (H1, H2, O))   # lane-dense widths

    xp = jnp.pad(x.astype(jnp.bfloat16), ((0, Np - N), (0, Fp - F)))
    w1p = jnp.pad(w1.astype(jnp.bfloat16), ((0, Fp - F), (0, H1p - H1)))
    w2p = jnp.pad(w2.astype(jnp.bfloat16), ((0, H1p - H1), (0, H2p - H2)))
    w3p = jnp.pad(w3.astype(jnp.bfloat16), ((0, H2p - H2), (0, Op - O)))
    b1p = jnp.pad(b1, ((0, 0), (0, H1p - H1)))
    b2p = jnp.pad(b2, ((0, 0), (0, H2p - H2)))
    b3p = jnp.pad(b3, ((0, 0), (0, Op - O)))
    mkp = jnp.pad(sig_mask, ((0, 0), (0, Op - O)))
    args = (xp, w1p, b1p, w2p, b2p, w3p, b3p, mkp)

    out = pl.pallas_call(
        _heads_kernel,
        out_shape=jax.ShapeDtypeStruct((Np, Op), jnp.float32),
        grid_spec=pltpu.PrefetchScalarGridSpec(
            num_scalar_prefetch=0,
            grid=(1,),
            in_specs=[pl.BlockSpec(a.shape, lambda i: (0, 0)) for a in args],
            out_specs=pl.BlockSpec((Np, Op), lambda i: (0, 0)),
        ),
        compiler_params=pltpu.CompilerParams(dimension_semantics=("arbitrary",)),
    )(*args)
    return out[:N, :O]


def _block_diag(mats):
    rows = sum(m.shape[0] for m in mats)
    cols = sum(m.shape[1] for m in mats)
    out = jnp.zeros((rows, cols), jnp.float32)
    r = c = 0
    for m in mats:
        out = out.at[r:r + m.shape[0], c:c + m.shape[1]].set(m.astype(jnp.float32))
        r += m.shape[0]
        c += m.shape[1]
    return out


def net_forward(x, params):
    # Trunk stays channel-major (C, N, D, H, W): no NCDHW round trips between units.
    h = jnp.transpose(x, (1, 0, 2, 3, 4))
    for p in params["features"]:
        h = conv_relu_bn_pool(h, p)

    # Four branch convs merged into one GEMM (shared im2col, concatenated weights).
    names = ("b1", "b2", "b3", "b4")
    merged = {key: jnp.concatenate([params[n]["conv"][key] for n in names], axis=0)
              for key in ("w", "b", "gamma", "beta", "mean", "var")}
    z = conv_relu_bn_pool(h, merged)                       # (32, N, Dp, Hp, Wp) bf16
    cout_b, N, Dp, Hp, Wp = z.shape
    S = Dp * Hp * Wp
    # PyTorch per-branch flatten order (c, d, h, w); branch feature blocks stay
    # contiguous because merged channels are ordered b1|b2|b3|b4.
    x_all = jnp.transpose(z.reshape(cout_b, N, S), (1, 0, 2)).reshape(N, cout_b * S)
    # TODO(synk): x_all still makes one tiny HBM round trip between the branch-conv
    # call and the heads call; full fusion would need an in-kernel relayout of a
    # sub-(8,128) tile, skipped here to keep Mosaic lowering robust.

    # All four MLP heads as one block-diagonal fused MLP (sigmoid on b1/b4 columns).
    w1s, b1s, w2s, b2s, w3s, b3s, sflags = [], [], [], [], [], [], []
    for name, sig in (("b1", 1.0), ("b2", 0.0), ("b3", 0.0), ("b4", 1.0)):
        (W1, B1), (W2, B2), (W3, B3) = params[name]["linears"]
        w1s.append(W1.T); b1s.append(B1)
        w2s.append(W2.T); b2s.append(B2)
        w3s.append(W3.T); b3s.append(B3)
        sflags.append(jnp.full((W3.shape[0],), sig, jnp.float32))
    out = fused_heads(
        x_all,
        _block_diag(w1s), jnp.concatenate(b1s)[None].astype(jnp.float32),
        _block_diag(w2s), jnp.concatenate(b2s)[None].astype(jnp.float32),
        _block_diag(w3s), jnp.concatenate(b3s)[None].astype(jnp.float32),
        jnp.concatenate(sflags)[None],
    )
    n_vol = params["b2"]["linears"][-1][0].shape[0]
    disease = out[:, 0:1]
    volumes = out[:, 1:1 + n_vol]
    age = out[:, 1 + n_vol:2 + n_vol]
    sex = out[:, 2 + n_vol:3 + n_vol]
    return disease, volumes, age, sex


# ----------------------------------------------------------------------------
# Plain-JAX reference (tolerant numerical check only)
# ----------------------------------------------------------------------------
def reference_forward(x, params, eps=1e-5):
    def conv_unit_ref(h, p):
        y = jax.lax.conv_general_dilated(
            h, p["w"], window_strides=(1, 1, 1), padding="VALID",
            dimension_numbers=("NCDHW", "OIDHW", "NCDHW"))
        y = jnp.maximum(y + p["b"][None, :, None, None, None], 0.0)
        scale, shift = _bn_fold(p, eps)
        y = y * scale[None, :, None, None, None] + shift[None, :, None, None, None]
        return jax.lax.reduce_window(
            y, jnp.float32(-jnp.inf), jax.lax.max,
            (1, 1, 2, 2, 2), (1, 1, 2, 2, 2), "VALID")

    h = x
    for p in params["features"]:
        h = conv_unit_ref(h, p)
    outs = []
    for name, sig in (("b1", True), ("b2", False), ("b3", False), ("b4", True)):
        bp = params[name]
        z = conv_unit_ref(h, bp["conv"]).reshape(h.shape[0], -1)
        for W, B in bp["linears"][:-1]:
            z = jnp.maximum(z @ W.T + B, 0.0)
        W, B = bp["linears"][-1]
        z = z @ W.T + B
        outs.append(jax.nn.sigmoid(z) if sig else z)
    return tuple(outs)


# ----------------------------------------------------------------------------
# Deterministic parameter construction
# ----------------------------------------------------------------------------
def init_conv_params(key, cin, cout):
    k1, k2, k3, k4 = jax.random.split(key, 4)
    return dict(
        w=0.1 * jax.random.normal(k1, (cout, cin, 3, 3, 3), jnp.float32),
        b=0.1 * jax.random.normal(k2, (cout,), jnp.float32),
        gamma=1.0 + 0.1 * jax.random.normal(k3, (cout,), jnp.float32),
        beta=0.1 * jax.random.normal(k4, (cout,), jnp.float32),
        mean=jnp.zeros((cout,), jnp.float32),
        var=jnp.ones((cout,), jnp.float32),
    )


def init_linear_params(key, fin, fout):
    k1, k2 = jax.random.split(key)
    w = jax.random.normal(k1, (fout, fin), jnp.float32) / jnp.sqrt(float(fin))
    b = 0.05 * jax.random.normal(k2, (fout,), jnp.float32)
    return (w, b)


def build_params(key, in_channels, convolutions, features_output_size, n_volumes):
    keys = jax.random.split(key, 32)
    ki = iter(range(32))
    params = {"features": []}
    cin = in_channels
    for nb_conv in convolutions[:-1]:
        params["features"].append(init_conv_params(keys[next(ki)], cin, nb_conv))
        cin = nb_conv
    cout = convolutions[-1]
    branch_dense = {
        "b1": [32, 16, 1],
        "b2": [4 * n_volumes, 2 * n_volumes, n_volumes],
        "b3": [32, 16, 1],
        "b4": [32, 16, 1],
    }
    for name, dense in branch_dense.items():
        conv_p = init_conv_params(keys[next(ki)], cin, cout)
        linears = []
        fin = features_output_size
        for df in dense:
            linears.append(init_linear_params(keys[next(ki)], fin, df))
            fin = df
        params[name] = {"conv": conv_p, "linears": linears}
    return params


# ----------------------------------------------------------------------------
if __name__ == "__main__":
    # Small shapes consistent with the module:
    #   sample['image'].shape = (2, 16, 16, 16) -> in_channels=2, d_h_w=(16,16,16)
    #   sample['volumes'].shape = (3,)          -> n_volumes = 3
    #   convolutions = [4, 8], batch = 2
    batch, cin, D = 2, 2, 16
    convolutions = [4, 8]
    n_volumes = 3
    # features: conv 16->14, pool ->7 ; branch conv: 7->5, pool ->2
    features_output_size = 2 * 2 * 2 * convolutions[-1]  # 64

    root = jax.random.PRNGKey(0)
    kparams, kx = jax.random.split(root)
    params = build_params(kparams, cin, convolutions, features_output_size, n_volumes)
    x = jax.random.normal(kx, (batch, cin, D, D, D), jnp.float32)

    fwd = jax.jit(net_forward)
    disease, volumes, age, sex = jax.block_until_ready(fwd(x, params))

    assert disease.shape == (batch, 1)
    assert volumes.shape == (batch, n_volumes)
    assert age.shape == (batch, 1)
    assert sex.shape == (batch, 1)
    assert bool(jnp.all((disease >= 0) & (disease <= 1)))
    assert bool(jnp.all((sex >= 0) & (sex <= 1)))

    # Tolerant numerical check vs plain-XLA reference (conv/head GEMMs run in bf16).
    rd, rv, ra, rs = jax.block_until_ready(jax.jit(reference_forward)(x, params))
    for got, ref in ((disease, rd), (volumes, rv), (age, ra), (sex, rs)):
        tol = 0.1 + 0.05 * float(jnp.max(jnp.abs(ref)))
        assert float(jnp.max(jnp.abs(got - ref))) < tol

    print("KERNEL_OK")
</pallas_src>

<mosaic_0001>
module attributes {stable_mosaic.version = 11 : i64} {
  func.func @_conv_pool_kernel(%arg0: i32, %arg1: i32, %arg2: memref<64x6144xbf16, #tpu.memory_space<vmem>>, %arg3: memref<8x64xbf16, #tpu.memory_space<vmem>>, %arg4: memref<3x8x1xf32, #tpu.memory_space<vmem>>, %arg5: memref<8x768xbf16, #tpu.memory_space<vmem>>) attributes {dimension_semantics = [#tpu.dimension_semantics<parallel>, #tpu.dimension_semantics<parallel>], iteration_bounds = array<i64: 1, 1>, scalar_prefetch = 0 : i64, scratch_operands = 0 : i64, tpu.core_type = #tpu.core_type<tc>, window_params = [{transform_indices = @transform_0, window_bounds = array<i64: 64, 6144>}, {transform_indices = @transform_1, window_bounds = array<i64: 8, 64>}, {transform_indices = @transform_2, window_bounds = array<i64: 3, 8, 1>}, {transform_indices = @transform_3, window_bounds = array<i64: 8, 768>}]} {
    %c0 = arith.constant 0 : index
    %c0_0 = arith.constant 0 : index
    %0 = vector.load %arg3[%c0, %c0_0] : memref<8x64xbf16, #tpu.memory_space<vmem>>, vector<8x64xbf16>
    %c0_1 = arith.constant 0 : index
    %c0_2 = arith.constant 0 : index
    %1 = vector.load %arg2[%c0_1, %c0_2] : memref<64x6144xbf16, #tpu.memory_space<vmem>>, vector<64x6144xbf16>
    %cst = arith.constant dense<0.000000e+00> : vector<8x6144xf32>
    %2 = tpu.matmul %0, %1, %cst {dimension_numbers = #tpu.dot_dimension_numbers<[1], [0], [0], [1], [0, 0, 1, 1], [], []>} : vector<8x64xbf16>, vector<64x6144xbf16>, vector<8x6144xf32> -> vector<8x6144xf32>
    %3 = vector.extract_strided_slice %2 {offsets = [0, 0], sizes = [8, 768], strides = [1, 1]} : vector<8x6144xf32> to vector<8x768xf32>
    %4 = vector.extract_strided_slice %2 {offsets = [0, 0], sizes = [8, 768], strides = [1, 1]} : vector<8x6144xf32> to vector<8x768xf32>
    %5 = vector.extract_strided_slice %2 {offsets = [0, 768], sizes = [8, 768], strides = [1, 1]} : vector<8x6144xf32> to vector<8x768xf32>
    %6 = arith.maximumf %3, %5 : vector<8x768xf32>
    %7 = arith.minimumf %4, %5 : vector<8x768xf32>
    %8 = vector.extract_strided_slice %2 {offsets = [0, 1536], sizes = [8, 768], strides = [1, 1]} : vector<8x6144xf32> to vector<8x768xf32>
    %9 = arith.maximumf %6, %8 : vector<8x768xf32>
    %10 = arith.minimumf %7, %8 : vector<8x768xf32>
    %11 = vector.extract_strided_slice %2 {offsets = [0, 2304], sizes = [8, 768], strides = [1, 1]} : vector<8x6144xf32> to vector<8x768xf32>
    %12 = arith.maximumf %9, %11 : vector<8x768xf32>
    %13 = arith.minimumf %10, %11 : vector<8x768xf32>
    %14 = vector.extract_strided_slice %2 {offsets = [0, 3072], sizes = [8, 768], strides = [1, 1]} : vector<8x6144xf32> to vector<8x768xf32>
    %15 = arith.maximumf %12, %14 : vector<8x768xf32>
    %16 = arith.minimumf %13, %14 : vector<8x768xf32>
    %17 = vector.extract_strided_slice %2 {offsets = [0, 3840], sizes = [8, 768], strides = [1, 1]} : vector<8x6144xf32> to vector<8x768xf32>
    %18 = arith.maximumf %15, %17 : vector<8x768xf32>
    %19 = arith.minimumf %16, %17 : vector<8x768xf32>
    %20 = vector.extract_strided_slice %2 {offsets = [0, 4608], sizes = [8, 768], strides = [1, 1]} : vector<8x6144xf32> to vector<8x768xf32>
    %21 = arith.maximumf %18, %20 : vector<8x768xf32>
    %22 = arith.minimumf %19, %20 : vector<8x768xf32>
    %23 = vector.extract_strided_slice %2 {offsets = [0, 5376], sizes = [8, 768], strides = [1, 1]} : vector<8x6144xf32> to vector<8x768xf32>
    %24 = arith.maximumf %21, %23 : vector<8x768xf32>
    %25 = arith.minimumf %22, %23 : vector<8x768xf32>
    %c0_3 = arith.constant 0 : index
    %c0_4 = arith.constant 0 : index
    %c0_5 = arith.constant 0 : index
    %26 = vector.load %arg4[%c0_3, %c0_4, %c0_5] : memref<3x8x1xf32, #tpu.memory_space<vmem>>, vector<1x8x1xf32>
    %27 = vector.shape_cast %26 : vector<1x8x1xf32> to vector<8x1xf32>
    %c1 = arith.constant 1 : index
    %c0_6 = arith.constant 0 : index
    %c0_7 = arith.constant 0 : index
    %28 = vector.load %arg4[%c1, %c0_6, %c0_7] : memref<3x8x1xf32, #tpu.memory_space<vmem>>, vector<1x8x1xf32>
    %29 = vector.shape_cast %28 : vector<1x8x1xf32> to vector<8x1xf32>
    %c2 = arith.constant 2 : index
    %c0_8 = arith.constant 0 : index
    %c0_9 = arith.constant 0 : index
    %30 = vector.load %arg4[%c2, %c0_8, %c0_9] : memref<3x8x1xf32, #tpu.memory_space<vmem>>, vector<1x8x1xf32>
    %31 = vector.shape_cast %30 : vector<1x8x1xf32> to vector<8x1xf32>
    %cst_10 = arith.constant 0.000000e+00 : f32
    %32 = vector.broadcast %cst_10 : f32 to vector<8x1xf32>
    %33 = arith.cmpf oge, %29, %32 : vector<8x1xf32>
    %34 = vector.shape_cast %33 : vector<8x1xi1> to vector<8x1xi1>
    %35 = vector.broadcast %34 : vector<8x1xi1> to vector<8x768xi1>
    %36 = arith.select %35, %24, %25 : vector<8x768xi1>, vector<8x768xf32>
    %37 = vector.broadcast %27 : vector<8x1xf32> to vector<8x768xf32>
    %38 = arith.addf %36, %37 : vector<8x768xf32>
    %cst_11 = arith.constant 0.000000e+00 : f32
    %39 = vector.broadcast %cst_11 : f32 to vector<8x768xf32>
    %40 = arith.maximumf %38, %39 : vector<8x768xf32>
    %41 = vector.broadcast %29 : vector<8x1xf32> to vector<8x768xf32>
    %42 = arith.mulf %40, %41 : vector<8x768xf32>
    %43 = vector.broadcast %31 : vector<8x1xf32> to vector<8x768xf32>
    %44 = arith.addf %42, %43 : vector<8x768xf32>
    %45 = arith.truncf %44 : vector<8x768xf32> to vector<8x768xbf16>
    %c0_12 = arith.constant 0 : index
    %c0_13 = arith.constant 0 : index
    %46 = vector.load %arg5[%c0_12, %c0_13] : memref<8x768xbf16, #tpu.memory_space<vmem>>, vector<8x768xbf16>
    tpu.vector_store %arg5[%c0_12, %c0_13], %45 {strides = array<i32>} : memref<8x768xbf16, #tpu.memory_space<vmem>>, vector<8x768xbf16>,
    return
  }
  func.func @transform_0(%arg0: i32, %arg1: i32) -> (i32, i32) {
    %c0_i32 = arith.constant 0 : i32
    %c0_i32_0 = arith.constant 0 : i32
    return %c0_i32, %arg1 : i32, i32
  }
  func.func @transform_1(%arg0: i32, %arg1: i32) -> (i32, i32) {
    %c0_i32 = arith.constant 0 : i32
    %c0_i32_0 = arith.constant 0 : i32
    return %arg0, %c0_i32 : i32, i32
  }
  func.func @transform_2(%arg0: i32, %arg1: i32) -> (i32, i32, i32) {
    %c0_i32 = arith.constant 0 : i32
    %c0_i32_0 = arith.constant 0 : i32
    %c0_i32_1 = arith.constant 0 : i32
    return %c0_i32, %arg0, %c0_i32_0 : i32, i32, i32
  }
  func.func @transform_3(%arg0: i32, %arg1: i32) -> (i32, i32) {
    %c0_i32 = arith.constant 0 : i32
    return %arg0, %arg1 : i32, i32
  }
}

module attributes {stable_mosaic.version = 11 : i64} {
  func.func @_conv_pool_kernel(%arg0: i32, %arg1: i32, %arg2: memref<112x1024xbf16, #tpu.memory_space<vmem>>, %arg3: memref<32x112xbf16, #tpu.memory_space<vmem>>, %arg4: memref<3x32x1xf32, #tpu.memory_space<vmem>>, %arg5: memref<32x128xbf16, #tpu.memory_space<vmem>>) attributes {dimension_semantics = [#tpu.dimension_semantics<parallel>, #tpu.dimension_semantics<parallel>], iteration_bounds = array<i64: 1, 1>, scalar_prefetch = 0 : i64, scratch_operands = 0 : i64, tpu.core_type = #tpu.core_type<tc>, window_params = [{transform_indices = @transform_0, window_bounds = array<i64: 112, 1024>}, {transform_indices = @transform_1, window_bounds = array<i64: 32, 112>}, {transform_indices = @transform_2, window_bounds = array<i64: 3, 32, 1>}, {transform_indices = @transform_3, window_bounds = array<i64: 32, 128>}]} {
    %c0 = arith.constant 0 : index
    %c0_0 = arith.constant 0 : index
    %0 = vector.load %arg3[%c0, %c0_0] : memref<32x112xbf16, #tpu.memory_space<vmem>>, vector<32x112xbf16>
    %c0_1 = arith.constant 0 : index
    %c0_2 = arith.constant 0 : index
    %1 = vector.load %arg2[%c0_1, %c0_2] : memref<112x1024xbf16, #tpu.memory_space<vmem>>, vector<112x1024xbf16>
    %cst = arith.constant dense<0.000000e+00> : vector<32x1024xf32>
    %2 = tpu.matmul %0, %1, %cst {dimension_numbers = #tpu.dot_dimension_numbers<[1], [0], [0], [1], [0, 0, 1, 1], [], []>} : vector<32x112xbf16>, vector<112x1024xbf16>, vector<32x1024xf32> -> vector<32x1024xf32>
    %3 = vector.extract_strided_slice %2 {offsets = [0, 0], sizes = [32, 128], strides = [1, 1]} : vector<32x1024xf32> to vector<32x128xf32>
    %4 = vector.extract_strided_slice %2 {offsets = [0, 0], sizes = [32, 128], strides = [1, 1]} : vector<32x1024xf32> to vector<32x128xf32>
    %5 = vector.extract_strided_slice %2 {offsets = [0, 128], sizes = [32, 128], strides = [1, 1]} : vector<32x1024xf32> to vector<32x128xf32>
    %6 = arith.maximumf %3, %5 : vector<32x128xf32>
    %7 = arith.minimumf %4, %5 : vector<32x128xf32>
    %8 = vector.extract_strided_slice %2 {offsets = [0, 256], sizes = [32, 128], strides = [1, 1]} : vector<32x1024xf32> to vector<32x128xf32>
    %9 = arith.maximumf %6, %8 : vector<32x128xf32>
    %10 = arith.minimumf %7, %8 : vector<32x128xf32>
    %11 = vector.extract_strided_slice %2 {offsets = [0, 384], sizes = [32, 128], strides = [1, 1]} : vector<32x1024xf32> to vector<32x128xf32>
    %12 = arith.maximumf %9, %11 : vector<32x128xf32>
    %13 = arith.minimumf %10, %11 : vector<32x128xf32>
    %14 = vector.extract_strided_slice %2 {offsets = [0, 512], sizes = [32, 128], strides = [1, 1]} : vector<32x1024xf32> to vector<32x128xf32>
    %15 = arith.maximumf %12, %14 : vector<32x128xf32>
    %16 = arith.minimumf %13, %14 : vector<32x128xf32>
    %17 = vector.extract_strided_slice %2 {offsets = [0, 640], sizes = [32, 128], strides = [1, 1]} : vector<32x1024xf32> to vector<32x128xf32>
    %18 = arith.maximumf %15, %17 : vector<32x128xf32>
    %19 = arith.minimumf %16, %17 : vector<32x128xf32>
    %20 = vector.extract_strided_slice %2 {offsets = [0, 768], sizes = [32, 128], strides = [1, 1]} : vector<32x1024xf32> to vector<32x128xf32>
    %21 = arith.maximumf %18, %20 : vector<32x128xf32>
    %22 = arith.minimumf %19, %20 : vector<32x128xf32>
    %23 = vector.extract_strided_slice %2 {offsets = [0, 896], sizes = [32, 128], strides = [1, 1]} : vector<32x1024xf32> to vector<32x128xf32>
    %24 = arith.maximumf %21, %23 : vector<32x128xf32>
    %25 = arith.minimumf %22, %23 : vector<32x128xf32>
    %c0_3 = arith.constant 0 : index
    %c0_4 = arith.constant 0 : index
    %c0_5 = arith.constant 0 : index
    %26 = vector.load %arg4[%c0_3, %c0_4, %c0_5] : memref<3x32x1xf32, #tpu.memory_space<vmem>>, vector<1x32x1xf32>
    %27 = vector.shape_cast %26 : vector<1x32x1xf32> to vector<32x1xf32>
    %c1 = arith.constant 1 : index
    %c0_6 = arith.constant 0 : index
    %c0_7 = arith.constant 0 : index
    %28 = vector.load %arg4[%c1, %c0_6, %c0_7] : memref<3x32x1xf32, #tpu.memory_space<vmem>>, vector<1x32x1xf32>
    %29 = vector.shape_cast %28 : vector<1x32x1xf32> to vector<32x1xf32>
    %c2 = arith.constant 2 : index
    %c0_8 = arith.constant 0 : index
    %c0_9 = arith.constant 0 : index
    %30 = vector.load %arg4[%c2, %c0_8, %c0_9] : memref<3x32x1xf32, #tpu.memory_space<vmem>>, vector<1x32x1xf32>
    %31 = vector.shape_cast %30 : vector<1x32x1xf32> to vector<32x1xf32>
    %cst_10 = arith.constant 0.000000e+00 : f32
    %32 = vector.broadcast %cst_10 : f32 to vector<32x1xf32>
    %33 = arith.cmpf oge, %29, %32 : vector<32x1xf32>
    %34 = vector.shape_cast %33 : vector<32x1xi1> to vector<32x1xi1>
    %35 = vector.broadcast %34 : vector<32x1xi1> to vector<32x128xi1>
    %36 = arith.select %35, %24, %25 : vector<32x128xi1>, vector<32x128xf32>
    %37 = vector.broadcast %27 : vector<32x1xf32> to vector<32x128xf32>
    %38 = arith.addf %36, %37 : vector<32x128xf32>
    %cst_11 = arith.constant 0.000000e+00 : f32
    %39 = vector.broadcast %cst_11 : f32 to vector<32x128xf32>
    %40 = arith.maximumf %38, %39 : vector<32x128xf32>
    %41 = vector.broadcast %29 : vector<32x1xf32> to vector<32x128xf32>
    %42 = arith.mulf %40, %41 : vector<32x128xf32>
    %43 = vector.broadcast %31 : vector<32x1xf32> to vector<32x128xf32>
    %44 = arith.addf %42, %43 : vector<32x128xf32>
    %45 = arith.truncf %44 : vector<32x128xf32> to vector<32x128xbf16>
    %c0_12 = arith.constant 0 : index
    %c0_13 = arith.constant 0 : index
    %46 = vector.load %arg5[%c0_12, %c0_13] : memref<32x128xbf16, #tpu.memory_space<vmem>>, vector<32x128xbf16>
    tpu.vector_store %arg5[%c0_12, %c0_13], %45 {strides = array<i32>} : memref<32x128xbf16, #tpu.memory_space<vmem>>, vector<32x128xbf16>,
    return
  }
  func.func @transform_0(%arg0: i32, %arg1: i32) -> (i32, i32) {
    %c0_i32 = arith.constant 0 : i32
    %c0_i32_0 = arith.constant 0 : i32
    return %c0_i32, %arg1 : i32, i32
  }
  func.func @transform_1(%arg0: i32, %arg1: i32) -> (i32, i32) {
    %c0_i32 = arith.constant 0 : i32
    %c0_i32_0 = arith.constant 0 : i32
    return %arg0, %c0_i32 : i32, i32
  }
  func.func @transform_2(%arg0: i32, %arg1: i32) -> (i32, i32, i32) {
    %c0_i32 = arith.constant 0 : i32
    %c0_i32_0 = arith.constant 0 : i32
    %c0_i32_1 = arith.constant 0 : i32
    return %c0_i32, %arg0, %c0_i32_0 : i32, i32, i32
  }
  func.func @transform_3(%arg0: i32, %arg1: i32) -> (i32, i32) {
    %c0_i32 = arith.constant 0 : i32
    return %arg0, %arg1 : i32, i32
  }
}

module attributes {stable_mosaic.version = 11 : i64} {
  func.func @_heads_kernel(%arg0: i32, %arg1: memref<16x256xbf16, #tpu.memory_space<vmem>>, %arg2: memref<256x128xbf16, #tpu.memory_space<vmem>>, %arg3: memref<1x128xf32, #tpu.memory_space<vmem>>, %arg4: memref<128x128xbf16, #tpu.memory_space<vmem>>, %arg5: memref<1x128xf32, #tpu.memory_space<vmem>>, %arg6: memref<128x128xbf16, #tpu.memory_space<vmem>>, %arg7: memref<1x128xf32, #tpu.memory_space<vmem>>, %arg8: memref<1x128xf32, #tpu.memory_space<vmem>>, %arg9: memref<16x128xf32, #tpu.memory_space<vmem>>) attributes {dimension_semantics = [#tpu.dimension_semantics<arbitrary>], iteration_bounds = array<i64: 1>, scalar_prefetch = 0 : i64, scratch_operands = 0 : i64, tpu.core_type = #tpu.core_type<tc>, window_params = [{pipeline_mode = #tpu.pipeline_mode<synchronous>, transform_indices = @transform_0, window_bounds = array<i64: 16, 256>}, {pipeline_mode = #tpu.pipeline_mode<synchronous>, transform_indices = @transform_1, window_bounds = array<i64: 256, 128>}, {pipeline_mode = #tpu.pipeline_mode<synchronous>, transform_indices = @transform_2, window_bounds = array<i64: 1, 128>}, {pipeline_mode = #tpu.pipeline_mode<synchronous>, transform_indices = @transform_3, window_bounds = array<i64: 128, 128>}, {pipeline_mode = #tpu.pipeline_mode<synchronous>, transform_indices = @transform_4, window_bounds = array<i64: 1, 128>}, {pipeline_mode = #tpu.pipeline_mode<synchronous>, transform_indices = @transform_5, window_bounds = array<i64: 128, 128>}, {pipeline_mode = #tpu.pipeline_mode<synchronous>, transform_indices = @transform_6, window_bounds = array<i64: 1, 128>}, {pipeline_mode = #tpu.pipeline_mode<synchronous>, transform_indices = @transform_7, window_bounds = array<i64: 1, 128>}, {pipeline_mode = #tpu.pipeline_mode<synchronous>, transform_indices = @transform_8, window_bounds = array<i64: 16, 128>}]} {
    %c0 = arith.constant 0 : index
    %c0_0 = arith.constant 0 : index
    %0 = vector.load %arg1[%c0, %c0_0] : memref<16x256xbf16, #tpu.memory_space<vmem>>, vector<16x256xbf16>
    %c0_1 = arith.constant 0 : index
    %c0_2 = arith.constant 0 : index
    %1 = vector.load %arg2[%c0_1, %c0_2] : memref<256x128xbf16, #tpu.memory_space<vmem>>, vector<256x128xbf16>
    %cst = arith.constant dense<0.000000e+00> : vector<16x128xf32>
    %2 = tpu.matmul %0, %1, %cst {dimension_numbers = #tpu.dot_dimension_numbers<[1], [0], [0], [1], [0, 0, 1, 1], [], []>} : vector<16x256xbf16>, vector<256x128xbf16>, vector<16x128xf32> -> vector<16x128xf32>
    %c0_3 = arith.constant 0 : index
    %c0_4 = arith.constant 0 : index
    %3 = vector.load %arg3[%c0_3, %c0_4] : memref<1x128xf32, #tpu.memory_space<vmem>>, vector<1x128xf32>
    %4 = vector.broadcast %3 : vector<1x128xf32> to vector<16x128xf32>
    %5 = arith.addf %2, %4 : vector<16x128xf32>
    %cst_5 = arith.constant 0.000000e+00 : f32
    %6 = vector.broadcast %cst_5 : f32 to vector<16x128xf32>
    %7 = arith.maximumf %5, %6 : vector<16x128xf32>
    %8 = arith.truncf %7 : vector<16x128xf32> to vector<16x128xbf16>
    %c0_6 = arith.constant 0 : index
    %c0_7 = arith.constant 0 : index
    %9 = vector.load %arg4[%c0_6, %c0_7] : memref<128x128xbf16, #tpu.memory_space<vmem>>, vector<128x128xbf16>
    %cst_8 = arith.constant dense<0.000000e+00> : vector<16x128xf32>
    %10 = tpu.matmul %8, %9, %cst_8 {dimension_numbers = #tpu.dot_dimension_numbers<[1], [0], [0], [1], [0, 0, 1, 1], [], []>} : vector<16x128xbf16>, vector<128x128xbf16>, vector<16x128xf32> -> vector<16x128xf32>
    %c0_9 = arith.constant 0 : index
    %c0_10 = arith.constant 0 : index
    %11 = vector.load %arg5[%c0_9, %c0_10] : memref<1x128xf32, #tpu.memory_space<vmem>>, vector<1x128xf32>
    %12 = vector.broadcast %11 : vector<1x128xf32> to vector<16x128xf32>
    %13 = arith.addf %10, %12 : vector<16x128xf32>
    %cst_11 = arith.constant 0.000000e+00 : f32
    %14 = vector.broadcast %cst_11 : f32 to vector<16x128xf32>
    %15 = arith.maximumf %13, %14 : vector<16x128xf32>
    %16 = arith.truncf %15 : vector<16x128xf32> to vector<16x128xbf16>
    %c0_12 = arith.constant 0 : index
    %c0_13 = arith.constant 0 : index
    %17 = vector.load %arg6[%c0_12, %c0_13] : memref<128x128xbf16, #tpu.memory_space<vmem>>, vector<128x128xbf16>
    %cst_14 = arith.constant dense<0.000000e+00> : vector<16x128xf32>
    %18 = tpu.matmul %16, %17, %cst_14 {dimension_numbers = #tpu.dot_dimension_numbers<[1], [0], [0], [1], [0, 0, 1, 1], [], []>} : vector<16x128xbf16>, vector<128x128xbf16>, vector<16x128xf32> -> vector<16x128xf32>
    %c0_15 = arith.constant 0 : index
    %c0_16 = arith.constant 0 : index
    %19 = vector.load %arg7[%c0_15, %c0_16] : memref<1x128xf32, #tpu.memory_space<vmem>>, vector<1x128xf32>
    %20 = vector.broadcast %19 : vector<1x128xf32> to vector<16x128xf32>
    %21 = arith.addf %18, %20 : vector<16x128xf32>
    %c0_17 = arith.constant 0 : index
    %c0_18 = arith.constant 0 : index
    %22 = vector.load %arg8[%c0_17, %c0_18] : memref<1x128xf32, #tpu.memory_space<vmem>>, vector<1x128xf32>
    %cst_19 = arith.constant 5.000000e-01 : f32
    %23 = vector.broadcast %cst_19 : f32 to vector<1x128xf32>
    %24 = arith.cmpf ogt, %22, %23 : vector<1x128xf32>
    %25 = arith.negf %21 : vector<16x128xf32>
    %26 = math.exp %25 : vector<16x128xf32>
    %cst_20 = arith.constant 1.000000e+00 : f32
    %27 = vector.broadcast %cst_20 : f32 to vector<16x128xf32>
    %28 = arith.addf %27, %26 : vector<16x128xf32>
    %29 = arith.divf %27, %28 : vector<16x128xf32>
    %30 = vector.shape_cast %24 : vector<1x128xi1> to vector<1x128xi1>
    %31 = vector.broadcast %30 : vector<1x128xi1> to vector<16x128xi1>
    %32 = arith.select %31, %29, %21 : vector<16x128xi1>, vector<16x128xf32>
    %c0_21 = arith.constant 0 : index
    %c0_22 = arith.constant 0 : index
    %33 = vector.load %arg9[%c0_21, %c0_22] : memref<16x128xf32, #tpu.memory_space<vmem>>, vector<16x128xf32>
    tpu.vector_store %arg9[%c0_21, %c0_22], %32 {strides = array<i32>} : memref<16x128xf32, #tpu.memory_space<vmem>>, vector<16x128xf32>,
    return
  }
  func.func @transform_0(%arg0: i32) -> (i32, i32) {
    %c0_i32 = arith.constant 0 : i32
    %c0_i32_0 = arith.constant 0 : i32
    %c0_i32_1 = arith.constant 0 : i32
    return %c0_i32, %c0_i32_0 : i32, i32
  }
  func.func @transform_1(%arg0: i32) -> (i32, i32) {
    %c0_i32 = arith.constant 0 : i32
    %c0_i32_0 = arith.constant 0 : i32
    %c0_i32_1 = arith.constant 0 : i32
    return %c0_i32, %c0_i32_0 : i32, i32
  }
  func.func @transform_2(%arg0: i32) -> (i32, i32) {
    %c0_i32 = arith.constant 0 : i32
    %c0_i32_0 = arith.constant 0 : i32
    %c0_i32_1 = arith.constant 0 : i32
    return %c0_i32, %c0_i32_0 : i32, i32
  }
  func.func @transform_3(%arg0: i32) -> (i32, i32) {
    %c0_i32 = arith.constant 0 : i32
    %c0_i32_0 = arith.constant 0 : i32
    %c0_i32_1 = arith.constant 0 : i32
    return %c0_i32, %c0_i32_0 : i32, i32
  }
  func.func @transform_4(%arg0: i32) -> (i32, i32) {
    %c0_i32 = arith.constant 0 : i32
    %c0_i32_0 = arith.constant 0 : i32
    %c0_i32_1 = arith.constant 0 : i32
    return %c0_i32, %c0_i32_0 : i32, i32
  }
  func.func @transform_5(%arg0: i32) -> (i32, i32) {
    %c0_i32 = arith.constant 0 : i32
    %c0_i32_0 = arith.constant 0 : i32
    %c0_i32_1 = arith.constant 0 : i32
    return %c0_i32, %c0_i32_0 : i32, i32
  }
  func.func @transform_6(%arg0: i32) -> (i32, i32) {
    %c0_i32 = arith.constant 0 : i32
    %c0_i32_0 = arith.constant 0 : i32
    %c0_i32_1 = arith.constant 0 : i32
    return %c0_i32, %c0_i32_0 : i32, i32
  }
  func.func @transform_7(%arg0: i32) -> (i32, i32) {
    %c0_i32 = arith.constant 0 : i32
    %c0_i32_0 = arith.constant 0 : i32
    %c0_i32_1 = arith.constant 0 : i32
    return %c0_i32, %c0_i32_0 : i32, i32
  }
  func.func @transform_8(%arg0: i32) -> (i32, i32) {
    %c0_i32 = arith.constant 0 : i32
    %c0_i32_0 = arith.constant 0 : i32
    %c0_i32_1 = arith.constant 0 : i32
    return %c0_i32, %c0_i32_0 : i32, i32
  }
}

</mosaic_0001>

<llo_original>
// kernel: net_forward.3
$region0: #{net_forward.3}
  #allocation0 [shape = 'u32[]', space=smem, size = 0x4, offset = 0x4, fixed_abs, tag = 'smem constant byte address 0x4 - core index']
  #allocation1 [shape = 'u32[144,128]{1,0:T(1,128)}', space=vmem, size = 0x12000, scoped, tag = 'internal scratch']
  %s0 = inlined_call_operand.hbm [shape: bf16[64,6144], index: 0, kind: input, shape index: {}]
  %s1 = inlined_call_operand.hbm [shape: bf16[8,64], index: 1, kind: input, shape index: {}]
  %s2 = inlined_call_operand.hbm [shape: f32[3,8,1], index: 2, kind: input, shape index: {}]
  %s3 = inlined_call_operand.hbm [shape: bf16[8,768], index: 3, kind: output, shape index: {}]
  %s4 = sld [smem:[#allocation0]]
  $region34: #{net_forward.3} parent=0
    _
  %s6 = ssub.s32 1, %s4
  %s7 = scalar_select 0, %s6, %s4
  $region1: #{net_forward.3} parent=0
    #allocation2 [shape = 'u8[786432]{0}', space=vmem, size = 0xc0000, scoped, tag = 'input window, operand 0, single buffered']
    #allocation3 [shape = 's32[1]{0}', space=sflag, size = 0x4, scoped, tag = 'scoped memory for net_forward.3']
    #allocation4 [shape = 's32[1]{0}', space=sflag, size = 0x4, scoped, tag = 'scoped memory for net_forward.3']
    #allocation5 [shape = 'u8[2048]{0}', space=vmem, size = 0x800, scoped, tag = 'input window, operand 1, single buffered']
    #allocation6 [shape = 's32[1]{0}', space=sflag, size = 0x4, scoped, tag = 'scoped memory for net_forward.3']
    #allocation7 [shape = 'u8[12288]{0}', space=vmem, size = 0x3000, scoped, tag = 'input window, operand 2, single buffered']
    #allocation8 [shape = 'u8[12288]{0}', space=vmem, size = 0x3000, scoped, tag = 'output window, operand 0, single buffered']
    %8 = vsyncpa [#allocation3], 0
    %9 = vsyncpa [#allocation6], 0
    %10 = vsyncpa [#allocation4], 0
    // Predicated region
    $region2: #{net_forward.3} parent=1 // pred_check
      _
    $region3: #{net_forward.3} parent=1 // pred_check_branch
      %12 = sbr.rel (0) target = $region5
    $region4: #{net_forward.3} parent=1 // pred_region
      %s14 = ssub.s32 24576, 24576
      %15 = vsyncadd [#allocation3], %s14
      %s16 = sshll.u32 [#allocation2], 4
      %s17 = int_to_ptr.vmem [resolvable:$true] %s16
      %22 = dma.hbm_to_vmem [thread:$0]  %s0, 24576, %s17, [#allocation3], 3072, 3072, 192
    $region5: #{net_forward.3} parent=1 // pred_fallthru
      _
    // Predicated region
    $region6: #{net_forward.3} parent=1 // pred_check
      _
    $region7: #{net_forward.3} parent=1 // pred_check_branch
      %24 = sbr.rel (0) target = $region9
    $region8: #{net_forward.3} parent=1 // pred_region
      %s26 = ssub.s32 64, 64
      %27 = vsyncadd [#allocation6], %s26
      %s29 = sshll.u32 [#allocation5], 4
      %s30 = int_to_ptr.vmem [resolvable:$true] %s29
      %32 = dma.hbm_to_vmem [thread:$0]  %s1, 64, %s30, [#allocation6]
    $region9: #{net_forward.3} parent=1 // pred_fallthru
      _
    // Predicated region
    $region10: #{net_forward.3} parent=1 // pred_check
      _
    $region11: #{net_forward.3} parent=1 // pred_check_branch
      %34 = sbr.rel (0) target = $region13
    $region12: #{net_forward.3} parent=1 // pred_region
      %s36 = ssub.s32 384, 384
      %37 = vsyncadd [#allocation6], %s36
      %s38 = sshll.u32 [#allocation7], 4
      %s39 = int_to_ptr.vmem [resolvable:$true] %s38
      %44 = dma.hbm_to_vmem [thread:$0]  %s2, 384, %s39, [#allocation6], 128, 128, 8
    $region13: #{net_forward.3} parent=1 // pred_fallthru
      _
    // Predicated region
    $region14: #{net_forward.3} parent=1 // pred_check
      _
    $region15: #{net_forward.3} parent=1 // pred_check_branch
      %46 = sbr.rel (0) target = $region17
    $region16: #{net_forward.3} parent=1 // pred_region
      %47 = dma.done [#allocation3], 24576
    $region17: #{net_forward.3} parent=1 // pred_fallthru
      _
    // Predicated region
    $region18: #{net_forward.3} parent=1 // pred_check
      _
    $region19: #{net_forward.3} parent=1 // pred_check_branch
      %49 = sbr.rel (0) target = $region21
    $region20: #{net_forward.3} parent=1 // pred_region
      %50 = dma.done [#allocation6], 64
    $region21: #{net_forward.3} parent=1 // pred_fallthru
      _
    // Predicated region
    $region22: #{net_forward.3} parent=1 // pred_check
      _
    $region23: #{net_forward.3} parent=1 // pred_check_branch
      %52 = sbr.rel (0) target = $region25
    $region24: #{net_forward.3} parent=1 // pred_region
      %53 = dma.done [#allocation6], 384
    $region25: #{net_forward.3} parent=1 // pred_fallthru
      _
    %v55 = vld [vmem:[#allocation5] sm:$0xf]
    %v56 = vld [vmem:[#allocation2] sm:$0xff]
    %v57 = vld [vmem:[#allocation2 + $0x8] sm:$0xff]
    %v58 = vld [vmem:[#allocation2 + $0x10] sm:$0xff]
    %v59 = vld [vmem:[#allocation2 + $0x18] sm:$0xff]
    %v60 = vld [vmem:[#allocation2 + $0x20] sm:$0xff]
    %v61 = vld [vmem:[#allocation2 + $0x28] sm:$0xff]
    %v62 = vld [vmem:[#allocation2 + $0x30] sm:$0xff]
    %v63 = vld [vmem:[#allocation2 + $0x38] sm:$0xff]
    %v64 = vld [vmem:[#allocation2 + $0x40] sm:$0xff]
    %v65 = vld [vmem:[#allocation2 + $0x48] sm:$0xff]
    %v66 = vld [vmem:[#allocation2 + $0x50] sm:$0xff]
    %v67 = vld [vmem:[#allocation2 + $0x58] sm:$0xff]
    %v68 = vld [vmem:[#allocation2 + $0x60] sm:$0xff]
    %v69 = vld [vmem:[#allocation2 + $0x68] sm:$0xff]
    %v70 = vld [vmem:[#allocation2 + $0x70] sm:$0xff]
    %v71 = vld [vmem:[#allocation2 + $0x78] sm:$0xff]
    %v72 = vld [vmem:[#allocation2 + $0x80] sm:$0xff]
    %v73 = vld [vmem:[#allocation2 + $0x88] sm:$0xff]
    %v74 = vld [vmem:[#allocation2 + $0x90] sm:$0xff]
    %v75 = vld [vmem:[#allocation2 + $0x98] sm:$0xff]
    %v76 = vld [vmem:[#allocation2 + $0xa0] sm:$0xff]
    %v77 = vld [vmem:[#allocation2 + $0xa8] sm:$0xff]
    %v78 = vld [vmem:[#allocation2 + $0xb0] sm:$0xff]
    %v79 = vld [vmem:[#allocation2 + $0xb8] sm:$0xff]
    %v80 = vld [vmem:[#allocation2 + $0xc0] sm:$0xff]
    %v81 = vld [vmem:[#allocation2 + $0xc8] sm:$0xff]
    %v82 = vld [vmem:[#allocation2 + $0xd0] sm:$0xff]
    %v83 = vld [vmem:[#allocation2 + $0xd8] sm:$0xff]
    %v84 = vld [vmem:[#allocation2 + $0xe0] sm:$0xff]
    %v85 = vld [vmem:[#allocation2 + $0xe8] sm:$0xff]
    %v86 = vld [vmem:[#allocation2 + $0xf0] sm:$0xff]
    %v87 = vld [vmem:[#allocation2 + $0xf8] sm:$0xff]
    %v88 = vld [vmem:[#allocation2 + $0x100] sm:$0xff]
    %v89 = vld [vmem:[#allocation2 + $0x108] sm:$0xff]
    %v90 = vld [vmem:[#allocation2 + $0x110] sm:$0xff]
    %v91 = vld [vmem:[#allocation2 + $0x118] sm:$0xff]
    %v92 = vld [vmem:[#allocation2 + $0x120] sm:$0xff]
    %v93 = vld [vmem:[#allocation2 + $0x128] sm:$0xff]
    %v94 = vld [vmem:[#allocation2 + $0x130] sm:$0xff]
    %v95 = vld [vmem:[#allocation2 + $0x138] sm:$0xff]
    %v96 = vld [vmem:[#allocation2 + $0x140] sm:$0xff]
    %v97 = vld [vmem:[#allocation2 + $0x148] sm:$0xff]
    %v98 = vld [vmem:[#allocation2 + $0x150] sm:$0xff]
    %v99 = vld [vmem:[#allocation2 + $0x158] sm:$0xff]
    %v100 = vld [vmem:[#allocation2 + $0x160] sm:$0xff]
    %v101 = vld [vmem:[#allocation2 + $0x168] sm:$0xff]
    %v102 = vld [vmem:[#allocation2 + $0x170] sm:$0xff]
    %v103 = vld [vmem:[#allocation2 + $0x178] sm:$0xff]
    %v104 = vld [vmem:[#allocation2 + $0x180] sm:$0xff]
    %v105 = vld [vmem:[#allocation2 + $0x188] sm:$0xff]
    %v106 = vld [vmem:[#allocation2 + $0x190] sm:$0xff]
    %v107 = vld [vmem:[#allocation2 + $0x198] sm:$0xff]
    %v108 = vld [vmem:[#allocation2 + $0x1a0] sm:$0xff]
    %v109 = vld [vmem:[#allocation2 + $0x1a8] sm:$0xff]
    %v110 = vld [vmem:[#allocation2 + $0x1b0] sm:$0xff]
    %v111 = vld [vmem:[#allocation2 + $0x1b8] sm:$0xff]
    %v112 = vld [vmem:[#allocation2 + $0x1c0] sm:$0xff]
    %v113 = vld [vmem:[#allocation2 + $0x1c8] sm:$0xff]
    %v114 = vld [vmem:[#allocation2 + $0x1d0] sm:$0xff]
    %v115 = vld [vmem:[#allocation2 + $0x1d8] sm:$0xff]
    %v116 = vld [vmem:[#allocation2 + $0x1e0] sm:$0xff]
    %v117 = vld [vmem:[#allocation2 + $0x1e8] sm:$0xff]
    %v118 = vld [vmem:[#allocation2 + $0x1f0] sm:$0xff]
    %v119 = vld [vmem:[#allocation2 + $0x1f8] sm:$0xff]
    %v120 = vld [vmem:[#allocation2 + $0x200] sm:$0xff]
    %v121 = vld [vmem:[#allocation2 + $0x208] sm:$0xff]
    %v122 = vld [vmem:[#allocation2 + $0x210] sm:$0xff]
    %v123 = vld [vmem:[#allocation2 + $0x218] sm:$0xff]
    %v124 = vld [vmem:[#allocation2 + $0x220] sm:$0xff]
    %v125 = vld [vmem:[#allocation2 + $0x228] sm:$0xff]
    %v126 = vld [vmem:[#allocation2 + $0x230] sm:$0xff]
    %v127 = vld [vmem:[#allocation2 + $0x238] sm:$0xff]
    %v128 = vld [vmem:[#allocation2 + $0x240] sm:$0xff]
    %v129 = vld [vmem:[#allocation2 + $0x248] sm:$0xff]
    %v130 = vld [vmem:[#allocation2 + $0x250] sm:$0xff]
    %v131 = vld [vmem:[#allocation2 + $0x258] sm:$0xff]
    %v132 = vld [vmem:[#allocation2 + $0x260] sm:$0xff]
    %v133 = vld [vmem:[#allocation2 + $0x268] sm:$0xff]
    %v134 = vld [vmem:[#allocation2 + $0x270] sm:$0xff]
    %v135 = vld [vmem:[#allocation2 + $0x278] sm:$0xff]
    %v136 = vld [vmem:[#allocation2 + $0x280] sm:$0xff]
    %v137 = vld [vmem:[#allocation2 + $0x288] sm:$0xff]
    %v138 = vld [vmem:[#allocation2 + $0x290] sm:$0xff]
    %v139 = vld [vmem:[#allocation2 + $0x298] sm:$0xff]
    %v140 = vld [vmem:[#allocation2 + $0x2a0] sm:$0xff]
    %v141 = vld [vmem:[#allocation2 + $0x2a8] sm:$0xff]
    %v142 = vld [vmem:[#allocation2 + $0x2b0] sm:$0xff]
    %v143 = vld [vmem:[#allocation2 + $0x2b8] sm:$0xff]
    %v144 = vld [vmem:[#allocation2 + $0x2c0] sm:$0xff]
    %v145 = vld [vmem:[#allocation2 + $0x2c8] sm:$0xff]
    %v146 = vld [vmem:[#allocation2 + $0x2d0] sm:$0xff]
    %v147 = vld [vmem:[#allocation2 + $0x2d8] sm:$0xff]
    %v148 = vld [vmem:[#allocation2 + $0x2e0] sm:$0xff]
    %v149 = vld [vmem:[#allocation2 + $0x2e8] sm:$0xff]
    %v150 = vld [vmem:[#allocation2 + $0x2f0] sm:$0xff]
    %v151 = vld [vmem:[#allocation2 + $0x2f8] sm:$0xff]
    %v152 = vld [vmem:[#allocation2 + $0x300] sm:$0xff]
    %v153 = vld [vmem:[#allocation2 + $0x308] sm:$0xff]
    %v154 = vld [vmem:[#allocation2 + $0x310] sm:$0xff]
    %v155 = vld [vmem:[#allocation2 + $0x318] sm:$0xff]
    %v156 = vld [vmem:[#allocation2 + $0x320] sm:$0xff]
    %v157 = vld [vmem:[#allocation2 + $0x328] sm:$0xff]
    %v158 = vld [vmem:[#allocation2 + $0x330] sm:$0xff]
    %v159 = vld [vmem:[#allocation2 + $0x338] sm:$0xff]
    %v160 = vld [vmem:[#allocation2 + $0x340] sm:$0xff]
    %v161 = vld [vmem:[#allocation2 + $0x348] sm:$0xff]
    %v162 = vld [vmem:[#allocation2 + $0x350] sm:$0xff]
    %v163 = vld [vmem:[#allocation2 + $0x358] sm:$0xff]
    %v164 = vld [vmem:[#allocation2 + $0x360] sm:$0xff]
    %v165 = vld [vmem:[#allocation2 + $0x368] sm:$0xff]
    %v166 = vld [vmem:[#allocation2 + $0x370] sm:$0xff]
    %v167 = vld [vmem:[#allocation2 + $0x378] sm:$0xff]
    %v168 = vld [vmem:[#allocation2 + $0x380] sm:$0xff]
    %v169 = vld [vmem:[#allocation2 + $0x388] sm:$0xff]
    %v170 = vld [vmem:[#allocation2 + $0x390] sm:$0xff]
    %v171 = vld [vmem:[#allocation2 + $0x398] sm:$0xff]
    %v172 = vld [vmem:[#allocation2 + $0x3a0] sm:$0xff]
    %v173 = vld [vmem:[#allocation2 + $0x3a8] sm:$0xff]
    %v174 = vld [vmem:[#allocation2 + $0x3b0] sm:$0xff]
    %v175 = vld [vmem:[#allocation2 + $0x3b8] sm:$0xff]
    %v176 = vld [vmem:[#allocation2 + $0x3c0] sm:$0xff]
    %v177 = vld [vmem:[#allocation2 + $0x3c8] sm:$0xff]
    %v178 = vld [vmem:[#allocation2 + $0x3d0] sm:$0xff]
    %v179 = vld [vmem:[#allocation2 + $0x3d8] sm:$0xff]
    %v180 = vld [vmem:[#allocation2 + $0x3e0] sm:$0xff]
    %v181 = vld [vmem:[#allocation2 + $0x3e8] sm:$0xff]
    %v182 = vld [vmem:[#allocation2 + $0x3f0] sm:$0xff]
    %v183 = vld [vmem:[#allocation2 + $0x3f8] sm:$0xff]
    %v184 = vld [vmem:[#allocation2 + $0x400] sm:$0xff]
    %v185 = vld [vmem:[#allocation2 + $0x408] sm:$0xff]
    %v186 = vld [vmem:[#allocation2 + $0x410] sm:$0xff]
    %v187 = vld [vmem:[#allocation2 + $0x418] sm:$0xff]
    %v188 = vld [vmem:[#allocation2 + $0x420] sm:$0xff]
    %v189 = vld [vmem:[#allocation2 + $0x428] sm:$0xff]
    %v190 = vld [vmem:[#allocation2 + $0x430] sm:$0xff]
    %v191 = vld [vmem:[#allocation2 + $0x438] sm:$0xff]
    %v192 = vld [vmem:[#allocation2 + $0x440] sm:$0xff]
    %v193 = vld [vmem:[#allocation2 + $0x448] sm:$0xff]
    %v194 = vld [vmem:[#allocation2 + $0x450] sm:$0xff]
    %v195 = vld [vmem:[#allocation2 + $0x458] sm:$0xff]
    %v196 = vld [vmem:[#allocation2 + $0x460] sm:$0xff]
    %v197 = vld [vmem:[#allocation2 + $0x468] sm:$0xff]
    %v198 = vld [vmem:[#allocation2 + $0x470] sm:$0xff]
    %v199 = vld [vmem:[#allocation2 + $0x478] sm:$0xff]
    %v200 = vld [vmem:[#allocation2 + $0x480] sm:$0xff]
    %v201 = vld [vmem:[#allocation2 + $0x488] sm:$0xff]
    %v202 = vld [vmem:[#allocation2 + $0x490] sm:$0xff]
    %v203 = vld [vmem:[#allocation2 + $0x498] sm:$0xff]
    %v204 = vld [vmem:[#allocation2 + $0x4a0] sm:$0xff]
    %v205 = vld [vmem:[#allocation2 + $0x4a8] sm:$0xff]
    %v206 = vld [vmem:[#allocation2 + $0x4b0] sm:$0xff]
    %v207 = vld [vmem:[#allocation2 + $0x4b8] sm:$0xff]
    %v208 = vld [vmem:[#allocation2 + $0x4c0] sm:$0xff]
    %v209 = vld [vmem:[#allocation2 + $0x4c8] sm:$0xff]
    %v210 = vld [vmem:[#allocation2 + $0x4d0] sm:$0xff]
    %v211 = vld [vmem:[#allocation2 + $0x4d8] sm:$0xff]
    %v212 = vld [vmem:[#allocation2 + $0x4e0] sm:$0xff]
    %v213 = vld [vmem:[#allocation2 + $0x4e8] sm:$0xff]
    %v214 = vld [vmem:[#allocation2 + $0x4f0] sm:$0xff]
    %v215 = vld [vmem:[#allocation2 + $0x4f8] sm:$0xff]
    %v216 = vld [vmem:[#allocation2 + $0x500] sm:$0xff]
    %v217 = vld [vmem:[#allocation2 + $0x508] sm:$0xff]
    %v218 = vld [vmem:[#allocation2 + $0x510] sm:$0xff]
    %v219 = vld [vmem:[#allocation2 + $0x518] sm:$0xff]
    %v220 = vld [vmem:[#allocation2 + $0x520] sm:$0xff]
    %v221 = vld [vmem:[#allocation2 + $0x528] sm:$0xff]
    %v222 = vld [vmem:[#allocation2 + $0x530] sm:$0xff]
    %v223 = vld [vmem:[#allocation2 + $0x538] sm:$0xff]
    %v224 = vld [vmem:[#allocation2 + $0x540] sm:$0xff]
    %v225 = vld [vmem:[#allocation2 + $0x548] sm:$0xff]
    %v226 = vld [vmem:[#allocation2 + $0x550] sm:$0xff]
    %v227 = vld [vmem:[#allocation2 + $0x558] sm:$0xff]
    %v228 = vld [vmem:[#allocation2 + $0x560] sm:$0xff]
    %v229 = vld [vmem:[#allocation2 + $0x568] sm:$0xff]
    %v230 = vld [vmem:[#allocation2 + $0x570] sm:$0xff]
    %v231 = vld [vmem:[#allocation2 + $0x578] sm:$0xff]
    %v232 = vld [vmem:[#allocation2 + $0x580] sm:$0xff]
    %v233 = vld [vmem:[#allocation2 + $0x588] sm:$0xff]
    %v234 = vld [vmem:[#allocation2 + $0x590] sm:$0xff]
    %v235 = vld [vmem:[#allocation2 + $0x598] sm:$0xff]
    %v236 = vld [vmem:[#allocation2 + $0x5a0] sm:$0xff]
    %v237 = vld [vmem:[#allocation2 + $0x5a8] sm:$0xff]
    %v238 = vld [vmem:[#allocation2 + $0x5b0] sm:$0xff]
    %v239 = vld [vmem:[#allocation2 + $0x5b8] sm:$0xff]
    %v240 = vld [vmem:[#allocation2 + $0x5c0] sm:$0xff]
    %v241 = vld [vmem:[#allocation2 + $0x5c8] sm:$0xff]
    %v242 = vld [vmem:[#allocation2 + $0x5d0] sm:$0xff]
    %v243 = vld [vmem:[#allocation2 + $0x5d8] sm:$0xff]
    %v244 = vld [vmem:[#allocation2 + $0x5e0] sm:$0xff]
    %v245 = vld [vmem:[#allocation2 + $0x5e8] sm:$0xff]
    %v246 = vld [vmem:[#allocation2 + $0x5f0] sm:$0xff]
    %v247 = vld [vmem:[#allocation2 + $0x5f8] sm:$0xff]
    %v440 = vunpack.c.l.b16 %v56
    %v441 = vunpack.c.h.b16 %v56
    %v442 = vunpack.c.l.b16 %v57
    %v443 = vunpack.c.h.b16 %v57
    %v444 = vunpack.c.l.b16 %v58
    %v445 = vunpack.c.h.b16 %v58
    %v446 = vunpack.c.l.b16 %v59
    %v447 = vunpack.c.h.b16 %v59
    %v448 = vunpack.c.l.b16 %v60
    %v449 = vunpack.c.h.b16 %v60
    %v450 = vunpack.c.l.b16 %v61
    %v451 = vunpack.c.h.b16 %v61
    %v452 = vunpack.c.l.b16 %v62
    %v453 = vunpack.c.h.b16 %v62
    %v454 = vunpack.c.l.b16 %v63
    %v455 = vunpack.c.h.b16 %v63
    %v456 = vunpack.c.l.b16 %v64
    %v457 = vunpack.c.h.b16 %v64
    %v458 = vunpack.c.l.b16 %v65
    %v459 = vunpack.c.h.b16 %v65
    %v460 = vunpack.c.l.b16 %v66
    %v461 = vunpack.c.h.b16 %v66
    %v462 = vunpack.c.l.b16 %v67
    %v463 = vunpack.c.h.b16 %v67
    %v464 = vunpack.c.l.b16 %v68
    %v465 = vunpack.c.h.b16 %v68
    %v466 = vunpack.c.l.b16 %v69
    %v467 = vunpack.c.h.b16 %v69
    %v468 = vunpack.c.l.b16 %v70
    %v469 = vunpack.c.h.b16 %v70
    %v470 = vunpack.c.l.b16 %v71
    %v471 = vunpack.c.h.b16 %v71
    %v472 = vunpack.c.l.b16 %v72
    %v473 = vunpack.c.h.b16 %v72
    %v474 = vunpack.c.l.b16 %v73
    %v475 = vunpack.c.h.b16 %v73
    %v476 = vunpack.c.l.b16 %v74
    %v477 = vunpack.c.h.b16 %v74
    %v478 = vunpack.c.l.b16 %v75
    %v479 = vunpack.c.h.b16 %v75
    %v480 = vunpack.c.l.b16 %v76
    %v481 = vunpack.c.h.b16 %v76
    %v482 = vunpack.c.l.b16 %v77
    %v483 = vunpack.c.h.b16 %v77
    %v484 = vunpack.c.l.b16 %v78
    %v485 = vunpack.c.h.b16 %v78
    %v486 = vunpack.c.l.b16 %v79
    %v487 = vunpack.c.h.b16 %v79
    %v488 = vunpack.c.l.b16 %v80
    %v489 = vunpack.c.h.b16 %v80
    %v490 = vunpack.c.l.b16 %v81
    %v491 = vunpack.c.h.b16 %v81
    %v492 = vunpack.c.l.b16 %v82
    %v493 = vunpack.c.h.b16 %v82
    %v494 = vunpack.c.l.b16 %v83
    %v495 = vunpack.c.h.b16 %v83
    %v496 = vunpack.c.l.b16 %v84
    %v497 = vunpack.c.h.b16 %v84
    %v498 = vunpack.c.l.b16 %v85
    %v499 = vunpack.c.h.b16 %v85
    %v500 = vunpack.c.l.b16 %v86
    %v501 = vunpack.c.h.b16 %v86
    %v502 = vunpack.c.l.b16 %v87
    %v503 = vunpack.c.h.b16 %v87
    %v504 = vunpack.c.l.b16 %v88
    %v505 = vunpack.c.h.b16 %v88
    %v506 = vunpack.c.l.b16 %v89
    %v507 = vunpack.c.h.b16 %v89
    %v508 = vunpack.c.l.b16 %v90
    %v509 = vunpack.c.h.b16 %v90
    %v510 = vunpack.c.l.b16 %v91
    %v511 = vunpack.c.h.b16 %v91
    %v512 = vunpack.c.l.b16 %v92
    %v513 = vunpack.c.h.b16 %v92
    %v514 = vunpack.c.l.b16 %v93
    %v515 = vunpack.c.h.b16 %v93
    %v516 = vunpack.c.l.b16 %v94
    %v517 = vunpack.c.h.b16 %v94
    %v518 = vunpack.c.l.b16 %v95
    %v519 = vunpack.c.h.b16 %v95
    %v520 = vunpack.c.l.b16 %v96
    %v521 = vunpack.c.h.b16 %v96
    %v522 = vunpack.c.l.b16 %v97
    %v523 = vunpack.c.h.b16 %v97
    %v524 = vunpack.c.l.b16 %v98
    %v525 = vunpack.c.h.b16 %v98
    %v526 = vunpack.c.l.b16 %v99
    %v527 = vunpack.c.h.b16 %v99
    %v528 = vunpack.c.l.b16 %v100
    %v529 = vunpack.c.h.b16 %v100
    %v530 = vunpack.c.l.b16 %v101
    %v531 = vunpack.c.h.b16 %v101
    %v532 = vunpack.c.l.b16 %v102
    %v533 = vunpack.c.h.b16 %v102
    %v534 = vunpack.c.l.b16 %v103
    %v535 = vunpack.c.h.b16 %v103
    %v536 = vunpack.c.l.b16 %v104
    %v537 = vunpack.c.h.b16 %v104
    %v538 = vunpack.c.l.b16 %v105
    %v539 = vunpack.c.h.b16 %v105
    %v540 = vunpack.c.l.b16 %v106
    %v541 = vunpack.c.h.b16 %v106
    %v542 = vunpack.c.l.b16 %v107
    %v543 = vunpack.c.h.b16 %v107
    %v544 = vunpack.c.l.b16 %v108
    %v545 = vunpack.c.h.b16 %v108
    %v546 = vunpack.c.l.b16 %v109
    %v547 = vunpack.c.h.b16 %v109
    %v548 = vunpack.c.l.b16 %v110
    %v549 = vunpack.c.h.b16 %v110
    %v550 = vunpack.c.l.b16 %v111
    %v551 = vunpack.c.h.b16 %v111
    %v552 = vunpack.c.l.b16 %v112
    %v553 = vunpack.c.h.b16 %v112
    %v554 = vunpack.c.l.b16 %v113
    %v555 = vunpack.c.h.b16 %v113
    %v556 = vunpack.c.l.b16 %v114
    %v557 = vunpack.c.h.b16 %v114
    %v558 = vunpack.c.l.b16 %v115
    %v559 = vunpack.c.h.b16 %v115
    %v560 = vunpack.c.l.b16 %v116
    %v561 = vunpack.c.h.b16 %v116
    %v562 = vunpack.c.l.b16 %v117
    %v563 = vunpack.c.h.b16 %v117
    %v564 = vunpack.c.l.b16 %v118
    %v565 = vunpack.c.h.b16 %v118
    %v566 = vunpack.c.l.b16 %v119
    %v567 = vunpack.c.h.b16 %v119
    %v568 = vunpack.c.l.b16 %v120
    %v569 = vunpack.c.h.b16 %v120
    %v570 = vunpack.c.l.b16 %v121
    %v571 = vunpack.c.h.b16 %v121
    %v572 = vunpack.c.l.b16 %v122
    %v573 = vunpack.c.h.b16 %v122
    %v574 = vunpack.c.l.b16 %v123
    %v575 = vunpack.c.h.b16 %v123
    %v576 = vunpack.c.l.b16 %v124
    %v577 = vunpack.c.h.b16 %v124
    %v578 = vunpack.c.l.b16 %v125
    %v579 = vunpack.c.h.b16 %v125
    %v580 = vunpack.c.l.b16 %v126
    %v581 = vunpack.c.h.b16 %v126
    %v582 = vunpack.c.l.b16 %v127
    %v583 = vunpack.c.h.b16 %v127
    %v584 = vunpack.c.l.b16 %v128
    %v585 = vunpack.c.h.b16 %v128
    %v586 = vunpack.c.l.b16 %v129
    %v587 = vunpack.c.h.b16 %v129
    %v588 = vunpack.c.l.b16 %v130
    %v589 = vunpack.c.h.b16 %v130
    %v590 = vunpack.c.l.b16 %v131
    %v591 = vunpack.c.h.b16 %v131
    %v592 = vunpack.c.l.b16 %v132
    %v593 = vunpack.c.h.b16 %v132
    %v594 = vunpack.c.l.b16 %v133
    %v595 = vunpack.c.h.b16 %v133
    %v596 = vunpack.c.l.b16 %v134
    %v597 = vunpack.c.h.b16 %v134
    %v598 = vunpack.c.l.b16 %v135
    %v599 = vunpack.c.h.b16 %v135
    %v600 = vunpack.c.l.b16 %v136
    %v601 = vunpack.c.h.b16 %v136
    %v602 = vunpack.c.l.b16 %v137
    %v603 = vunpack.c.h.b16 %v137
    %v604 = vunpack.c.l.b16 %v138
    %v605 = vunpack.c.h.b16 %v138
    %v606 = vunpack.c.l.b16 %v139
    %v607 = vunpack.c.h.b16 %v139
    %v608 = vunpack.c.l.b16 %v140
    %v609 = vunpack.c.h.b16 %v140
    %v610 = vunpack.c.l.b16 %v141
    %v611 = vunpack.c.h.b16 %v141
    %v612 = vunpack.c.l.b16 %v142
    %v613 = vunpack.c.h.b16 %v142
    %v614 = vunpack.c.l.b16 %v143
    %v615 = vunpack.c.h.b16 %v143
    %v616 = vunpack.c.l.b16 %v144
    %v617 = vunpack.c.h.b16 %v144
    %v618 = vunpack.c.l.b16 %v145
    %v619 = vunpack.c.h.b16 %v145
    %v620 = vunpack.c.l.b16 %v146
    %v621 = vunpack.c.h.b16 %v146
    %v622 = vunpack.c.l.b16 %v147
    %v623 = vunpack.c.h.b16 %v147
    %v624 = vunpack.c.l.b16 %v148
    %v625 = vunpack.c.h.b16 %v148
    %v626 = vunpack.c.l.b16 %v149
    %v627 = vunpack.c.h.b16 %v149
    %v628 = vunpack.c.l.b16 %v150
    %v629 = vunpack.c.h.b16 %v150
    %v630 = vunpack.c.l.b16 %v151
    %v631 = vunpack.c.h.b16 %v151
    %v632 = vunpack.c.l.b16 %v152
    %v633 = vunpack.c.h.b16 %v152
    %v634 = vunpack.c.l.b16 %v153
    %v635 = vunpack.c.h.b16 %v153
    %v636 = vunpack.c.l.b16 %v154
    %v637 = vunpack.c.h.b16 %v154
    %v638 = vunpack.c.l.b16 %v155
    %v639 = vunpack.c.h.b16 %v155
    %v640 = vunpack.c.l.b16 %v156
    %v641 = vunpack.c.h.b16 %v156
    %v642 = vunpack.c.l.b16 %v157
    %v643 = vunpack.c.h.b16 %v157
    %v644 = vunpack.c.l.b16 %v158
    %v645 = vunpack.c.h.b16 %v158
    %v646 = vunpack.c.l.b16 %v159
    %v647 = vunpack.c.h.b16 %v159
    %v648 = vunpack.c.l.b16 %v160
    %v649 = vunpack.c.h.b16 %v160
    %v650 = vunpack.c.l.b16 %v161
    %v651 = vunpack.c.h.b16 %v161
    %v652 = vunpack.c.l.b16 %v162
    %v653 = vunpack.c.h.b16 %v162
    %v654 = vunpack.c.l.b16 %v163
    %v655 = vunpack.c.h.b16 %v163
    %v656 = vunpack.c.l.b16 %v164
    %v657 = vunpack.c.h.b16 %v164
    %v658 = vunpack.c.l.b16 %v165
    %v659 = vunpack.c.h.b16 %v165
    %v660 = vunpack.c.l.b16 %v166
    %v661 = vunpack.c.h.b16 %v166
    %v662 = vunpack.c.l.b16 %v167
    %v663 = vunpack.c.h.b16 %v167
    %v664 = vunpack.c.l.b16 %v168
    %v665 = vunpack.c.h.b16 %v168
    %v666 = vunpack.c.l.b16 %v169
    %v667 = vunpack.c.h.b16 %v169
    %v668 = vunpack.c.l.b16 %v170
    %v669 = vunpack.c.h.b16 %v170
    %v670 = vunpack.c.l.b16 %v171
    %v671 = vunpack.c.h.b16 %v171
    %v672 = vunpack.c.l.b16 %v172
    %v673 = vunpack.c.h.b16 %v172
    %v674 = vunpack.c.l.b16 %v173
    %v675 = vunpack.c.h.b16 %v173
    %v676 = vunpack.c.l.b16 %v174
    %v677 = vunpack.c.h.b16 %v174
    %v678 = vunpack.c.l.b16 %v175
    %v679 = vunpack.c.h.b16 %v175
    %v680 = vunpack.c.l.b16 %v176
    %v681 = vunpack.c.h.b16 %v176
    %v682 = vunpack.c.l.b16 %v177
    %v683 = vunpack.c.h.b16 %v177
    %v684 = vunpack.c.l.b16 %v178
    %v685 = vunpack.c.h.b16 %v178
    %v686 = vunpack.c.l.b16 %v179
    %v687 = vunpack.c.h.b16 %v179
    %v688 = vunpack.c.l.b16 %v180
    %v689 = vunpack.c.h.b16 %v180
    %v690 = vunpack.c.l.b16 %v181
    %v691 = vunpack.c.h.b16 %v181
    %v692 = vunpack.c.l.b16 %v182
    %v693 = vunpack.c.h.b16 %v182
    %v694 = vunpack.c.l.b16 %v183
    %v695 = vunpack.c.h.b16 %v183
    %v696 = vunpack.c.l.b16 %v184
    %v697 = vunpack.c.h.b16 %v184
    %v698 = vunpack.c.l.b16 %v185
    %v699 = vunpack.c.h.b16 %v185
    %v700 = vunpack.c.l.b16 %v186
    %v701 = vunpack.c.h.b16 %v186
    %v702 = vunpack.c.l.b16 %v187
    %v703 = vunpack.c.h.b16 %v187
    %v704 = vunpack.c.l.b16 %v188
    %v705 = vunpack.c.h.b16 %v188
    %v706 = vunpack.c.l.b16 %v189
    %v707 = vunpack.c.h.b16 %v189
    %v708 = vunpack.c.l.b16 %v190
    %v709 = vunpack.c.h.b16 %v190
    %v710 = vunpack.c.l.b16 %v191
    %v711 = vunpack.c.h.b16 %v191
    %v712 = vunpack.c.l.b16 %v192
    %v713 = vunpack.c.h.b16 %v192
    %v714 = vunpack.c.l.b16 %v193
    %v715 = vunpack.c.h.b16 %v193
    %v716 = vunpack.c.l.b16 %v194
    %v717 = vunpack.c.h.b16 %v194
    %v718 = vunpack.c.l.b16 %v195
    %v719 = vunpack.c.h.b16 %v195
    %v720 = vunpack.c.l.b16 %v196
    %v721 = vunpack.c.h.b16 %v196
    %v722 = vunpack.c.l.b16 %v197
    %v723 = vunpack.c.h.b16 %v197
    %v724 = vunpack.c.l.b16 %v198
    %v725 = vunpack.c.h.b16 %v198
    %v726 = vunpack.c.l.b16 %v199
    %v727 = vunpack.c.h.b16 %v199
    %v728 = vunpack.c.l.b16 %v200
    %v729 = vunpack.c.h.b16 %v200
    %v730 = vunpack.c.l.b16 %v201
    %v731 = vunpack.c.h.b16 %v201
    %v732 = vunpack.c.l.b16 %v202
    %v733 = vunpack.c.h.b16 %v202
    %v734 = vunpack.c.l.b16 %v203
    %v735 = vunpack.c.h.b16 %v203
    %v736 = vunpack.c.l.b16 %v204
    %v737 = vunpack.c.h.b16 %v204
    %v738 = vunpack.c.l.b16 %v205
    %v739 = vunpack.c.h.b16 %v205
    %v740 = vunpack.c.l.b16 %v206
    %v741 = vunpack.c.h.b16 %v206
    %v742 = vunpack.c.l.b16 %v207
    %v743 = vunpack.c.h.b16 %v207
    %v744 = vunpack.c.l.b16 %v208
    %v745 = vunpack.c.h.b16 %v208
    %v746 = vunpack.c.l.b16 %v209
    %v747 = vunpack.c.h.b16 %v209
    %v748 = vunpack.c.l.b16 %v210
    %v749 = vunpack.c.h.b16 %v210
    %v750 = vunpack.c.l.b16 %v211
    %v751 = vunpack.c.h.b16 %v211
    %v752 = vunpack.c.l.b16 %v212
    %v753 = vunpack.c.h.b16 %v212
    %v754 = vunpack.c.l.b16 %v213
    %v755 = vunpack.c.h.b16 %v213
    %v756 = vunpack.c.l.b16 %v214
    %v757 = vunpack.c.h.b16 %v214
    %v758 = vunpack.c.l.b16 %v215
    %v759 = vunpack.c.h.b16 %v215
    %v760 = vunpack.c.l.b16 %v216
    %v761 = vunpack.c.h.b16 %v216
    %v762 = vunpack.c.l.b16 %v217
    %v763 = vunpack.c.h.b16 %v217
    %v764 = vunpack.c.l.b16 %v218
    %v765 = vunpack.c.h.b16 %v218
    %v766 = vunpack.c.l.b16 %v219
    %v767 = vunpack.c.h.b16 %v219
    %v768 = vunpack.c.l.b16 %v220
    %v769 = vunpack.c.h.b16 %v220
    %v770 = vunpack.c.l.b16 %v221
    %v771 = vunpack.c.h.b16 %v221
    %v772 = vunpack.c.l.b16 %v222
    %v773 = vunpack.c.h.b16 %v222
    %v774 = vunpack.c.l.b16 %v223
    %v775 = vunpack.c.h.b16 %v223
    %v776 = vunpack.c.l.b16 %v224
    %v777 = vunpack.c.h.b16 %v224
    %v778 = vunpack.c.l.b16 %v225
    %v779 = vunpack.c.h.b16 %v225
    %v780 = vunpack.c.l.b16 %v226
    %v781 = vunpack.c.h.b16 %v226
    %v782 = vunpack.c.l.b16 %v227
    %v783 = vunpack.c.h.b16 %v227
    %v784 = vunpack.c.l.b16 %v228
    %v785 = vunpack.c.h.b16 %v228
    %v786 = vunpack.c.l.b16 %v229
    %v787 = vunpack.c.h.b16 %v229
    %v788 = vunpack.c.l.b16 %v230
    %v789 = vunpack.c.h.b16 %v230
    %v790 = vunpack.c.l.b16 %v231
    %v791 = vunpack.c.h.b16 %v231
    %v792 = vunpack.c.l.b16 %v232
    %v793 = vunpack.c.h.b16 %v232
    %v794 = vunpack.c.l.b16 %v233
    %v795 = vunpack.c.h.b16 %v233
    %v796 = vunpack.c.l.b16 %v234
    %v797 = vunpack.c.h.b16 %v234
    %v798 = vunpack.c.l.b16 %v235
    %v799 = vunpack.c.h.b16 %v235
    %v800 = vunpack.c.l.b16 %v236
    %v801 = vunpack.c.h.b16 %v236
    %v802 = vunpack.c.l.b16 %v237
    %v803 = vunpack.c.h.b16 %v237
    %v804 = vunpack.c.l.b16 %v238
    %v805 = vunpack.c.h.b16 %v238
    %v806 = vunpack.c.l.b16 %v239
    %v807 = vunpack.c.h.b16 %v239
    %v808 = vunpack.c.l.b16 %v240
    %v809 = vunpack.c.h.b16 %v240
    %v810 = vunpack.c.l.b16 %v241
    %v811 = vunpack.c.h.b16 %v241
    %v812 = vunpack.c.l.b16 %v242
    %v813 = vunpack.c.h.b16 %v242
    %v814 = vunpack.c.l.b16 %v243
    %v815 = vunpack.c.h.b16 %v243
    %v816 = vunpack.c.l.b16 %v244
    %v817 = vunpack.c.h.b16 %v244
    %v818 = vunpack.c.l.b16 %v245
    %v819 = vunpack.c.h.b16 %v245
    %v820 = vunpack.c.l.b16 %v246
    %v821 = vunpack.c.h.b16 %v246
    %v822 = vunpack.c.l.b16 %v247
    %v823 = vunpack.c.h.b16 %v247
    %v824 = vpack.c.b16 %v488, %v440
    %v825 = vpack.c.b16 %v489, %v441
    %v826 = vpack.c.b16 %v490, %v442
    %v827 = vpack.c.b16 %v491, %v443
    %v828 = vpack.c.b16 %v492, %v444
    %v829 = vpack.c.b16 %v493, %v445
    %v830 = vpack.c.b16 %v494, %v446
    %v831 = vpack.c.b16 %v495, %v447
    %v832 = vpack.c.b16 %v496, %v448
    %v833 = vpack.c.b16 %v497, %v449
    %v834 = vpack.c.b16 %v498, %v450
    %v835 = vpack.c.b16 %v499, %v451
    %v836 = vpack.c.b16 %v500, %v452
    %v837 = vpack.c.b16 %v501, %v453
    %v838 = vpack.c.b16 %v502, %v454
    %v839 = vpack.c.b16 %v503, %v455
    %v840 = vpack.c.b16 %v504, %v456
    %v841 = vpack.c.b16 %v505, %v457
    %v842 = vpack.c.b16 %v506, %v458
    %v843 = vpack.c.b16 %v507, %v459
    %v844 = vpack.c.b16 %v508, %v460
    %v845 = vpack.c.b16 %v509, %v461
    %v846 = vpack.c.b16 %v510, %v462
    %v847 = vpack.c.b16 %v511, %v463
    %v848 = vpack.c.b16 %v512, %v464
    %v849 = vpack.c.b16 %v513, %v465
    %v850 = vpack.c.b16 %v514, %v466
    %v851 = vpack.c.b16 %v515, %v467
    %v852 = vpack.c.b16 %v516, %v468
    %v853 = vpack.c.b16 %v517, %v469
    %v854 = vpack.c.b16 %v518, %v470
    %v855 = vpack.c.b16 %v519, %v471
    %v856 = vpack.c.b16 %v520, %v472
    %v857 = vpack.c.b16 %v521, %v473
    %v858 = vpack.c.b16 %v522, %v474
    %v859 = vpack.c.b16 %v523, %v475
    %v860 = vpack.c.b16 %v524, %v476
    %v861 = vpack.c.b16 %v525, %v477
    %v862 = vpack.c.b16 %v526, %v478
    %v863 = vpack.c.b16 %v527, %v479
    %v864 = vpack.c.b16 %v528, %v480
    %v865 = vpack.c.b16 %v529, %v481
    %v866 = vpack.c.b16 %v530, %v482
    %v867 = vpack.c.b16 %v531, %v483
    %v868 = vpack.c.b16 %v532, %v484
    %v869 = vpack.c.b16 %v533, %v485
    %v870 = vpack.c.b16 %v534, %v486
    %v871 = vpack.c.b16 %v535, %v487
    %v872 = vpack.c.b16 %v584, %v536
    %v873 = vpack.c.b16 %v585, %v537
    %v874 = vpack.c.b16 %v586, %v538
    %v875 = vpack.c.b16 %v587, %v539
    %v876 = vpack.c.b16 %v588, %v540
    %v877 = vpack.c.b16 %v589, %v541
    %v878 = vpack.c.b16 %v590, %v542
    %v879 = vpack.c.b16 %v591, %v543
    %v880 = vpack.c.b16 %v592, %v544
    %v881 = vpack.c.b16 %v593, %v545
    %v882 = vpack.c.b16 %v594, %v546
    %v883 = vpack.c.b16 %v595, %v547
    %v884 = vpack.c.b16 %v596, %v548
    %v885 = vpack.c.b16 %v597, %v549
    %v886 = vpack.c.b16 %v598, %v550
    %v887 = vpack.c.b16 %v599, %v551
    %v888 = vpack.c.b16 %v600, %v552
    %v889 = vpack.c.b16 %v601, %v553
    %v890 = vpack.c.b16 %v602, %v554
    %v891 = vpack.c.b16 %v603, %v555
    %v892 = vpack.c.b16 %v604, %v556
    %v893 = vpack.c.b16 %v605, %v557
    %v894 = vpack.c.b16 %v606, %v558
    %v895 = vpack.c.b16 %v607, %v559
    %v896 = vpack.c.b16 %v608, %v560
    %v897 = vpack.c.b16 %v609, %v561
    %v898 = vpack.c.b16 %v610, %v562
    %v899 = vpack.c.b16 %v611, %v563
    %v900 = vpack.c.b16 %v612, %v564
    %v901 = vpack.c.b16 %v613, %v565
    %v902 = vpack.c.b16 %v614, %v566
    %v903 = vpack.c.b16 %v615, %v567
    %v904 = vpack.c.b16 %v616, %v568
    %v905 = vpack.c.b16 %v617, %v569
    %v906 = vpack.c.b16 %v618, %v570
    %v907 = vpack.c.b16 %v619, %v571
    %v908 = vpack.c.b16 %v620, %v572
    %v909 = vpack.c.b16 %v621, %v573
    %v910 = vpack.c.b16 %v622, %v574
    %v911 = vpack.c.b16 %v623, %v575
    %v912 = vpack.c.b16 %v624, %v576
    %v913 = vpack.c.b16 %v625, %v577
    %v914 = vpack.c.b16 %v626, %v578
    %v915 = vpack.c.b16 %v627, %v579
    %v916 = vpack.c.b16 %v628, %v580
    %v917 = vpack.c.b16 %v629, %v581
    %v918 = vpack.c.b16 %v630, %v582
    %v919 = vpack.c.b16 %v631, %v583
    %v920 = vpack.c.b16 %v680, %v632
    %v921 = vpack.c.b16 %v681, %v633
    %v922 = vpack.c.b16 %v682, %v634
    %v923 = vpack.c.b16 %v683, %v635
    %v924 = vpack.c.b16 %v684, %v636
    %v925 = vpack.c.b16 %v685, %v637
    %v926 = vpack.c.b16 %v686, %v638
    %v927 = vpack.c.b16 %v687, %v639
    %v928 = vpack.c.b16 %v688, %v640
    %v929 = vpack.c.b16 %v689, %v641
    %v930 = vpack.c.b16 %v690, %v642
    %v931 = vpack.c.b16 %v691, %v643
    %v932 = vpack.c.b16 %v692, %v644
    %v933 = vpack.c.b16 %v693, %v645
    %v934 = vpack.c.b16 %v694, %v646
    %v935 = vpack.c.b16 %v695, %v647
    %v936 = vpack.c.b16 %v696, %v648
    %v937 = vpack.c.b16 %v697, %v649
    %v938 = vpack.c.b16 %v698, %v650
    %v939 = vpack.c.b16 %v699, %v651
    %v940 = vpack.c.b16 %v700, %v652
    %v941 = vpack.c.b16 %v701, %v653
    %v942 = vpack.c.b16 %v702, %v654
    %v943 = vpack.c.b16 %v703, %v655
    %v944 = vpack.c.b16 %v704, %v656
    %v945 = vpack.c.b16 %v705, %v657
    %v946 = vpack.c.b16 %v706, %v658
    %v947 = vpack.c.b16 %v707, %v659
    %v948 = vpack.c.b16 %v708, %v660
    %v949 = vpack.c.b16 %v709, %v661
    %v950 = vpack.c.b16 %v710, %v662
    %v951 = vpack.c.b16 %v711, %v663
    %v952 = vpack.c.b16 %v712, %v664
    %v953 = vpack.c.b16 %v713, %v665
    %v954 = vpack.c.b16 %v714, %v666
    %v955 = vpack.c.b16 %v715, %v667
    %v956 = vpack.c.b16 %v716, %v668
    %v957 = vpack.c.b16 %v717, %v669
    %v958 = vpack.c.b16 %v718, %v670
    %v959 = vpack.c.b16 %v719, %v671
    %v960 = vpack.c.b16 %v720, %v672
    %v961 = vpack.c.b16 %v721, %v673
    %v962 = vpack.c.b16 %v722, %v674
    %v963 = vpack.c.b16 %v723, %v675
    %v964 = vpack.c.b16 %v724, %v676
    %v965 = vpack.c.b16 %v725, %v677
    %v966 = vpack.c.b16 %v726, %v678
    %v967 = vpack.c.b16 %v727, %v679
    %v968 = vpack.c.b16 %v776, %v728
    %v969 = vpack.c.b16 %v777, %v729
    %v970 = vpack.c.b16 %v778, %v730
    %v971 = vpack.c.b16 %v779, %v731
    %v972 = vpack.c.b16 %v780, %v732
    %v973 = vpack.c.b16 %v781, %v733
    %v974 = vpack.c.b16 %v782, %v734
    %v975 = vpack.c.b16 %v783, %v735
    %v976 = vpack.c.b16 %v784, %v736
    %v977 = vpack.c.b16 %v785, %v737
    %v978 = vpack.c.b16 %v786, %v738
    %v979 = vpack.c.b16 %v787, %v739
    %v980 = vpack.c.b16 %v788, %v740
    %v981 = vpack.c.b16 %v789, %v741
    %v982 = vpack.c.b16 %v790, %v742
    %v983 = vpack.c.b16 %v791, %v743
    %v984 = vpack.c.b16 %v792, %v744
    %v985 = vpack.c.b16 %v793, %v745
    %v986 = vpack.c.b16 %v794, %v746
    %v987 = vpack.c.b16 %v795, %v747
    %v988 = vpack.c.b16 %v796, %v748
    %v989 = vpack.c.b16 %v797, %v749
    %v990 = vpack.c.b16 %v798, %v750
    %v991 = vpack.c.b16 %v799, %v751
    %v992 = vpack.c.b16 %v800, %v752
    %v993 = vpack.c.b16 %v801, %v753
    %v994 = vpack.c.b16 %v802, %v754
    %v995 = vpack.c.b16 %v803, %v755
    %v996 = vpack.c.b16 %v804, %v756
    %v997 = vpack.c.b16 %v805, %v757
    %v998 = vpack.c.b16 %v806, %v758
    %v999 = vpack.c.b16 %v807, %v759
    %v1000 = vpack.c.b16 %v808, %v760
    %v1001 = vpack.c.b16 %v809, %v761
    %v1002 = vpack.c.b16 %v810, %v762
    %v1003 = vpack.c.b16 %v811, %v763
    %v1004 = vpack.c.b16 %v812, %v764
    %v1005 = vpack.c.b16 %v813, %v765
    %v1006 = vpack.c.b16 %v814, %v766
    %v1007 = vpack.c.b16 %v815, %v767
    %v1008 = vpack.c.b16 %v816, %v768
    %v1009 = vpack.c.b16 %v817, %v769
    %v1010 = vpack.c.b16 %v818, %v770
    %v1011 = vpack.c.b16 %v819, %v771
    %v1012 = vpack.c.b16 %v820, %v772
    %v1013 = vpack.c.b16 %v821, %v773
    %v1014 = vpack.c.b16 %v822, %v774
    %v1015 = vpack.c.b16 %v823, %v775
    %vm1208 = vcmask 523264
    %v1210 = vsel %vm1208, %v55, 0
    %1212 = vmatprep.subr.bf16.mxu0 %v825
    %1213 = vmatpush1.bf16.msra.mxu0 %v824
    %1214 = vmatprep.subr.bf16.mxu0 %v873
    %1215 = vmatpush1.bf16.msra.mxu0 %v872
    %1216 = vmatprep.subr.bf16.mxu0 %v921
    %1217 = vmatpush1.bf16.msra.mxu0 %v920
    %1218 = vmatprep.subr.bf16.mxu0 %v969
    %1219 = vmatpush1.bf16.msra.mxu0 %v968
    %1220 = vmatprep.subr.bf16.mxu0 0
    %1221 = vmatpush1.bf16.msra.mxu0 0
    %1222 = vmatprep.subr.bf16.mxu0 0
    %1223 = vmatpush1.bf16.msra.mxu0 0
    %1224 = vmatprep.subr.bf16.mxu0 0
    %1225 = vmatpush1.bf16.msra.mxu0 0
    %1226 = vmatprep.subr.bf16.mxu0 0
    %1227 = vmatpush1.bf16.msra.mxu0 0
    %1228 = vmatprep.subr.bf16.mxu0 0
    %1229 = vmatpush1.bf16.msra.mxu0 0
    %1230 = vmatprep.subr.bf16.mxu0 0
    %1231 = vmatpush1.bf16.msra.mxu0 0
    %1232 = vmatprep.subr.bf16.mxu0 0
    %1233 = vmatpush1.bf16.msra.mxu0 0
    %1234 = vmatprep.subr.bf16.mxu0 0
    %1235 = vmatpush1.bf16.msra.mxu0 0
    %1236 = vmatprep.subr.bf16.mxu0 0
    %1237 = vmatpush1.bf16.msra.mxu0 0
    %1238 = vmatprep.subr.bf16.mxu0 0
    %1239 = vmatpush1.bf16.msra.mxu0 0
    %1240 = vmatprep.subr.bf16.mxu0 0
    %1241 = vmatpush1.bf16.msra.mxu0 0
    %1242 = vmatprep.subr.bf16.mxu0 0
    %1243 = vmatpush1.bf16.msra.mxu0 0
    %1244 = vmatprep.mubr.bf16.mxu0 0
    %1245 = vmatmul.mubr.bf16.gmra.mrb[0].mxu0 %v1210
    %v1246 = vpop.f32.mrb[0].mxu0
    %v1247 = vadd.f32 0.0, %v1246
    %v1248 = vpop.f32.mrb[0].mxu0
    %v1249 = vadd.f32 0.0, %v1248
    %v1250 = vpop.f32.mrb[0].mxu0
    %v1251 = vpop.f32.mrb[0].mxu0
    %1252 = vdwg.mxu0
    %1253 = vmatprep.subr.bf16.mxu0 %v827
    %1254 = vmatpush1.bf16.msra.mxu0 %v826
    %1255 = vmatprep.subr.bf16.mxu0 %v875
    %1256 = vmatpush1.bf16.msra.mxu0 %v874
    %1257 = vmatprep.subr.bf16.mxu0 %v923
    %1258 = vmatpush1.bf16.msra.mxu0 %v922
    %1259 = vmatprep.subr.bf16.mxu0 %v971
    %1260 = vmatpush1.bf16.msra.mxu0 %v970
    %1261 = vmatprep.subr.bf16.mxu0 0
    %1262 = vmatpush1.bf16.msra.mxu0 0
    %1263 = vmatprep.subr.bf16.mxu0 0
    %1264 = vmatpush1.bf16.msra.mxu0 0
    %1265 = vmatprep.subr.bf16.mxu0 0
    %1266 = vmatpush1.bf16.msra.mxu0 0
    %1267 = vmatprep.subr.bf16.mxu0 0
    %1268 = vmatpush1.bf16.msra.mxu0 0
    %1269 = vmatprep.subr.bf16.mxu0 0
    %1270 = vmatpush1.bf16.msra.mxu0 0
    %1271 = vmatprep.subr.bf16.mxu0 0
    %1272 = vmatpush1.bf16.msra.mxu0 0
    %1273 = vmatprep.subr.bf16.mxu0 0
    %1274 = vmatpush1.bf16.msra.mxu0 0
    %1275 = vmatprep.subr.bf16.mxu0 0
    %1276 = vmatpush1.bf16.msra.mxu0 0
    %1277 = vmatprep.subr.bf16.mxu0 0
    %1278 = vmatpush1.bf16.msra.mxu0 0
    %1279 = vmatprep.subr.bf16.mxu0 0
    %1280 = vmatpush1.bf16.msra.mxu0 0
    %1281 = vmatprep.subr.bf16.mxu0 0
    %1282 = vmatpush1.bf16.msra.mxu0 0
    %1283 = vmatprep.subr.bf16.mxu0 0
    %1284 = vmatpush1.bf16.msra.mxu0 0
    %1285 = vmatprep.mubr.bf16.mxu0 0
    %1286 = vmatmul.mubr.bf16.gmra.mrb[0].mxu0 %v1210
    %v1287 = vpop.f32.mrb[0].mxu0
    %v1288 = vadd.f32 0.0, %v1287
    %v1289 = vpop.f32.mrb[0].mxu0
    %v1290 = vadd.f32 0.0, %v1289
    %v1291 = vpop.f32.mrb[0].mxu0
    %v1292 = vpop.f32.mrb[0].mxu0
    %1293 = vdwg.mxu0
    %1294 = vmatprep.subr.bf16.mxu0 %v829
    %1295 = vmatpush1.bf16.msra.mxu0 %v828
    %1296 = vmatprep.subr.bf16.mxu0 %v877
    %1297 = vmatpush1.bf16.msra.mxu0 %v876
    %1298 = vmatprep.subr.bf16.mxu0 %v925
    %1299 = vmatpush1.bf16.msra.mxu0 %v924
    %1300 = vmatprep.subr.bf16.mxu0 %v973
    %1301 = vmatpush1.bf16.msra.mxu0 %v972
    %1302 = vmatprep.subr.bf16.mxu0 0
    %1303 = vmatpush1.bf16.msra.mxu0 0
    %1304 = vmatprep.subr.bf16.mxu0 0
    %1305 = vmatpush1.bf16.msra.mxu0 0
    %1306 = vmatprep.subr.bf16.mxu0 0
    %1307 = vmatpush1.bf16.msra.mxu0 0
    %1308 = vmatprep.subr.bf16.mxu0 0
    %1309 = vmatpush1.bf16.msra.mxu0 0
    %1310 = vmatprep.subr.bf16.mxu0 0
    %1311 = vmatpush1.bf16.msra.mxu0 0
    %1312 = vmatprep.subr.bf16.mxu0 0
    %1313 = vmatpush1.bf16.msra.mxu0 0
    %1314 = vmatprep.subr.bf16.mxu0 0
    %1315 = vmatpush1.bf16.msra.mxu0 0
    %1316 = vmatprep.subr.bf16.mxu0 0
    %1317 = vmatpush1.bf16.msra.mxu0 0
    %1318 = vmatprep.subr.bf16.mxu0 0
    %1319 = vmatpush1.bf16.msra.mxu0 0
    %1320 = vmatprep.subr.bf16.mxu0 0
    %1321 = vmatpush1.bf16.msra.mxu0 0
    %1322 = vmatprep.subr.bf16.mxu0 0
    %1323 = vmatpush1.bf16.msra.mxu0 0
    %1324 = vmatprep.subr.bf16.mxu0 0
    %1325 = vmatpush1.bf16.msra.mxu0 0
    %1326 = vmatprep.mubr.bf16.mxu0 0
    %1327 = vmatmul.mubr.bf16.gmra.mrb[0].mxu0 %v1210
    %v1328 = vpop.f32.mrb[0].mxu0
    %v1329 = vadd.f32 0.0, %v1328
    %v1330 = vpop.f32.mrb[0].mxu0
    %v1331 = vadd.f32 0.0, %v1330
    %v1332 = vpop.f32.mrb[0].mxu0
    %v1333 = vpop.f32.mrb[0].mxu0
    %1334 = vdwg.mxu0
    %1335 = vmatprep.subr.bf16.mxu0 %v831
    %1336 = vmatpush1.bf16.msra.mxu0 %v830
    %1337 = vmatprep.subr.bf16.mxu0 %v879
    %1338 = vmatpush1.bf16.msra.mxu0 %v878
    %1339 = vmatprep.subr.bf16.mxu0 %v927
    %1340 = vmatpush1.bf16.msra.mxu0 %v926
    %1341 = vmatprep.subr.bf16.mxu0 %v975
    %1342 = vmatpush1.bf16.msra.mxu0 %v974
    %1343 = vmatprep.subr.bf16.mxu0 0
    %1344 = vmatpush1.bf16.msra.mxu0 0
    %1345 = vmatprep.subr.bf16.mxu0 0
    %1346 = vmatpush1.bf16.msra.mxu0 0
    %1347 = vmatprep.subr.bf16.mxu0 0
    %1348 = vmatpush1.bf16.msra.mxu0 0
    %1349 = vmatprep.subr.bf16.mxu0 0
    %1350 = vmatpush1.bf16.msra.mxu0 0
    %1351 = vmatprep.subr.bf16.mxu0 0
    %1352 = vmatpush1.bf16.msra.mxu0 0
    %1353 = vmatprep.subr.bf16.mxu0 0
    %1354 = vmatpush1.bf16.msra.mxu0 0
    %1355 = vmatprep.subr.bf16.mxu0 0
    %1356 = vmatpush1.bf16.msra.mxu0 0
    %1357 = vmatprep.subr.bf16.mxu0 0
    %1358 = vmatpush1.bf16.msra.mxu0 0
    %1359 = vmatprep.subr.bf16.mxu0 0
    %1360 = vmatpush1.bf16.msra.mxu0 0
    %1361 = vmatprep.subr.bf16.mxu0 0
    %1362 = vmatpush1.bf16.msra.mxu0 0
    %1363 = vmatprep.subr.bf16.mxu0 0
    %1364 = vmatpush1.bf16.msra.mxu0 0
    %1365 = vmatprep.subr.bf16.mxu0 0
    %1366 = vmatpush1.bf16.msra.mxu0 0
    %1367 = vmatprep.mubr.bf16.mxu0 0
    %1368 = vmatmul.mubr.bf16.gmra.mrb[0].mxu0 %v1210
    %v1369 = vpop.f32.mrb[0].mxu0
    %v1370 = vadd.f32 0.0, %v1369
    %v1371 = vpop.f32.mrb[0].mxu0
    %v1372 = vadd.f32 0.0, %v1371
    %v1373 = vpop.f32.mrb[0].mxu0
    %v1374 = vpop.f32.mrb[0].mxu0
    %1375 = vdwg.mxu0
    %1376 = vmatprep.subr.bf16.mxu0 %v833
    %1377 = vmatpush1.bf16.msra.mxu0 %v832
    %1378 = vmatprep.subr.bf16.mxu0 %v881
    %1379 = vmatpush1.bf16.msra.mxu0 %v880
    %1380 = vmatprep.subr.bf16.mxu0 %v929
    %1381 = vmatpush1.bf16.msra.mxu0 %v928
    %1382 = vmatprep.subr.bf16.mxu0 %v977
    %1383 = vmatpush1.bf16.msra.mxu0 %v976
    %1384 = vmatprep.subr.bf16.mxu0 0
    %1385 = vmatpush1.bf16.msra.mxu0 0
    %1386 = vmatprep.subr.bf16.mxu0 0
    %1387 = vmatpush1.bf16.msra.mxu0 0
    %1388 = vmatprep.subr.bf16.mxu0 0
    %1389 = vmatpush1.bf16.msra.mxu0 0
    %1390 = vmatprep.subr.bf16.mxu0 0
    %1391 = vmatpush1.bf16.msra.mxu0 0
    %1392 = vmatprep.subr.bf16.mxu0 0
    %1393 = vmatpush1.bf16.msra.mxu0 0
    %1394 = vmatprep.subr.bf16.mxu0 0
    %1395 = vmatpush1.bf16.msra.mxu0 0
    %1396 = vmatprep.subr.bf16.mxu0 0
    %1397 = vmatpush1.bf16.msra.mxu0 0
    %1398 = vmatprep.subr.bf16.mxu0 0
    %1399 = vmatpush1.bf16.msra.mxu0 0
    %1400 = vmatprep.subr.bf16.mxu0 0
    %1401 = vmatpush1.bf16.msra.mxu0 0
    %1402 = vmatprep.subr.bf16.mxu0 0
    %1403 = vmatpush1.bf16.msra.mxu0 0
    %1404 = vmatprep.subr.bf16.mxu0 0
    %1405 = vmatpush1.bf16.msra.mxu0 0
    %1406 = vmatprep.subr.bf16.mxu0 0
    %1407 = vmatpush1.bf16.msra.mxu0 0
    %1408 = vmatprep.mubr.bf16.mxu0 0
    %1409 = vmatmul.mubr.bf16.gmra.mrb[0].mxu0 %v1210
    %v1410 = vpop.f32.mrb[0].mxu0
    %v1411 = vadd.f32 0.0, %v1410
    %v1412 = vpop.f32.mrb[0].mxu0
    %v1413 = vadd.f32 0.0, %v1412
    %v1414 = vpop.f32.mrb[0].mxu0
    %v1415 = vpop.f32.mrb[0].mxu0
    %1416 = vdwg.mxu0
    %1417 = vmatprep.subr.bf16.mxu0 %v835
    %1418 = vmatpush1.bf16.msra.mxu0 %v834
    %1419 = vmatprep.subr.bf16.mxu0 %v883
    %1420 = vmatpush1.bf16.msra.mxu0 %v882
    %1421 = vmatprep.subr.bf16.mxu0 %v931
    %1422 = vmatpush1.bf16.msra.mxu0 %v930
    %1423 = vmatprep.subr.bf16.mxu0 %v979
    %1424 = vmatpush1.bf16.msra.mxu0 %v978
    %1425 = vmatprep.subr.bf16.mxu0 0
    %1426 = vmatpush1.bf16.msra.mxu0 0
    %1427 = vmatprep.subr.bf16.mxu0 0
    %1428 = vmatpush1.bf16.msra.mxu0 0
    %1429 = vmatprep.subr.bf16.mxu0 0
    %1430 = vmatpush1.bf16.msra.mxu0 0
    %1431 = vmatprep.subr.bf16.mxu0 0
    %1432 = vmatpush1.bf16.msra.mxu0 0
    %1433 = vmatprep.subr.bf16.mxu0 0
    %1434 = vmatpush1.bf16.msra.mxu0 0
    %1435 = vmatprep.subr.bf16.mxu0 0
    %1436 = vmatpush1.bf16.msra.mxu0 0
    %1437 = vmatprep.subr.bf16.mxu0 0
    %1438 = vmatpush1.bf16.msra.mxu0 0
    %1439 = vmatprep.subr.bf16.mxu0 0
    %1440 = vmatpush1.bf16.msra.mxu0 0
    %1441 = vmatprep.subr.bf16.mxu0 0
    %1442 = vmatpush1.bf16.msra.mxu0 0
    %1443 = vmatprep.subr.bf16.mxu0 0
    %1444 = vmatpush1.bf16.msra.mxu0 0
    %1445 = vmatprep.subr.bf16.mxu0 0
    %1446 = vmatpush1.bf16.msra.mxu0 0
    %1447 = vmatprep.subr.bf16.mxu0 0
    %1448 = vmatpush1.bf16.msra.mxu0 0
    %1449 = vmatprep.mubr.bf16.mxu0 0
    %1450 = vmatmul.mubr.bf16.gmra.mrb[0].mxu0 %v1210
    %v1451 = vpop.f32.mrb[0].mxu0
    %v1452 = vadd.f32 0.0, %v1451
    %v1453 = vpop.f32.mrb[0].mxu0
    %v1454 = vadd.f32 0.0, %v1453
    %v1455 = vpop.f32.mrb[0].mxu0
    %v1456 = vpop.f32.mrb[0].mxu0
    %1457 = vdwg.mxu0
    %1458 = vmatprep.subr.bf16.mxu0 %v837
    %1459 = vmatpush1.bf16.msra.mxu0 %v836
    %1460 = vmatprep.subr.bf16.mxu0 %v885
    %1461 = vmatpush1.bf16.msra.mxu0 %v884
    %1462 = vmatprep.subr.bf16.mxu0 %v933
    %1463 = vmatpush1.bf16.msra.mxu0 %v932
    %1464 = vmatprep.subr.bf16.mxu0 %v981
    %1465 = vmatpush1.bf16.msra.mxu0 %v980
    %1466 = vmatprep.subr.bf16.mxu0 0
    %1467 = vmatpush1.bf16.msra.mxu0 0
    %1468 = vmatprep.subr.bf16.mxu0 0
    %1469 = vmatpush1.bf16.msra.mxu0 0
    %1470 = vmatprep.subr.bf16.mxu0 0
    %1471 = vmatpush1.bf16.msra.mxu0 0
    %1472 = vmatprep.subr.bf16.mxu0 0
    %1473 = vmatpush1.bf16.msra.mxu0 0
    %1474 = vmatprep.subr.bf16.mxu0 0
    %1475 = vmatpush1.bf16.msra.mxu0 0
    %1476 = vmatprep.subr.bf16.mxu0 0
    %1477 = vmatpush1.bf16.msra.mxu0 0
    %1478 = vmatprep.subr.bf16.mxu0 0
    %1479 = vmatpush1.bf16.msra.mxu0 0
    %1480 = vmatprep.subr.bf16.mxu0 0
    %1481 = vmatpush1.bf16.msra.mxu0 0
    %1482 = vmatprep.subr.bf16.mxu0 0
    %1483 = vmatpush1.bf16.msra.mxu0 0
    %1484 = vmatprep.subr.bf16.mxu0 0
    %1485 = vmatpush1.bf16.msra.mxu0 0
    %1486 = vmatprep.subr.bf16.mxu0 0
    %1487 = vmatpush1.bf16.msra.mxu0 0
    %1488 = vmatprep.subr.bf16.mxu0 0
    %1489 = vmatpush1.bf16.msra.mxu0 0
    %1490 = vmatprep.mubr.bf16.mxu0 0
    %1491 = vmatmul.mubr.bf16.gmra.mrb[0].mxu0 %v1210
    %v1492 = vpop.f32.mrb[0].mxu0
    %v1493 = vadd.f32 0.0, %v1492
    %v1494 = vpop.f32.mrb[0].mxu0
    %v1495 = vadd.f32 0.0, %v1494
    %v1496 = vpop.f32.mrb[0].mxu0
    %v1497 = vpop.f32.mrb[0].mxu0
    %1498 = vdwg.mxu0
    %1499 = vmatprep.subr.bf16.mxu0 %v839
    %1500 = vmatpush1.bf16.msra.mxu0 %v838
    %1501 = vmatprep.subr.bf16.mxu0 %v887
    %1502 = vmatpush1.bf16.msra.mxu0 %v886
    %1503 = vmatprep.subr.bf16.mxu0 %v935
    %1504 = vmatpush1.bf16.msra.mxu0 %v934
    %1505 = vmatprep.subr.bf16.mxu0 %v983
    %1506 = vmatpush1.bf16.msra.mxu0 %v982
    %1507 = vmatprep.subr.bf16.mxu0 0
    %1508 = vmatpush1.bf16.msra.mxu0 0
    %1509 = vmatprep.subr.bf16.mxu0 0
    %1510 = vmatpush1.bf16.msra.mxu0 0
    %1511 = vmatprep.subr.bf16.mxu0 0
    %1512 = vmatpush1.bf16.msra.mxu0 0
    %1513 = vmatprep.subr.bf16.mxu0 0
    %1514 = vmatpush1.bf16.msra.mxu0 0
    %1515 = vmatprep.subr.bf16.mxu0 0
    %1516 = vmatpush1.bf16.msra.mxu0 0
    %1517 = vmatprep.subr.bf16.mxu0 0
    %1518 = vmatpush1.bf16.msra.mxu0 0
    %1519 = vmatprep.subr.bf16.mxu0 0
    %1520 = vmatpush1.bf16.msra.mxu0 0
    %1521 = vmatprep.subr.bf16.mxu0 0
    %1522 = vmatpush1.bf16.msra.mxu0 0
    %1523 = vmatprep.subr.bf16.mxu0 0
    %1524 = vmatpush1.bf16.msra.mxu0 0
    %1525 = vmatprep.subr.bf16.mxu0 0
    %1526 = vmatpush1.bf16.msra.mxu0 0
    %1527 = vmatprep.subr.bf16.mxu0 0
    %1528 = vmatpush1.bf16.msra.mxu0 0
    %1529 = vmatprep.subr.bf16.mxu0 0
    %1530 = vmatpush1.bf16.msra.mxu0 0
    %1531 = vmatprep.mubr.bf16.mxu0 0
    %1532 = vmatmul.mubr.bf16.gmra.mrb[0].mxu0 %v1210
    %v1533 = vpop.f32.mrb[0].mxu0
    %v1534 = vadd.f32 0.0, %v1533
    %v1535 = vpop.f32.mrb[0].mxu0
    %v1536 = vadd.f32 0.0, %v1535
    %v1537 = vpop.f32.mrb[0].mxu0
    %v1538 = vpop.f32.mrb[0].mxu0
    %1539 = vdwg.mxu0
    %1540 = vmatprep.subr.bf16.mxu0 %v841
    %1541 = vmatpush1.bf16.msra.mxu0 %v840
    %1542 = vmatprep.subr.bf16.mxu0 %v889
    %1543 = vmatpush1.bf16.msra.mxu0 %v888
    %1544 = vmatprep.subr.bf16.mxu0 %v937
    %1545 = vmatpush1.bf16.msra.mxu0 %v936
    %1546 = vmatprep.subr.bf16.mxu0 %v985
    %1547 = vmatpush1.bf16.msra.mxu0 %v984
    %1548 = vmatprep.subr.bf16.mxu0 0
    %1549 = vmatpush1.bf16.msra.mxu0 0
    %1550 = vmatprep.subr.bf16.mxu0 0
    %1551 = vmatpush1.bf16.msra.mxu0 0
    %1552 = vmatprep.subr.bf16.mxu0 0
    %1553 = vmatpush1.bf16.msra.mxu0 0
    %1554 = vmatprep.subr.bf16.mxu0 0
    %1555 = vmatpush1.bf16.msra.mxu0 0
    %1556 = vmatprep.subr.bf16.mxu0 0
    %1557 = vmatpush1.bf16.msra.mxu0 0
    %1558 = vmatprep.subr.bf16.mxu0 0
    %1559 = vmatpush1.bf16.msra.mxu0 0
    %1560 = vmatprep.subr.bf16.mxu0 0
    %1561 = vmatpush1.bf16.msra.mxu0 0
    %1562 = vmatprep.subr.bf16.mxu0 0
    %1563 = vmatpush1.bf16.msra.mxu0 0
    %1564 = vmatprep.subr.bf16.mxu0 0
    %1565 = vmatpush1.bf16.msra.mxu0 0
    %1566 = vmatprep.subr.bf16.mxu0 0
    %1567 = vmatpush1.bf16.msra.mxu0 0
    %1568 = vmatprep.subr.bf16.mxu0 0
    %1569 = vmatpush1.bf16.msra.mxu0 0
    %1570 = vmatprep.subr.bf16.mxu0 0
    %1571 = vmatpush1.bf16.msra.mxu0 0
    %1572 = vmatprep.mubr.bf16.mxu0 0
    %1573 = vmatmul.mubr.bf16.gmra.mrb[0].mxu0 %v1210
    %v1574 = vpop.f32.mrb[0].mxu0
    %v1575 = vadd.f32 0.0, %v1574
    %v1576 = vpop.f32.mrb[0].mxu0
    %v1577 = vadd.f32 0.0, %v1576
    %v1578 = vpop.f32.mrb[0].mxu0
    %v1579 = vpop.f32.mrb[0].mxu0
    %1580 = vdwg.mxu0
    %1581 = vmatprep.subr.bf16.mxu0 %v843
    %1582 = vmatpush1.bf16.msra.mxu0 %v842
    %1583 = vmatprep.subr.bf16.mxu0 %v891
    %1584 = vmatpush1.bf16.msra.mxu0 %v890
    %1585 = vmatprep.subr.bf16.mxu0 %v939
    %1586 = vmatpush1.bf16.msra.mxu0 %v938
    %1587 = vmatprep.subr.bf16.mxu0 %v987
    %1588 = vmatpush1.bf16.msra.mxu0 %v986
    %1589 = vmatprep.subr.bf16.mxu0 0
    %1590 = vmatpush1.bf16.msra.mxu0 0
    %1591 = vmatprep.subr.bf16.mxu0 0
    %1592 = vmatpush1.bf16.msra.mxu0 0
    %1593 = vmatprep.subr.bf16.mxu0 0
    %1594 = vmatpush1.bf16.msra.mxu0 0
    %1595 = vmatprep.subr.bf16.mxu0 0
    %1596 = vmatpush1.bf16.msra.mxu0 0
    %1597 = vmatprep.subr.bf16.mxu0 0
    %1598 = vmatpush1.bf16.msra.mxu0 0
    %1599 = vmatprep.subr.bf16.mxu0 0
    %1600 = vmatpush1.bf16.msra.mxu0 0
    %1601 = vmatprep.subr.bf16.mxu0 0
    %1602 = vmatpush1.bf16.msra.mxu0 0
    %1603 = vmatprep.subr.bf16.mxu0 0
    %1604 = vmatpush1.bf16.msra.mxu0 0
    %1605 = vmatprep.subr.bf16.mxu0 0
    %1606 = vmatpush1.bf16.msra.mxu0 0
    %1607 = vmatprep.subr.bf16.mxu0 0
    %1608 = vmatpush1.bf16.msra.mxu0 0
    %1609 = vmatprep.subr.bf16.mxu0 0
    %1610 = vmatpush1.bf16.msra.mxu0 0
    %1611 = vmatprep.subr.bf16.mxu0 0
    %1612 = vmatpush1.bf16.msra.mxu0 0
    %1613 = vmatprep.mubr.bf16.mxu0 0
    %1614 = vmatmul.mubr.bf16.gmra.mrb[0].mxu0 %v1210
    %v1615 = vpop.f32.mrb[0].mxu0
    %v1616 = vadd.f32 0.0, %v1615
    %v1617 = vpop.f32.mrb[0].mxu0
    %v1618 = vadd.f32 0.0, %v1617
    %v1619 = vpop.f32.mrb[0].mxu0
    %v1620 = vpop.f32.mrb[0].mxu0
    %1621 = vdwg.mxu0
    %1622 = vmatprep.subr.bf16.mxu0 %v845
    %1623 = vmatpush1.bf16.msra.mxu0 %v844
    %1624 = vmatprep.subr.bf16.mxu0 %v893
    %1625 = vmatpush1.bf16.msra.mxu0 %v892
    %1626 = vmatprep.subr.bf16.mxu0 %v941
    %1627 = vmatpush1.bf16.msra.mxu0 %v940
    %1628 = vmatprep.subr.bf16.mxu0 %v989
    %1629 = vmatpush1.bf16.msra.mxu0 %v988
    %1630 = vmatprep.subr.bf16.mxu0 0
    %1631 = vmatpush1.bf16.msra.mxu0 0
    %1632 = vmatprep.subr.bf16.mxu0 0
    %1633 = vmatpush1.bf16.msra.mxu0 0
    %1634 = vmatprep.subr.bf16.mxu0 0
    %1635 = vmatpush1.bf16.msra.mxu0 0
    %1636 = vmatprep.subr.bf16.mxu0 0
    %1637 = vmatpush1.bf16.msra.mxu0 0
    %1638 = vmatprep.subr.bf16.mxu0 0
    %1639 = vmatpush1.bf16.msra.mxu0 0
    %1640 = vmatprep.subr.bf16.mxu0 0
    %1641 = vmatpush1.bf16.msra.mxu0 0
    %1642 = vmatprep.subr.bf16.mxu0 0
    %1643 = vmatpush1.bf16.msra.mxu0 0
    %1644 = vmatprep.subr.bf16.mxu0 0
    %1645 = vmatpush1.bf16.msra.mxu0 0
    %1646 = vmatprep.subr.bf16.mxu0 0
    %1647 = vmatpush1.bf16.msra.mxu0 0
    %1648 = vmatprep.subr.bf16.mxu0 0
    %1649 = vmatpush1.bf16.msra.mxu0 0
    %1650 = vmatprep.subr.bf16.mxu0 0
    %1651 = vmatpush1.bf16.msra.mxu0 0
    %1652 = vmatprep.subr.bf16.mxu0 0
    %1653 = vmatpush1.bf16.msra.mxu0 0
    %1654 = vmatprep.mubr.bf16.mxu0 0
    %1655 = vmatmul.mubr.bf16.gmra.mrb[0].mxu0 %v1210
    %v1656 = vpop.f32.mrb[0].mxu0
    %v1657 = vadd.f32 0.0, %v1656
    %v1658 = vpop.f32.mrb[0].mxu0
    %v1659 = vadd.f32 0.0, %v1658
    %v1660 = vpop.f32.mrb[0].mxu0
    %v1661 = vpop.f32.mrb[0].mxu0
    %1662 = vdwg.mxu0
    %1663 = vmatprep.subr.bf16.mxu0 %v847
    %1664 = vmatpush1.bf16.msra.mxu0 %v846
    %1665 = vmatprep.subr.bf16.mxu0 %v895
    %1666 = vmatpush1.bf16.msra.mxu0 %v894
    %1667 = vmatprep.subr.bf16.mxu0 %v943
    %1668 = vmatpush1.bf16.msra.mxu0 %v942
    %1669 = vmatprep.subr.bf16.mxu0 %v991
    %1670 = vmatpush1.bf16.msra.mxu0 %v990
    %1671 = vmatprep.subr.bf16.mxu0 0
    %1672 = vmatpush1.bf16.msra.mxu0 0
    %1673 = vmatprep.subr.bf16.mxu0 0
    %1674 = vmatpush1.bf16.msra.mxu0 0
    %1675 = vmatprep.subr.bf16.mxu0 0
    %1676 = vmatpush1.bf16.msra.mxu0 0
    %1677 = vmatprep.subr.bf16.mxu0 0
    %1678 = vmatpush1.bf16.msra.mxu0 0
    %1679 = vmatprep.subr.bf16.mxu0 0
    %1680 = vmatpush1.bf16.msra.mxu0 0
    %1681 = vmatprep.subr.bf16.mxu0 0
    %1682 = vmatpush1.bf16.msra.mxu0 0
    %1683 = vmatprep.subr.bf16.mxu0 0
    %1684 = vmatpush1.bf16.msra.mxu0 0
    %1685 = vmatprep.subr.bf16.mxu0 0
    %1686 = vmatpush1.bf16.msra.mxu0 0
    %1687 = vmatprep.subr.bf16.mxu0 0
    %1688 = vmatpush1.bf16.msra.mxu0 0
    %1689 = vmatprep.subr.bf16.mxu0 0
    %1690 = vmatpush1.bf16.msra.mxu0 0
    %1691 = vmatprep.subr.bf16.mxu0 0
    %1692 = vmatpush1.bf16.msra.mxu0 0
    %1693 = vmatprep.subr.bf16.mxu0 0
    %1694 = vmatpush1.bf16.msra.mxu0 0
    %1695 = vmatprep.mubr.bf16.mxu0 0
    %1696 = vmatmul.mubr.bf16.gmra.mrb[0].mxu0 %v1210
    %v1697 = vpop.f32.mrb[0].mxu0
    %v1698 = vadd.f32 0.0, %v1697
    %v1699 = vpop.f32.mrb[0].mxu0
    %v1700 = vadd.f32 0.0, %v1699
    %v1701 = vpop.f32.mrb[0].mxu0
    %v1702 = vpop.f32.mrb[0].mxu0
    %1703 = vdwg.mxu0
    %1704 = vmatprep.subr.bf16.mxu0 %v849
    %1705 = vmatpush1.bf16.msra.mxu0 %v848
    %1706 = vmatprep.subr.bf16.mxu0 %v897
    %1707 = vmatpush1.bf16.msra.mxu0 %v896
    %1708 = vmatprep.subr.bf16.mxu0 %v945
    %1709 = vmatpush1.bf16.msra.mxu0 %v944
    %1710 = vmatprep.subr.bf16.mxu0 %v993
    %1711 = vmatpush1.bf16.msra.mxu0 %v992
    %1712 = vmatprep.subr.bf16.mxu0 0
    %1713 = vmatpush1.bf16.msra.mxu0 0
    %1714 = vmatprep.subr.bf16.mxu0 0
    %1715 = vmatpush1.bf16.msra.mxu0 0
    %1716 = vmatprep.subr.bf16.mxu0 0
    %1717 = vmatpush1.bf16.msra.mxu0 0
    %1718 = vmatprep.subr.bf16.mxu0 0
    %1719 = vmatpush1.bf16.msra.mxu0 0
    %1720 = vmatprep.subr.bf16.mxu0 0
    %1721 = vmatpush1.bf16.msra.mxu0 0
    %1722 = vmatprep.subr.bf16.mxu0 0
    %1723 = vmatpush1.bf16.msra.mxu0 0
    %1724 = vmatprep.subr.bf16.mxu0 0
    %1725 = vmatpush1.bf16.msra.mxu0 0
    %1726 = vmatprep.subr.bf16.mxu0 0
    %1727 = vmatpush1.bf16.msra.mxu0 0
    %1728 = vmatprep.subr.bf16.mxu0 0
    %1729 = vmatpush1.bf16.msra.mxu0 0
    %1730 = vmatprep.subr.bf16.mxu0 0
    %1731 = vmatpush1.bf16.msra.mxu0 0
    %1732 = vmatprep.subr.bf16.mxu0 0
    %1733 = vmatpush1.bf16.msra.mxu0 0
    %1734 = vmatprep.subr.bf16.mxu0 0
    %1735 = vmatpush1.bf16.msra.mxu0 0
    %1736 = vmatprep.mubr.bf16.mxu0 0
    %1737 = vmatmul.mubr.bf16.gmra.mrb[0].mxu0 %v1210
    %v1738 = vpop.f32.mrb[0].mxu0
    %v1739 = vadd.f32 0.0, %v1738
    %v1740 = vpop.f32.mrb[0].mxu0
    %v1741 = vadd.f32 0.0, %v1740
    %v1742 = vpop.f32.mrb[0].mxu0
    %v1743 = vpop.f32.mrb[0].mxu0
    %1744 = vdwg.mxu0
    %1745 = vmatprep.subr.bf16.mxu0 %v851
    %1746 = vmatpush1.bf16.msra.mxu0 %v850
    %1747 = vmatprep.subr.bf16.mxu0 %v899
    %1748 = vmatpush1.bf16.msra.mxu0 %v898
    %1749 = vmatprep.subr.bf16.mxu0 %v947
    %1750 = vmatpush1.bf16.msra.mxu0 %v946
    %1751 = vmatprep.subr.bf16.mxu0 %v995
    %1752 = vmatpush1.bf16.msra.mxu0 %v994
    %1753 = vmatprep.subr.bf16.mxu0 0
    %1754 = vmatpush1.bf16.msra.mxu0 0
    %1755 = vmatprep.subr.bf16.mxu0 0
    %1756 = vmatpush1.bf16.msra.mxu0 0
    %1757 = vmatprep.subr.bf16.mxu0 0
    %1758 = vmatpush1.bf16.msra.mxu0 0
    %1759 = vmatprep.subr.bf16.mxu0 0
    %1760 = vmatpush1.bf16.msra.mxu0 0
    %1761 = vmatprep.subr.bf16.mxu0 0
    %1762 = vmatpush1.bf16.msra.mxu0 0
    %1763 = vmatprep.subr.bf16.mxu0 0
    %1764 = vmatpush1.bf16.msra.mxu0 0
    %1765 = vmatprep.subr.bf16.mxu0 0
    %1766 = vmatpush1.bf16.msra.mxu0 0
    %1767 = vmatprep.subr.bf16.mxu0 0
    %1768 = vmatpush1.bf16.msra.mxu0 0
    %1769 = vmatprep.subr.bf16.mxu0 0
    %1770 = vmatpush1.bf16.msra.mxu0 0
    %1771 = vmatprep.subr.bf16.mxu0 0
    %1772 = vmatpush1.bf16.msra.mxu0 0
    %1773 = vmatprep.subr.bf16.mxu0 0
    %1774 = vmatpush1.bf16.msra.mxu0 0
    %1775 = vmatprep.subr.bf16.mxu0 0
    %1776 = vmatpush1.bf16.msra.mxu0 0
    %1777 = vmatprep.mubr.bf16.mxu0 0
    %1778 = vmatmul.mubr.bf16.gmra.mrb[0].mxu0 %v1210
    %v1779 = vpop.f32.mrb[0].mxu0
    %v1780 = vadd.f32 0.0, %v1779
    %v1781 = vpop.f32.mrb[0].mxu0
    %v1782 = vadd.f32 0.0, %v1781
    %v1783 = vpop.f32.mrb[0].mxu0
    %v1784 = vpop.f32.mrb[0].mxu0
    %1785 = vdwg.mxu0
    %1786 = vmatprep.subr.bf16.mxu0 %v853
    %1787 = vmatpush1.bf16.msra.mxu0 %v852
    %1788 = vmatprep.subr.bf16.mxu0 %v901
    %1789 = vmatpush1.bf16.msra.mxu0 %v900
    %1790 = vmatprep.subr.bf16.mxu0 %v949
    %1791 = vmatpush1.bf16.msra.mxu0 %v948
    %1792 = vmatprep.subr.bf16.mxu0 %v997
    %1793 = vmatpush1.bf16.msra.mxu0 %v996
    %1794 = vmatprep.subr.bf16.mxu0 0
    %1795 = vmatpush1.bf16.msra.mxu0 0
    %1796 = vmatprep.subr.bf16.mxu0 0
    %1797 = vmatpush1.bf16.msra.mxu0 0
    %1798 = vmatprep.subr.bf16.mxu0 0
    %1799 = vmatpush1.bf16.msra.mxu0 0
    %1800 = vmatprep.subr.bf16.mxu0 0
    %1801 = vmatpush1.bf16.msra.mxu0 0
    %1802 = vmatprep.subr.bf16.mxu0 0
    %1803 = vmatpush1.bf16.msra.mxu0 0
    %1804 = vmatprep.subr.bf16.mxu0 0
    %1805 = vmatpush1.bf16.msra.mxu0 0
    %1806 = vmatprep.subr.bf16.mxu0 0
    %1807 = vmatpush1.bf16.msra.mxu0 0
    %1808 = vmatprep.subr.bf16.mxu0 0
    %1809 = vmatpush1.bf16.msra.mxu0 0
    %1810 = vmatprep.subr.bf16.mxu0 0
    %1811 = vmatpush1.bf16.msra.mxu0 0
    %1812 = vmatprep.subr.bf16.mxu0 0
    %1813 = vmatpush1.bf16.msra.mxu0 0
    %1814 = vmatprep.subr.bf16.mxu0 0
    %1815 = vmatpush1.bf16.msra.mxu0 0
    %1816 = vmatprep.subr.bf16.mxu0 0
    %1817 = vmatpush1.bf16.msra.mxu0 0
    %1818 = vmatprep.mubr.bf16.mxu0 0
    %1819 = vmatmul.mubr.bf16.gmra.mrb[0].mxu0 %v1210
    %v1820 = vpop.f32.mrb[0].mxu0
    %v1821 = vadd.f32 0.0, %v1820
    %v1822 = vpop.f32.mrb[0].mxu0
    %v1823 = vadd.f32 0.0, %v1822
    %v1824 = vpop.f32.mrb[0].mxu0
    %v1825 = vpop.f32.mrb[0].mxu0
    %1826 = vdwg.mxu0
    %1827 = vmatprep.subr.bf16.mxu0 %v855
    %1828 = vmatpush1.bf16.msra.mxu0 %v854
    %1829 = vmatprep.subr.bf16.mxu0 %v903
    %1830 = vmatpush1.bf16.msra.mxu0 %v902
    %1831 = vmatprep.subr.bf16.mxu0 %v951
    %1832 = vmatpush1.bf16.msra.mxu0 %v950
    %1833 = vmatprep.subr.bf16.mxu0 %v999
    %1834 = vmatpush1.bf16.msra.mxu0 %v998
    %1835 = vmatprep.subr.bf16.mxu0 0
    %1836 = vmatpush1.bf16.msra.mxu0 0
    %1837 = vmatprep.subr.bf16.mxu0 0
    %1838 = vmatpush1.bf16.msra.mxu0 0
    %1839 = vmatprep.subr.bf16.mxu0 0
    %1840 = vmatpush1.bf16.msra.mxu0 0
    %1841 = vmatprep.subr.bf16.mxu0 0
    %1842 = vmatpush1.bf16.msra.mxu0 0
    %1843 = vmatprep.subr.bf16.mxu0 0
    %1844 = vmatpush1.bf16.msra.mxu0 0
    %1845 = vmatprep.subr.bf16.mxu0 0
    %1846 = vmatpush1.bf16.msra.mxu0 0
    %1847 = vmatprep.subr.bf16.mxu0 0
    %1848 = vmatpush1.bf16.msra.mxu0 0
    %1849 = vmatprep.subr.bf16.mxu0 0
    %1850 = vmatpush1.bf16.msra.mxu0 0
    %1851 = vmatprep.subr.bf16.mxu0 0
    %1852 = vmatpush1.bf16.msra.mxu0 0
    %1853 = vmatprep.subr.bf16.mxu0 0
    %1854 = vmatpush1.bf16.msra.mxu0 0
    %1855 = vmatprep.subr.bf16.mxu0 0
    %1856 = vmatpush1.bf16.msra.mxu0 0
    %1857 = vmatprep.subr.bf16.mxu0 0
    %1858 = vmatpush1.bf16.msra.mxu0 0
    %1859 = vmatprep.mubr.bf16.mxu0 0
    %1860 = vmatmul.mubr.bf16.gmra.mrb[0].mxu0 %v1210
    %v1861 = vpop.f32.mrb[0].mxu0
    %v1862 = vadd.f32 0.0, %v1861
    %v1863 = vpop.f32.mrb[0].mxu0
    %v1864 = vadd.f32 0.0, %v1863
    %v1865 = vpop.f32.mrb[0].mxu0
    %v1866 = vpop.f32.mrb[0].mxu0
    %1867 = vdwg.mxu0
    %1868 = vmatprep.subr.bf16.mxu0 %v857
    %1869 = vmatpush1.bf16.msra.mxu0 %v856
    %1870 = vmatprep.subr.bf16.mxu0 %v905
    %1871 = vmatpush1.bf16.msra.mxu0 %v904
    %1872 = vmatprep.subr.bf16.mxu0 %v953
    %1873 = vmatpush1.bf16.msra.mxu0 %v952
    %1874 = vmatprep.subr.bf16.mxu0 %v1001
    %1875 = vmatpush1.bf16.msra.mxu0 %v1000
    %1876 = vmatprep.subr.bf16.mxu0 0
    %1877 = vmatpush1.bf16.msra.mxu0 0
    %1878 = vmatprep.subr.bf16.mxu0 0
    %1879 = vmatpush1.bf16.msra.mxu0 0
    %1880 = vmatprep.subr.bf16.mxu0 0
    %1881 = vmatpush1.bf16.msra.mxu0 0
    %1882 = vmatprep.subr.bf16.mxu0 0
    %1883 = vmatpush1.bf16.msra.mxu0 0
    %1884 = vmatprep.subr.bf16.mxu0 0
    %1885 = vmatpush1.bf16.msra.mxu0 0
    %1886 = vmatprep.subr.bf16.mxu0 0
    %1887 = vmatpush1.bf16.msra.mxu0 0
    %1888 = vmatprep.subr.bf16.mxu0 0
    %1889 = vmatpush1.bf16.msra.mxu0 0
    %1890 = vmatprep.subr.bf16.mxu0 0
    %1891 = vmatpush1.bf16.msra.mxu0 0
    %1892 = vmatprep.subr.bf16.mxu0 0
    %1893 = vmatpush1.bf16.msra.mxu0 0
    %1894 = vmatprep.subr.bf16.mxu0 0
    %1895 = vmatpush1.bf16.msra.mxu0 0
    %1896 = vmatprep.subr.bf16.mxu0 0
    %1897 = vmatpush1.bf16.msra.mxu0 0
    %1898 = vmatprep.subr.bf16.mxu0 0
    %1899 = vmatpush1.bf16.msra.mxu0 0
    %1900 = vmatprep.mubr.bf16.mxu0 0
    %1901 = vmatmul.mubr.bf16.gmra.mrb[0].mxu0 %v1210
    %v1902 = vpop.f32.mrb[0].mxu0
    %v1903 = vadd.f32 0.0, %v1902
    %v1904 = vpop.f32.mrb[0].mxu0
    %v1905 = vadd.f32 0.0, %v1904
    %v1906 = vpop.f32.mrb[0].mxu0
    %v1907 = vpop.f32.mrb[0].mxu0
    %1908 = vdwg.mxu0
    %1909 = vmatprep.subr.bf16.mxu0 %v859
    %1910 = vmatpush1.bf16.msra.mxu0 %v858
    %1911 = vmatprep.subr.bf16.mxu0 %v907
    %1912 = vmatpush1.bf16.msra.mxu0 %v906
    %1913 = vmatprep.subr.bf16.mxu0 %v955
    %1914 = vmatpush1.bf16.msra.mxu0 %v954
    %1915 = vmatprep.subr.bf16.mxu0 %v1003
    %1916 = vmatpush1.bf16.msra.mxu0 %v1002
    %1917 = vmatprep.subr.bf16.mxu0 0
    %1918 = vmatpush1.bf16.msra.mxu0 0
    %1919 = vmatprep.subr.bf16.mxu0 0
    %1920 = vmatpush1.bf16.msra.mxu0 0
    %1921 = vmatprep.subr.bf16.mxu0 0
    %1922 = vmatpush1.bf16.msra.mxu0 0
    %1923 = vmatprep.subr.bf16.mxu0 0
    %1924 = vmatpush1.bf16.msra.mxu0 0
    %1925 = vmatprep.subr.bf16.mxu0 0
    %1926 = vmatpush1.bf16.msra.mxu0 0
    %1927 = vmatprep.subr.bf16.mxu0 0
    %1928 = vmatpush1.bf16.msra.mxu0 0
    %1929 = vmatprep.subr.bf16.mxu0 0
    %1930 = vmatpush1.bf16.msra.mxu0 0
    %1931 = vmatprep.subr.bf16.mxu0 0
    %1932 = vmatpush1.bf16.msra.mxu0 0
    %1933 = vmatprep.subr.bf16.mxu0 0
    %1934 = vmatpush1.bf16.msra.mxu0 0
    %1935 = vmatprep.subr.bf16.mxu0 0
    %1936 = vmatpush1.bf16.msra.mxu0 0
    %1937 = vmatprep.subr.bf16.mxu0 0
    %1938 = vmatpush1.bf16.msra.mxu0 0
    %1939 = vmatprep.subr.bf16.mxu0 0
    %1940 = vmatpush1.bf16.msra.mxu0 0
    %1941 = vmatprep.mubr.bf16.mxu0 0
    %1942 = vmatmul.mubr.bf16.gmra.mrb[0].mxu0 %v1210
    %v1943 = vpop.f32.mrb[0].mxu0
    %v1944 = vadd.f32 0.0, %v1943
    %v1945 = vpop.f32.mrb[0].mxu0
    %v1946 = vadd.f32 0.0, %v1945
    %v1947 = vpop.f32.mrb[0].mxu0
    %v1948 = vpop.f32.mrb[0].mxu0
    %1949 = vdwg.mxu0
    %1950 = vmatprep.subr.bf16.mxu0 %v861
    %1951 = vmatpush1.bf16.msra.mxu0 %v860
    %1952 = vmatprep.subr.bf16.mxu0 %v909
    %1953 = vmatpush1.bf16.msra.mxu0 %v908
    %1954 = vmatprep.subr.bf16.mxu0 %v957
    %1955 = vmatpush1.bf16.msra.mxu0 %v956
    %1956 = vmatprep.subr.bf16.mxu0 %v1005
    %1957 = vmatpush1.bf16.msra.mxu0 %v1004
    %1958 = vmatprep.subr.bf16.mxu0 0
    %1959 = vmatpush1.bf16.msra.mxu0 0
    %1960 = vmatprep.subr.bf16.mxu0 0
    %1961 = vmatpush1.bf16.msra.mxu0 0
    %1962 = vmatprep.subr.bf16.mxu0 0
    %1963 = vmatpush1.bf16.msra.mxu0 0
    %1964 = vmatprep.subr.bf16.mxu0 0
    %1965 = vmatpush1.bf16.msra.mxu0 0
    %1966 = vmatprep.subr.bf16.mxu0 0
    %1967 = vmatpush1.bf16.msra.mxu0 0
    %1968 = vmatprep.subr.bf16.mxu0 0
    %1969 = vmatpush1.bf16.msra.mxu0 0
    %1970 = vmatprep.subr.bf16.mxu0 0
    %1971 = vmatpush1.bf16.msra.mxu0 0
    %1972 = vmatprep.subr.bf16.mxu0 0
    %1973 = vmatpush1.bf16.msra.mxu0 0
    %1974 = vmatprep.subr.bf16.mxu0 0
    %1975 = vmatpush1.bf16.msra.mxu0 0
    %1976 = vmatprep.subr.bf16.mxu0 0
    %1977 = vmatpush1.bf16.msra.mxu0 0
    %1978 = vmatprep.subr.bf16.mxu0 0
    %1979 = vmatpush1.bf16.msra.mxu0 0
    %1980 = vmatprep.subr.bf16.mxu0 0
    %1981 = vmatpush1.bf16.msra.mxu0 0
    %1982 = vmatprep.mubr.bf16.mxu0 0
    %1983 = vmatmul.mubr.bf16.gmra.mrb[0].mxu0 %v1210
    %v1984 = vpop.f32.mrb[0].mxu0
    %v1985 = vadd.f32 0.0, %v1984
    %v1986 = vpop.f32.mrb[0].mxu0
    %v1987 = vadd.f32 0.0, %v1986
    %v1988 = vpop.f32.mrb[0].mxu0
    %v1989 = vpop.f32.mrb[0].mxu0
    %1990 = vdwg.mxu0
    %1991 = vmatprep.subr.bf16.mxu0 %v863
    %1992 = vmatpush1.bf16.msra.mxu0 %v862
    %1993 = vmatprep.subr.bf16.mxu0 %v911
    %1994 = vmatpush1.bf16.msra.mxu0 %v910
    %1995 = vmatprep.subr.bf16.mxu0 %v959
    %1996 = vmatpush1.bf16.msra.mxu0 %v958
    %1997 = vmatprep.subr.bf16.mxu0 %v1007
    %1998 = vmatpush1.bf16.msra.mxu0 %v1006
    %1999 = vmatprep.subr.bf16.mxu0 0
    %2000 = vmatpush1.bf16.msra.mxu0 0
    %2001 = vmatprep.subr.bf16.mxu0 0
    %2002 = vmatpush1.bf16.msra.mxu0 0
    %2003 = vmatprep.subr.bf16.mxu0 0
    %2004 = vmatpush1.bf16.msra.mxu0 0
    %2005 = vmatprep.subr.bf16.mxu0 0
    %2006 = vmatpush1.bf16.msra.mxu0 0
    %2007 = vmatprep.subr.bf16.mxu0 0
    %2008 = vmatpush1.bf16.msra.mxu0 0
    %2009 = vmatprep.subr.bf16.mxu0 0
    %2010 = vmatpush1.bf16.msra.mxu0 0
    %2011 = vmatprep.subr.bf16.mxu0 0
    %2012 = vmatpush1.bf16.msra.mxu0 0
    %2013 = vmatprep.subr.bf16.mxu0 0
    %2014 = vmatpush1.bf16.msra.mxu0 0
    %2015 = vmatprep.subr.bf16.mxu0 0
    %2016 = vmatpush1.bf16.msra.mxu0 0
    %2017 = vmatprep.subr.bf16.mxu0 0
    %2018 = vmatpush1.bf16.msra.mxu0 0
    %2019 = vmatprep.subr.bf16.mxu0 0
    %2020 = vmatpush1.bf16.msra.mxu0 0
    %2021 = vmatprep.subr.bf16.mxu0 0
    %2022 = vmatpush1.bf16.msra.mxu0 0
    %2023 = vmatprep.mubr.bf16.mxu0 0
    %2024 = vmatmul.mubr.bf16.gmra.mrb[0].mxu0 %v1210
    %v2025 = vpop.f32.mrb[0].mxu0
    %v2026 = vadd.f32 0.0, %v2025
    %v2027 = vpop.f32.mrb[0].mxu0
    %v2028 = vadd.f32 0.0, %v2027
    %v2029 = vpop.f32.mrb[0].mxu0
    %v2030 = vpop.f32.mrb[0].mxu0
    %2031 = vdwg.mxu0
    %2032 = vmatprep.subr.bf16.mxu0 %v865
    %2033 = vmatpush1.bf16.msra.mxu0 %v864
    %2034 = vmatprep.subr.bf16.mxu0 %v913
    %2035 = vmatpush1.bf16.msra.mxu0 %v912
    %2036 = vmatprep.subr.bf16.mxu0 %v961
    %2037 = vmatpush1.bf16.msra.mxu0 %v960
    %2038 = vmatprep.subr.bf16.mxu0 %v1009
    %2039 = vmatpush1.bf16.msra.mxu0 %v1008
    %2040 = vmatprep.subr.bf16.mxu0 0
    %2041 = vmatpush1.bf16.msra.mxu0 0
    %2042 = vmatprep.subr.bf16.mxu0 0
    %2043 = vmatpush1.bf16.msra.mxu0 0
    %2044 = vmatprep.subr.bf16.mxu0 0
    %2045 = vmatpush1.bf16.msra.mxu0 0
    %2046 = vmatprep.subr.bf16.mxu0 0
    %2047 = vmatpush1.bf16.msra.mxu0 0
    %2048 = vmatprep.subr.bf16.mxu0 0
    %2049 = vmatpush1.bf16.msra.mxu0 0
    %2050 = vmatprep.subr.bf16.mxu0 0
    %2051 = vmatpush1.bf16.msra.mxu0 0
    %2052 = vmatprep.subr.bf16.mxu0 0
    %2053 = vmatpush1.bf16.msra.mxu0 0
    %2054 = vmatprep.subr.bf16.mxu0 0
    %2055 = vmatpush1.bf16.msra.mxu0 0
    %2056 = vmatprep.subr.bf16.mxu0 0
    %2057 = vmatpush1.bf16.msra.mxu0 0
    %2058 = vmatprep.subr.bf16.mxu0 0
    %2059 = vmatpush1.bf16.msra.mxu0 0
    %2060 = vmatprep.subr.bf16.mxu0 0
    %2061 = vmatpush1.bf16.msra.mxu0 0
    %2062 = vmatprep.subr.bf16.mxu0 0
    %2063 = vmatpush1.bf16.msra.mxu0 0
    %2064 = vmatprep.mubr.bf16.mxu0 0
    %2065 = vmatmul.mubr.bf16.gmra.mrb[0].mxu0 %v1210
    %v2066 = vpop.f32.mrb[0].mxu0
    %v2067 = vadd.f32 0.0, %v2066
    %v2068 = vpop.f32.mrb[0].mxu0
    %v2069 = vadd.f32 0.0, %v2068
    %v2070 = vpop.f32.mrb[0].mxu0
    %v2071 = vpop.f32.mrb[0].mxu0
    %2072 = vdwg.mxu0
    %2073 = vmatprep.subr.bf16.mxu0 %v867
    %2074 = vmatpush1.bf16.msra.mxu0 %v866
    %2075 = vmatprep.subr.bf16.mxu0 %v915
    %2076 = vmatpush1.bf16.msra.mxu0 %v914
    %2077 = vmatprep.subr.bf16.mxu0 %v963
    %2078 = vmatpush1.bf16.msra.mxu0 %v962
    %2079 = vmatprep.subr.bf16.mxu0 %v1011
    %2080 = vmatpush1.bf16.msra.mxu0 %v1010
    %2081 = vmatprep.subr.bf16.mxu0 0
    %2082 = vmatpush1.bf16.msra.mxu0 0
    %2083 = vmatprep.subr.bf16.mxu0 0
    %2084 = vmatpush1.bf16.msra.mxu0 0
    %2085 = vmatprep.subr.bf16.mxu0 0
    %2086 = vmatpush1.bf16.msra.mxu0 0
    %2087 = vmatprep.subr.bf16.mxu0 0
    %2088 = vmatpush1.bf16.msra.mxu0 0
    %2089 = vmatprep.subr.bf16.mxu0 0
    %2090 = vmatpush1.bf16.msra.mxu0 0
    %2091 = vmatprep.subr.bf16.mxu0 0
    %2092 = vmatpush1.bf16.msra.mxu0 0
    %2093 = vmatprep.subr.bf16.mxu0 0
    %2094 = vmatpush1.bf16.msra.mxu0 0
    %2095 = vmatprep.subr.bf16.mxu0 0
    %2096 = vmatpush1.bf16.msra.mxu0 0
    %2097 = vmatprep.subr.bf16.mxu0 0
    %2098 = vmatpush1.bf16.msra.mxu0 0
    %2099 = vmatprep.subr.bf16.mxu0 0
    %2100 = vmatpush1.bf16.msra.mxu0 0
    %2101 = vmatprep.subr.bf16.mxu0 0
    %2102 = vmatpush1.bf16.msra.mxu0 0
    %2103 = vmatprep.subr.bf16.mxu0 0
    %2104 = vmatpush1.bf16.msra.mxu0 0
    %2105 = vmatprep.mubr.bf16.mxu0 0
    %2106 = vmatmul.mubr.bf16.gmra.mrb[0].mxu0 %v1210
    %v2107 = vpop.f32.mrb[0].mxu0
    %v2108 = vadd.f32 0.0, %v2107
    %v2109 = vpop.f32.mrb[0].mxu0
    %v2110 = vadd.f32 0.0, %v2109
    %v2111 = vpop.f32.mrb[0].mxu0
    %v2112 = vpop.f32.mrb[0].mxu0
    %2113 = vdwg.mxu0
    %2114 = vmatprep.subr.bf16.mxu0 %v869
    %2115 = vmatpush1.bf16.msra.mxu0 %v868
    %2116 = vmatprep.subr.bf16.mxu0 %v917
    %2117 = vmatpush1.bf16.msra.mxu0 %v916
    %2118 = vmatprep.subr.bf16.mxu0 %v965
    %2119 = vmatpush1.bf16.msra.mxu0 %v964
    %2120 = vmatprep.subr.bf16.mxu0 %v1013
    %2121 = vmatpush1.bf16.msra.mxu0 %v1012
    %2122 = vmatprep.subr.bf16.mxu0 0
    %2123 = vmatpush1.bf16.msra.mxu0 0
    %2124 = vmatprep.subr.bf16.mxu0 0
    %2125 = vmatpush1.bf16.msra.mxu0 0
    %2126 = vmatprep.subr.bf16.mxu0 0
    %2127 = vmatpush1.bf16.msra.mxu0 0
    %2128 = vmatprep.subr.bf16.mxu0 0
    %2129 = vmatpush1.bf16.msra.mxu0 0
    %2130 = vmatprep.subr.bf16.mxu0 0
    %2131 = vmatpush1.bf16.msra.mxu0 0
    %2132 = vmatprep.subr.bf16.mxu0 0
    %2133 = vmatpush1.bf16.msra.mxu0 0
    %2134 = vmatprep.subr.bf16.mxu0 0
    %2135 = vmatpush1.bf16.msra.mxu0 0
    %2136 = vmatprep.subr.bf16.mxu0 0
    %2137 = vmatpush1.bf16.msra.mxu0 0
    %2138 = vmatprep.subr.bf16.mxu0 0
    %2139 = vmatpush1.bf16.msra.mxu0 0
    %2140 = vmatprep.subr.bf16.mxu0 0
    %2141 = vmatpush1.bf16.msra.mxu0 0
    %2142 = vmatprep.subr.bf16.mxu0 0
    %2143 = vmatpush1.bf16.msra.mxu0 0
    %2144 = vmatprep.subr.bf16.mxu0 0
    %2145 = vmatpush1.bf16.msra.mxu0 0
    %2146 = vmatprep.mubr.bf16.mxu0 0
    %2147 = vmatmul.mubr.bf16.gmra.mrb[0].mxu0 %v1210
    %v2148 = vpop.f32.mrb[0].mxu0
    %v2149 = vadd.f32 0.0, %v2148
    %v2150 = vpop.f32.mrb[0].mxu0
    %v2151 = vadd.f32 0.0, %v2150
    %v2152 = vpop.f32.mrb[0].mxu0
    %v2153 = vpop.f32.mrb[0].mxu0
    %2154 = vdwg.mxu0
    %2155 = vmatprep.subr.bf16.mxu0 %v871
    %2156 = vmatpush1.bf16.msra.mxu0 %v870
    %2157 = vmatprep.subr.bf16.mxu0 %v919
    %2158 = vmatpush1.bf16.msra.mxu0 %v918
    %2159 = vmatprep.subr.bf16.mxu0 %v967
    %2160 = vmatpush1.bf16.msra.mxu0 %v966
    %2161 = vmatprep.subr.bf16.mxu0 %v1015
    %2162 = vmatpush1.bf16.msra.mxu0 %v1014
    %2163 = vmatprep.subr.bf16.mxu0 0
    %2164 = vmatpush1.bf16.msra.mxu0 0
    %2165 = vmatprep.subr.bf16.mxu0 0
    %2166 = vmatpush1.bf16.msra.mxu0 0
    %2167 = vmatprep.subr.bf16.mxu0 0
    %2168 = vmatpush1.bf16.msra.mxu0 0
    %2169 = vmatprep.subr.bf16.mxu0 0
    %2170 = vmatpush1.bf16.msra.mxu0 0
    %2171 = vmatprep.subr.bf16.mxu0 0
    %2172 = vmatpush1.bf16.msra.mxu0 0
    %2173 = vmatprep.subr.bf16.mxu0 0
    %2174 = vmatpush1.bf16.msra.mxu0 0
    %2175 = vmatprep.subr.bf16.mxu0 0
    %2176 = vmatpush1.bf16.msra.mxu0 0
    %2177 = vmatprep.subr.bf16.mxu0 0
    %2178 = vmatpush1.bf16.msra.mxu0 0
    %2179 = vmatprep.subr.bf16.mxu0 0
    %2180 = vmatpush1.bf16.msra.mxu0 0
    %2181 = vmatprep.subr.bf16.mxu0 0
    %2182 = vmatpush1.bf16.msra.mxu0 0
    %2183 = vmatprep.subr.bf16.mxu0 0
    %2184 = vmatpush1.bf16.msra.mxu0 0
    %2185 = vmatprep.subr.bf16.mxu0 0
    %2186 = vmatpush1.bf16.msra.mxu0 0
    %2187 = vmatprep.mubr.bf16.mxu0 0
    %2188 = vmatmul.mubr.bf16.gmra.mrb[0].mxu0 %v1210
    %v2189 = vpop.f32.mrb[0].mxu0
    %v2190 = vadd.f32 0.0, %v2189
    %v2191 = vpop.f32.mrb[0].mxu0
    %v2192 = vadd.f32 0.0, %v2191
    %v2193 = vpop.f32.mrb[0].mxu0
    %v2194 = vpop.f32.mrb[0].mxu0
    %2195 = vdwg.mxu0
    %v2196 = vmax.f32 %v1247, %v1370
    %v2197 = vmax.f32 %v1249, %v1372
    %v2198 = vmax.f32 %v1288, %v1411
    %v2199 = vmax.f32 %v1290, %v1413
    %v2200 = vmax.f32 %v1329, %v1452
    %v2201 = vmax.f32 %v1331, %v1454
    %v2202 = vmin.f32 %v1247, %v1370
    %v2203 = vmin.f32 %v1249, %v1372
    %v2204 = vmin.f32 %v1288, %v1411
    %v2205 = vmin.f32 %v1290, %v1413
    %v2206 = vmin.f32 %v1329, %v1452
    %v2207 = vmin.f32 %v1331, %v1454
    %v2208 = vmax.f32 %v2196, %v1493
    %v2209 = vmax.f32 %v2197, %v1495
    %v2210 = vmax.f32 %v2198, %v1534
    %v2211 = vmax.f32 %v2199, %v1536
    %v2212 = vmax.f32 %v2200, %v1575
    %v2213 = vmax.f32 %v2201, %v1577
    %v2214 = vmin.f32 %v2202, %v1493
    %v2215 = vmin.f32 %v2203, %v1495
    %v2216 = vmin.f32 %v2204, %v1534
    %v2217 = vmin.f32 %v2205, %v1536
    %v2218 = vmin.f32 %v2206, %v1575
    %v2219 = vmin.f32 %v2207, %v1577
    %v2220 = vmax.f32 %v2208, %v1616
    %v2221 = vmax.f32 %v2209, %v1618
    %v2222 = vmax.f32 %v2210, %v1657
    %v2223 = vmax.f32 %v2211, %v1659
    %v2224 = vmax.f32 %v2212, %v1698
    %v2225 = vmax.f32 %v2213, %v1700
    %v2226 = vmin.f32 %v2214, %v1616
    %v2227 = vmin.f32 %v2215, %v1618
    %v2228 = vmin.f32 %v2216, %v1657
    %v2229 = vmin.f32 %v2217, %v1659
    %v2230 = vmin.f32 %v2218, %v1698
    %v2231 = vmin.f32 %v2219, %v1700
    %v2232 = vmax.f32 %v2220, %v1739
    %v2233 = vmax.f32 %v2221, %v1741
    %v2234 = vmax.f32 %v2222, %v1780
    %v2235 = vmax.f32 %v2223, %v1782
    %v2236 = vmax.f32 %v2224, %v1821
    %v2237 = vmax.f32 %v2225, %v1823
    %v2238 = vmin.f32 %v2226, %v1739
    %v2239 = vmin.f32 %v2227, %v1741
    %v2240 = vmin.f32 %v2228, %v1780
    %v2241 = vmin.f32 %v2229, %v1782
    %v2242 = vmin.f32 %v2230, %v1821
    %v2243 = vmin.f32 %v2231, %v1823
    %v2244 = vmax.f32 %v2232, %v1862
    %v2245 = vmax.f32 %v2233, %v1864
    %v2246 = vmax.f32 %v2234, %v1903
    %v2247 = vmax.f32 %v2235, %v1905
    %v2248 = vmax.f32 %v2236, %v1944
    %v2249 = vmax.f32 %v2237, %v1946
    %v2250 = vmin.f32 %v2238, %v1862
    %v2251 = vmin.f32 %v2239, %v1864
    %v2252 = vmin.f32 %v2240, %v1903
    %v2253 = vmin.f32 %v2241, %v1905
    %v2254 = vmin.f32 %v2242, %v1944
    %v2255 = vmin.f32 %v2243, %v1946
    %v2256 = vmax.f32 %v2244, %v1985
    %v2257 = vmax.f32 %v2245, %v1987
    %v2258 = vmax.f32 %v2246, %v2026
    %v2259 = vmax.f32 %v2247, %v2028
    %v2260 = vmax.f32 %v2248, %v2067
    %v2261 = vmax.f32 %v2249, %v2069
    %v2262 = vmin.f32 %v2250, %v1985
    %v2263 = vmin.f32 %v2251, %v1987
    %v2264 = vmin.f32 %v2252, %v2026
    %v2265 = vmin.f32 %v2253, %v2028
    %v2266 = vmin.f32 %v2254, %v2067
    %v2267 = vmin.f32 %v2255, %v2069
    %v2268 = vmax.f32 %v2256, %v2108
    %v2269 = vmax.f32 %v2257, %v2110
    %v2270 = vmax.f32 %v2258, %v2149
    %v2271 = vmax.f32 %v2259, %v2151
    %v2272 = vmax.f32 %v2260, %v2190
    %v2273 = vmax.f32 %v2261, %v2192
    %v2274 = vmin.f32 %v2262, %v2108
    %v2275 = vmin.f32 %v2263, %v2110
    %v2276 = vmin.f32 %v2264, %v2149
    %v2277 = vmin.f32 %v2265, %v2151
    %v2278 = vmin.f32 %v2266, %v2190
    %v2279 = vmin.f32 %v2267, %v2192
    %v2280 = vld [vmem:[#allocation7] sm:$0xff]
    %s2281 = scalar_lea.vmem [#allocation7], 8
    %v2282 = vld [vmem:[%s2281] sm:$0xff]
    %s2283 = scalar_lea.vmem [#allocation7], 16
    %v2284 = vld [vmem:[%s2283] sm:$0xff]
    %vm2285 = vcmp.ge.f32.partialorder %v2282, 0.0
    %v2286 = vsel %vm2285, 1, 0
    %2287 = vset.pattern.permute.xlu0 0
    %2288 = vperm.xlu0 %2287, %v2286
    %v2289 = vpop.permute.xlu0 %2288
    %vm2290 = vcmp.eq.s32.totalorder %v2289, 1
    %v2291 = vsel %vm2290, %v2268, %v2274
    %v2292 = vsel %vm2290, %v2269, %v2275
    %v2293 = vsel %vm2290, %v2270, %v2276
    %v2294 = vsel %vm2290, %v2271, %v2277
    %v2295 = vsel %vm2290, %v2272, %v2278
    %v2296 = vsel %vm2290, %v2273, %v2279
    %2298 = vset.pattern.permute.xlu0 0
    %2299 = vperm.xlu0 %2298, %v2280
    %v2300 = vpop.permute.xlu0 %2299
    %v2302 = vadd.f32 %v2291, %v2300
    %v2303 = vadd.f32 %v2292, %v2300
    %v2304 = vadd.f32 %v2293, %v2300
    %v2305 = vadd.f32 %v2294, %v2300
    %v2306 = vadd.f32 %v2295, %v2300
    %v2307 = vadd.f32 %v2296, %v2300
    %v2308 = vmax.f32 %v2302, 0.0
    %v2309 = vmax.f32 %v2303, 0.0
    %v2310 = vmax.f32 %v2304, 0.0
    %v2311 = vmax.f32 %v2305, 0.0
    %v2312 = vmax.f32 %v2306, 0.0
    %v2313 = vmax.f32 %v2307, 0.0
    %2315 = vset.pattern.permute.xlu0 0
    %2316 = vperm.xlu0 %2315, %v2282
    %v2317 = vpop.permute.xlu0 %2316
    %v2319 = vmul.f32 %v2308, %v2317
    %v2320 = vmul.f32 %v2309, %v2317
    %v2321 = vmul.f32 %v2310, %v2317
    %v2322 = vmul.f32 %v2311, %v2317
    %v2323 = vmul.f32 %v2312, %v2317
    %v2324 = vmul.f32 %v2313, %v2317
    %2326 = vset.pattern.permute.xlu0 0
    %2327 = vperm.xlu0 %2326, %v2284
    %v2328 = vpop.permute.xlu0 %2327
    %v2330 = vadd.f32 %v2319, %v2328
    %v2331 = vadd.f32 %v2320, %v2328
    %v2332 = vadd.f32 %v2321, %v2328
    %v2333 = vadd.f32 %v2322, %v2328
    %v2334 = vadd.f32 %v2323, %v2328
    %v2335 = vadd.f32 %v2324, %v2328
    %v2336 = vpack.c.bf16 %v2330, %v2330
    %v2337 = vpack.c.bf16 %v2331, %v2331
    %v2338 = vpack.c.bf16 %v2332, %v2332
    %v2339 = vpack.c.bf16 %v2333, %v2333
    %v2340 = vpack.c.bf16 %v2334, %v2334
    %v2341 = vpack.c.bf16 %v2335, %v2335
    %v2348 = vunpack.c.l.b16 %v2336
    %v2349 = vunpack.c.l.b16 %v2337
    %v2350 = vunpack.c.l.b16 %v2338
    %v2351 = vunpack.c.l.b16 %v2339
    %v2352 = vunpack.c.l.b16 %v2340
    %v2353 = vunpack.c.l.b16 %v2341
    %v2354 = vpack.c.b16 %v2349, %v2348
    %v2355 = vpack.c.b16 %v2351, %v2350
    %v2356 = vpack.c.b16 %v2353, %v2352
    %2360 = vst [vmem:[#allocation8] sm:$0xff] %v2354
    %2361 = vst [vmem:[#allocation8 + $0x8] sm:$0xff] %v2355
    %2362 = vst [vmem:[#allocation8 + $0x10] sm:$0xff] %v2356
    // Predicated region
    $region26: #{net_forward.3} parent=1 // pred_check
      _
    $region27: #{net_forward.3} parent=1 // pred_check_branch
      %2364 = sbr.rel (0) target = $region29
    $region28: #{net_forward.3} parent=1 // pred_region
      %s2366 = ssub.s32 384, 384
      %2367 = vsyncadd [#allocation4], %s2366
      %s2369 = sshll.u32 [#allocation8], 4
      %s2370 = int_to_ptr.vmem [resolvable:$true] %s2369
      %2372 = dma.vmem_to_hbm [thread:$0]  %s2370, 384, %s3, [#allocation4]
    $region29: #{net_forward.3} parent=1 // pred_fallthru
      _
    // Predicated region
    $region30: #{net_forward.3} parent=1 // pred_check
      _
    $region31: #{net_forward.3} parent=1 // pred_check_branch
      %2374 = sbr.rel (0) target = $region33
    $region32: #{net_forward.3} parent=1 // pred_region
      %2375 = dma.done [#allocation4], 384
    $region33: #{net_forward.3} parent=1 // pred_fallthru
      _
    %2376 = vsyncpa [#allocation3], 1
    %2377 = vsyncpa [#allocation6], 1
    %2378 = vsyncpa [#allocation4], 1

// kernel: net_forward.4
$region0: #{net_forward.4}
  #allocation0 [shape = 'u32[]', space=smem, size = 0x4, offset = 0x4, fixed_abs, tag = 'smem constant byte address 0x4 - core index']
  #allocation1 [shape = 'u32[144,128]{1,0:T(1,128)}', space=vmem, size = 0x12000, scoped, tag = 'internal scratch']
  %s0 = inlined_call_operand.hbm [shape: bf16[112,1024], index: 0, kind: input, shape index: {}]
  %s1 = inlined_call_operand.hbm [shape: bf16[32,112], index: 1, kind: input, shape index: {}]
  %s2 = inlined_call_operand.hbm [shape: f32[3,32,1], index: 2, kind: input, shape index: {}]
  %s3 = inlined_call_operand.hbm [shape: bf16[32,128], index: 3, kind: output, shape index: {}]
  %s4 = sld [smem:[#allocation0]]
  $region34: #{net_forward.4} parent=0
    _
  %s6 = ssub.s32 1, %s4
  %s7 = scalar_select 0, %s6, %s4
  $region1: #{net_forward.4} parent=0
    #allocation2 [shape = 'u8[229376]{0}', space=vmem, size = 0x38000, scoped, tag = 'input window, operand 0, single buffered']
    #allocation3 [shape = 's32[1]{0}', space=sflag, size = 0x4, scoped, tag = 'scoped memory for net_forward.4']
    #allocation4 [shape = 's32[1]{0}', space=sflag, size = 0x4, scoped, tag = 'scoped memory for net_forward.4']
    #allocation5 [shape = 'u8[8192]{0}', space=vmem, size = 0x2000, scoped, tag = 'input window, operand 1, single buffered']
    #allocation6 [shape = 's32[1]{0}', space=sflag, size = 0x4, scoped, tag = 'scoped memory for net_forward.4']
    #allocation7 [shape = 'u8[49152]{0}', space=vmem, size = 0xc000, scoped, tag = 'input window, operand 2, single buffered']
    #allocation8 [shape = 'u8[8192]{0}', space=vmem, size = 0x2000, scoped, tag = 'output window, operand 0, single buffered']
    %8 = vsyncpa [#allocation3], 0
    %9 = vsyncpa [#allocation6], 0
    %10 = vsyncpa [#allocation4], 0
    // Predicated region
    $region2: #{net_forward.4} parent=1 // pred_check
      _
    $region3: #{net_forward.4} parent=1 // pred_check_branch
      %12 = sbr.rel (0) target = $region5
    $region4: #{net_forward.4} parent=1 // pred_region
      %s14 = ssub.s32 7168, 7168
      %15 = vsyncadd [#allocation3], %s14
      %s16 = sshll.u32 [#allocation2], 4
      %s17 = int_to_ptr.vmem [resolvable:$true] %s16
      %22 = dma.hbm_to_vmem [thread:$0]  %s0, 7168, %s17, [#allocation3], 512, 512, 32
    $region5: #{net_forward.4} parent=1 // pred_fallthru
      _
    // Predicated region
    $region6: #{net_forward.4} parent=1 // pred_check
      _
    $region7: #{net_forward.4} parent=1 // pred_check_branch
      %24 = sbr.rel (0) target = $region9
    $region8: #{net_forward.4} parent=1 // pred_region
      %s26 = ssub.s32 256, 256
      %27 = vsyncadd [#allocation6], %s26
      %s28 = sshll.u32 [#allocation5], 4
      %s29 = int_to_ptr.vmem [resolvable:$true] %s28
      %34 = dma.hbm_to_vmem [thread:$0]  %s1, 256, %s29, [#allocation6], 64, 64, 4
    $region9: #{net_forward.4} parent=1 // pred_fallthru
      _
    // Predicated region
    $region10: #{net_forward.4} parent=1 // pred_check
      _
    $region11: #{net_forward.4} parent=1 // pred_check_branch
      %36 = sbr.rel (0) target = $region13
    $region12: #{net_forward.4} parent=1 // pred_region
      %s38 = ssub.s32 1536, 1536
      %39 = vsyncadd [#allocation6], %s38
      %s40 = sshll.u32 [#allocation7], 4
      %s41 = int_to_ptr.vmem [resolvable:$true] %s40
      %46 = dma.hbm_to_vmem [thread:$0]  %s2, 1536, %s41, [#allocation6], 128, 128, 8
    $region13: #{net_forward.4} parent=1 // pred_fallthru
      _
    // Predicated region
    $region14: #{net_forward.4} parent=1 // pred_check
      _
    $region15: #{net_forward.4} parent=1 // pred_check_branch
      %48 = sbr.rel (0) target = $region17
    $region16: #{net_forward.4} parent=1 // pred_region
      %49 = dma.done [#allocation3], 7168
    $region17: #{net_forward.4} parent=1 // pred_fallthru
      _
    // Predicated region
    $region18: #{net_forward.4} parent=1 // pred_check
      _
    $region19: #{net_forward.4} parent=1 // pred_check_branch
      %51 = sbr.rel (0) target = $region21
    $region20: #{net_forward.4} parent=1 // pred_region
      %52 = dma.done [#allocation6], 256
    $region21: #{net_forward.4} parent=1 // pred_fallthru
      _
    // Predicated region
    $region22: #{net_forward.4} parent=1 // pred_check
      _
    $region23: #{net_forward.4} parent=1 // pred_check_branch
      %54 = sbr.rel (0) target = $region25
    $region24: #{net_forward.4} parent=1 // pred_region
      %55 = dma.done [#allocation6], 1536
    $region25: #{net_forward.4} parent=1 // pred_fallthru
      _
    %v57 = vld [vmem:[#allocation5] sm:$0xf]
    %v58 = vld [vmem:[#allocation5 + $0x4] sm:$0xf]
    %v59 = vld [vmem:[#allocation5 + $0x8] sm:$0xf]
    %v60 = vld [vmem:[#allocation5 + $0xc] sm:$0xf]
    %v61 = vld [vmem:[#allocation2] sm:$0xff]
    %v62 = vld [vmem:[#allocation2 + $0x8] sm:$0xff]
    %v63 = vld [vmem:[#allocation2 + $0x10] sm:$0xff]
    %v64 = vld [vmem:[#allocation2 + $0x18] sm:$0xff]
    %v65 = vld [vmem:[#allocation2 + $0x20] sm:$0xff]
    %v66 = vld [vmem:[#allocation2 + $0x28] sm:$0xff]
    %v67 = vld [vmem:[#allocation2 + $0x30] sm:$0xff]
    %v68 = vld [vmem:[#allocation2 + $0x38] sm:$0xff]
    %v69 = vld [vmem:[#allocation2 + $0x40] sm:$0xff]
    %v70 = vld [vmem:[#allocation2 + $0x48] sm:$0xff]
    %v71 = vld [vmem:[#allocation2 + $0x50] sm:$0xff]
    %v72 = vld [vmem:[#allocation2 + $0x58] sm:$0xff]
    %v73 = vld [vmem:[#allocation2 + $0x60] sm:$0xff]
    %v74 = vld [vmem:[#allocation2 + $0x68] sm:$0xff]
    %v75 = vld [vmem:[#allocation2 + $0x70] sm:$0xff]
    %v76 = vld [vmem:[#allocation2 + $0x78] sm:$0xff]
    %v77 = vld [vmem:[#allocation2 + $0x80] sm:$0xff]
    %v78 = vld [vmem:[#allocation2 + $0x88] sm:$0xff]
    %v79 = vld [vmem:[#allocation2 + $0x90] sm:$0xff]
    %v80 = vld [vmem:[#allocation2 + $0x98] sm:$0xff]
    %v81 = vld [vmem:[#allocation2 + $0xa0] sm:$0xff]
    %v82 = vld [vmem:[#allocation2 + $0xa8] sm:$0xff]
    %v83 = vld [vmem:[#allocation2 + $0xb0] sm:$0xff]
    %v84 = vld [vmem:[#allocation2 + $0xb8] sm:$0xff]
    %v85 = vld [vmem:[#allocation2 + $0xc0] sm:$0xff]
    %v86 = vld [vmem:[#allocation2 + $0xc8] sm:$0xff]
    %v87 = vld [vmem:[#allocation2 + $0xd0] sm:$0xff]
    %v88 = vld [vmem:[#allocation2 + $0xd8] sm:$0xff]
    %v89 = vld [vmem:[#allocation2 + $0xe0] sm:$0xff]
    %v90 = vld [vmem:[#allocation2 + $0xe8] sm:$0xff]
    %v91 = vld [vmem:[#allocation2 + $0xf0] sm:$0xff]
    %v92 = vld [vmem:[#allocation2 + $0xf8] sm:$0xff]
    %v93 = vld [vmem:[#allocation2 + $0x100] sm:$0xff]
    %v94 = vld [vmem:[#allocation2 + $0x108] sm:$0xff]
    %v95 = vld [vmem:[#allocation2 + $0x110] sm:$0xff]
    %v96 = vld [vmem:[#allocation2 + $0x118] sm:$0xff]
    %v97 = vld [vmem:[#allocation2 + $0x120] sm:$0xff]
    %v98 = vld [vmem:[#allocation2 + $0x128] sm:$0xff]
    %v99 = vld [vmem:[#allocation2 + $0x130] sm:$0xff]
    %v100 = vld [vmem:[#allocation2 + $0x138] sm:$0xff]
    %v101 = vld [vmem:[#allocation2 + $0x140] sm:$0xff]
    %v102 = vld [vmem:[#allocation2 + $0x148] sm:$0xff]
    %v103 = vld [vmem:[#allocation2 + $0x150] sm:$0xff]
    %v104 = vld [vmem:[#allocation2 + $0x158] sm:$0xff]
    %v105 = vld [vmem:[#allocation2 + $0x160] sm:$0xff]
    %v106 = vld [vmem:[#allocation2 + $0x168] sm:$0xff]
    %v107 = vld [vmem:[#allocation2 + $0x170] sm:$0xff]
    %v108 = vld [vmem:[#allocation2 + $0x178] sm:$0xff]
    %v109 = vld [vmem:[#allocation2 + $0x180] sm:$0xff]
    %v110 = vld [vmem:[#allocation2 + $0x188] sm:$0xff]
    %v111 = vld [vmem:[#allocation2 + $0x190] sm:$0xff]
    %v112 = vld [vmem:[#allocation2 + $0x198] sm:$0xff]
    %v113 = vld [vmem:[#allocation2 + $0x1a0] sm:$0xff]
    %v114 = vld [vmem:[#allocation2 + $0x1a8] sm:$0xff]
    %v115 = vld [vmem:[#allocation2 + $0x1b0] sm:$0xff]
    %v116 = vld [vmem:[#allocation2 + $0x1b8] sm:$0xff]
    %v121 = vunpack.c.l.b16 %v57
    %v122 = vunpack.c.l.b16 %v58
    %v123 = vunpack.c.l.b16 %v59
    %v124 = vunpack.c.l.b16 %v60
    %v125 = vpack.c.b16 %v122, %v121
    %v126 = vpack.c.b16 %v124, %v123
    %v183 = vunpack.c.l.b16 %v61
    %v184 = vunpack.c.h.b16 %v61
    %v185 = vunpack.c.l.b16 %v62
    %v186 = vunpack.c.h.b16 %v62
    %v187 = vunpack.c.l.b16 %v63
    %v188 = vunpack.c.h.b16 %v63
    %v189 = vunpack.c.l.b16 %v64
    %v190 = vunpack.c.h.b16 %v64
    %v191 = vunpack.c.l.b16 %v65
    %v192 = vunpack.c.h.b16 %v65
    %v193 = vunpack.c.l.b16 %v66
    %v194 = vunpack.c.h.b16 %v66
    %v195 = vunpack.c.l.b16 %v67
    %v196 = vunpack.c.h.b16 %v67
    %v197 = vunpack.c.l.b16 %v68
    %v198 = vunpack.c.h.b16 %v68
    %v199 = vunpack.c.l.b16 %v69
    %v200 = vunpack.c.h.b16 %v69
    %v201 = vunpack.c.l.b16 %v70
    %v202 = vunpack.c.h.b16 %v70
    %v203 = vunpack.c.l.b16 %v71
    %v204 = vunpack.c.h.b16 %v71
    %v205 = vunpack.c.l.b16 %v72
    %v206 = vunpack.c.h.b16 %v72
    %v207 = vunpack.c.l.b16 %v73
    %v208 = vunpack.c.h.b16 %v73
    %v209 = vunpack.c.l.b16 %v74
    %v210 = vunpack.c.h.b16 %v74
    %v211 = vunpack.c.l.b16 %v75
    %v212 = vunpack.c.h.b16 %v75
    %v213 = vunpack.c.l.b16 %v76
    %v214 = vunpack.c.h.b16 %v76
    %v215 = vunpack.c.l.b16 %v77
    %v216 = vunpack.c.h.b16 %v77
    %v217 = vunpack.c.l.b16 %v78
    %v218 = vunpack.c.h.b16 %v78
    %v219 = vunpack.c.l.b16 %v79
    %v220 = vunpack.c.h.b16 %v79
    %v221 = vunpack.c.l.b16 %v80
    %v222 = vunpack.c.h.b16 %v80
    %v223 = vunpack.c.l.b16 %v81
    %v224 = vunpack.c.h.b16 %v81
    %v225 = vunpack.c.l.b16 %v82
    %v226 = vunpack.c.h.b16 %v82
    %v227 = vunpack.c.l.b16 %v83
    %v228 = vunpack.c.h.b16 %v83
    %v229 = vunpack.c.l.b16 %v84
    %v230 = vunpack.c.h.b16 %v84
    %v231 = vunpack.c.l.b16 %v85
    %v232 = vunpack.c.h.b16 %v85
    %v233 = vunpack.c.l.b16 %v86
    %v234 = vunpack.c.h.b16 %v86
    %v235 = vunpack.c.l.b16 %v87
    %v236 = vunpack.c.h.b16 %v87
    %v237 = vunpack.c.l.b16 %v88
    %v238 = vunpack.c.h.b16 %v88
    %v239 = vunpack.c.l.b16 %v89
    %v240 = vunpack.c.h.b16 %v89
    %v241 = vunpack.c.l.b16 %v90
    %v242 = vunpack.c.h.b16 %v90
    %v243 = vunpack.c.l.b16 %v91
    %v244 = vunpack.c.h.b16 %v91
    %v245 = vunpack.c.l.b16 %v92
    %v246 = vunpack.c.h.b16 %v92
    %v247 = vunpack.c.l.b16 %v93
    %v248 = vunpack.c.h.b16 %v93
    %v249 = vunpack.c.l.b16 %v94
    %v250 = vunpack.c.h.b16 %v94
    %v251 = vunpack.c.l.b16 %v95
    %v252 = vunpack.c.h.b16 %v95
    %v253 = vunpack.c.l.b16 %v96
    %v254 = vunpack.c.h.b16 %v96
    %v255 = vunpack.c.l.b16 %v97
    %v256 = vunpack.c.h.b16 %v97
    %v257 = vunpack.c.l.b16 %v98
    %v258 = vunpack.c.h.b16 %v98
    %v259 = vunpack.c.l.b16 %v99
    %v260 = vunpack.c.h.b16 %v99
    %v261 = vunpack.c.l.b16 %v100
    %v262 = vunpack.c.h.b16 %v100
    %v263 = vunpack.c.l.b16 %v101
    %v264 = vunpack.c.h.b16 %v101
    %v265 = vunpack.c.l.b16 %v102
    %v266 = vunpack.c.h.b16 %v102
    %v267 = vunpack.c.l.b16 %v103
    %v268 = vunpack.c.h.b16 %v103
    %v269 = vunpack.c.l.b16 %v104
    %v270 = vunpack.c.h.b16 %v104
    %v271 = vunpack.c.l.b16 %v105
    %v272 = vunpack.c.h.b16 %v105
    %v273 = vunpack.c.l.b16 %v106
    %v274 = vunpack.c.h.b16 %v106
    %v275 = vunpack.c.l.b16 %v107
    %v276 = vunpack.c.h.b16 %v107
    %v277 = vunpack.c.l.b16 %v108
    %v278 = vunpack.c.h.b16 %v108
    %v279 = vunpack.c.l.b16 %v109
    %v280 = vunpack.c.h.b16 %v109
    %v281 = vunpack.c.l.b16 %v110
    %v282 = vunpack.c.h.b16 %v110
    %v283 = vunpack.c.l.b16 %v111
    %v284 = vunpack.c.h.b16 %v111
    %v285 = vunpack.c.l.b16 %v112
    %v286 = vunpack.c.h.b16 %v112
    %v287 = vunpack.c.l.b16 %v113
    %v288 = vunpack.c.h.b16 %v113
    %v289 = vunpack.c.l.b16 %v114
    %v290 = vunpack.c.h.b16 %v114
    %v291 = vunpack.c.l.b16 %v115
    %v292 = vunpack.c.h.b16 %v115
    %v293 = vunpack.c.l.b16 %v116
    %v294 = vunpack.c.h.b16 %v116
    %v295 = vpack.c.b16 %v191, %v183
    %v296 = vpack.c.b16 %v192, %v184
    %v297 = vpack.c.b16 %v193, %v185
    %v298 = vpack.c.b16 %v194, %v186
    %v299 = vpack.c.b16 %v195, %v187
    %v300 = vpack.c.b16 %v196, %v188
    %v301 = vpack.c.b16 %v197, %v189
    %v302 = vpack.c.b16 %v198, %v190
    %v303 = vpack.c.b16 %v207, %v199
    %v304 = vpack.c.b16 %v208, %v200
    %v305 = vpack.c.b16 %v209, %v201
    %v306 = vpack.c.b16 %v210, %v202
    %v307 = vpack.c.b16 %v211, %v203
    %v308 = vpack.c.b16 %v212, %v204
    %v309 = vpack.c.b16 %v213, %v205
    %v310 = vpack.c.b16 %v214, %v206
    %v311 = vpack.c.b16 %v223, %v215
    %v312 = vpack.c.b16 %v224, %v216
    %v313 = vpack.c.b16 %v225, %v217
    %v314 = vpack.c.b16 %v226, %v218
    %v315 = vpack.c.b16 %v227, %v219
    %v316 = vpack.c.b16 %v228, %v220
    %v317 = vpack.c.b16 %v229, %v221
    %v318 = vpack.c.b16 %v230, %v222
    %v319 = vpack.c.b16 %v239, %v231
    %v320 = vpack.c.b16 %v240, %v232
    %v321 = vpack.c.b16 %v241, %v233
    %v322 = vpack.c.b16 %v242, %v234
    %v323 = vpack.c.b16 %v243, %v235
    %v324 = vpack.c.b16 %v244, %v236
    %v325 = vpack.c.b16 %v245, %v237
    %v326 = vpack.c.b16 %v246, %v238
    %v327 = vpack.c.b16 %v255, %v247
    %v328 = vpack.c.b16 %v256, %v248
    %v329 = vpack.c.b16 %v257, %v249
    %v330 = vpack.c.b16 %v258, %v250
    %v331 = vpack.c.b16 %v259, %v251
    %v332 = vpack.c.b16 %v260, %v252
    %v333 = vpack.c.b16 %v261, %v253
    %v334 = vpack.c.b16 %v262, %v254
    %v335 = vpack.c.b16 %v271, %v263
    %v336 = vpack.c.b16 %v272, %v264
    %v337 = vpack.c.b16 %v273, %v265
    %v338 = vpack.c.b16 %v274, %v266
    %v339 = vpack.c.b16 %v275, %v267
    %v340 = vpack.c.b16 %v276, %v268
    %v341 = vpack.c.b16 %v277, %v269
    %v342 = vpack.c.b16 %v278, %v270
    %v343 = vpack.c.b16 %v287, %v279
    %v344 = vpack.c.b16 %v288, %v280
    %v345 = vpack.c.b16 %v289, %v281
    %v346 = vpack.c.b16 %v290, %v282
    %v347 = vpack.c.b16 %v291, %v283
    %v348 = vpack.c.b16 %v292, %v284
    %v349 = vpack.c.b16 %v293, %v285
    %v350 = vpack.c.b16 %v294, %v286
    %vm407 = vcmask 916480
    %v409 = vsel %vm407, %v125, 0
    %v412 = vsel %vm407, %v126, 0
    %414 = vmatprep.subr.bf16.mxu0 %v296
    %415 = vmatpush1.bf16.msra.mxu0 %v295
    %416 = vmatprep.subr.bf16.mxu0 %v304
    %417 = vmatpush1.bf16.msra.mxu0 %v303
    %418 = vmatprep.subr.bf16.mxu0 %v312
    %419 = vmatpush1.bf16.msra.mxu0 %v311
    %420 = vmatprep.subr.bf16.mxu0 %v320
    %421 = vmatpush1.bf16.msra.mxu0 %v319
    %422 = vmatprep.subr.bf16.mxu0 %v328
    %423 = vmatpush1.bf16.msra.mxu0 %v327
    %424 = vmatprep.subr.bf16.mxu0 %v336
    %425 = vmatpush1.bf16.msra.mxu0 %v335
    %426 = vmatprep.subr.bf16.mxu0 %v344
    %427 = vmatpush1.bf16.msra.mxu0 %v343
    %428 = vmatprep.subr.bf16.mxu0 0
    %429 = vmatpush1.bf16.msra.mxu0 0
    %430 = vmatprep.subr.bf16.mxu0 0
    %431 = vmatpush1.bf16.msra.mxu0 0
    %432 = vmatprep.subr.bf16.mxu0 0
    %433 = vmatpush1.bf16.msra.mxu0 0
    %434 = vmatprep.subr.bf16.mxu0 0
    %435 = vmatpush1.bf16.msra.mxu0 0
    %436 = vmatprep.subr.bf16.mxu0 0
    %437 = vmatpush1.bf16.msra.mxu0 0
    %438 = vmatprep.subr.bf16.mxu0 0
    %439 = vmatpush1.bf16.msra.mxu0 0
    %440 = vmatprep.subr.bf16.mxu0 0
    %441 = vmatpush1.bf16.msra.mxu0 0
    %442 = vmatprep.subr.bf16.mxu0 0
    %443 = vmatpush1.bf16.msra.mxu0 0
    %444 = vmatprep.subr.bf16.mxu0 0
    %445 = vmatpush1.bf16.msra.mxu0 0
    %446 = vmatprep.mubr.bf16.mxu0 0
    %447 = vmatmul.mubr.bf16.gmra.mrb[0].mxu0 %v409
    %v448 = vpop.f32.mrb[0].mxu0
    %v449 = vadd.f32 0.0, %v448
    %v450 = vpop.f32.mrb[0].mxu0
    %v451 = vadd.f32 0.0, %v450
    %v452 = vpop.f32.mrb[0].mxu0
    %v453 = vadd.f32 0.0, %v452
    %v454 = vpop.f32.mrb[0].mxu0
    %v455 = vadd.f32 0.0, %v454
    %456 = vmatprep.mubr.bf16.mxu0 0
    %457 = vmatmul.mubr.bf16.gmra.mrb[0].mxu0 %v412
    %v458 = vpop.f32.mrb[0].mxu0
    %v459 = vadd.f32 0.0, %v458
    %v460 = vpop.f32.mrb[0].mxu0
    %v461 = vadd.f32 0.0, %v460
    %v462 = vpop.f32.mrb[0].mxu0
    %v463 = vadd.f32 0.0, %v462
    %v464 = vpop.f32.mrb[0].mxu0
    %v465 = vadd.f32 0.0, %v464
    %466 = vdwg.mxu0
    %467 = vmatprep.subr.bf16.mxu0 %v298
    %468 = vmatpush1.bf16.msra.mxu0 %v297
    %469 = vmatprep.subr.bf16.mxu0 %v306
    %470 = vmatpush1.bf16.msra.mxu0 %v305
    %471 = vmatprep.subr.bf16.mxu0 %v314
    %472 = vmatpush1.bf16.msra.mxu0 %v313
    %473 = vmatprep.subr.bf16.mxu0 %v322
    %474 = vmatpush1.bf16.msra.mxu0 %v321
    %475 = vmatprep.subr.bf16.mxu0 %v330
    %476 = vmatpush1.bf16.msra.mxu0 %v329
    %477 = vmatprep.subr.bf16.mxu0 %v338
    %478 = vmatpush1.bf16.msra.mxu0 %v337
    %479 = vmatprep.subr.bf16.mxu0 %v346
    %480 = vmatpush1.bf16.msra.mxu0 %v345
    %481 = vmatprep.subr.bf16.mxu0 0
    %482 = vmatpush1.bf16.msra.mxu0 0
    %483 = vmatprep.subr.bf16.mxu0 0
    %484 = vmatpush1.bf16.msra.mxu0 0
    %485 = vmatprep.subr.bf16.mxu0 0
    %486 = vmatpush1.bf16.msra.mxu0 0
    %487 = vmatprep.subr.bf16.mxu0 0
    %488 = vmatpush1.bf16.msra.mxu0 0
    %489 = vmatprep.subr.bf16.mxu0 0
    %490 = vmatpush1.bf16.msra.mxu0 0
    %491 = vmatprep.subr.bf16.mxu0 0
    %492 = vmatpush1.bf16.msra.mxu0 0
    %493 = vmatprep.subr.bf16.mxu0 0
    %494 = vmatpush1.bf16.msra.mxu0 0
    %495 = vmatprep.subr.bf16.mxu0 0
    %496 = vmatpush1.bf16.msra.mxu0 0
    %497 = vmatprep.subr.bf16.mxu0 0
    %498 = vmatpush1.bf16.msra.mxu0 0
    %499 = vmatprep.mubr.bf16.mxu0 0
    %500 = vmatmul.mubr.bf16.gmra.mrb[0].mxu0 %v409
    %v501 = vpop.f32.mrb[0].mxu0
    %v502 = vadd.f32 0.0, %v501
    %v503 = vpop.f32.mrb[0].mxu0
    %v504 = vadd.f32 0.0, %v503
    %v505 = vpop.f32.mrb[0].mxu0
    %v506 = vadd.f32 0.0, %v505
    %v507 = vpop.f32.mrb[0].mxu0
    %v508 = vadd.f32 0.0, %v507
    %509 = vmatprep.mubr.bf16.mxu0 0
    %510 = vmatmul.mubr.bf16.gmra.mrb[0].mxu0 %v412
    %v511 = vpop.f32.mrb[0].mxu0
    %v512 = vadd.f32 0.0, %v511
    %v513 = vpop.f32.mrb[0].mxu0
    %v514 = vadd.f32 0.0, %v513
    %v515 = vpop.f32.mrb[0].mxu0
    %v516 = vadd.f32 0.0, %v515
    %v517 = vpop.f32.mrb[0].mxu0
    %v518 = vadd.f32 0.0, %v517
    %519 = vdwg.mxu0
    %520 = vmatprep.subr.bf16.mxu0 %v300
    %521 = vmatpush1.bf16.msra.mxu0 %v299
    %522 = vmatprep.subr.bf16.mxu0 %v308
    %523 = vmatpush1.bf16.msra.mxu0 %v307
    %524 = vmatprep.subr.bf16.mxu0 %v316
    %525 = vmatpush1.bf16.msra.mxu0 %v315
    %526 = vmatprep.subr.bf16.mxu0 %v324
    %527 = vmatpush1.bf16.msra.mxu0 %v323
    %528 = vmatprep.subr.bf16.mxu0 %v332
    %529 = vmatpush1.bf16.msra.mxu0 %v331
    %530 = vmatprep.subr.bf16.mxu0 %v340
    %531 = vmatpush1.bf16.msra.mxu0 %v339
    %532 = vmatprep.subr.bf16.mxu0 %v348
    %533 = vmatpush1.bf16.msra.mxu0 %v347
    %534 = vmatprep.subr.bf16.mxu0 0
    %535 = vmatpush1.bf16.msra.mxu0 0
    %536 = vmatprep.subr.bf16.mxu0 0
    %537 = vmatpush1.bf16.msra.mxu0 0
    %538 = vmatprep.subr.bf16.mxu0 0
    %539 = vmatpush1.bf16.msra.mxu0 0
    %540 = vmatprep.subr.bf16.mxu0 0
    %541 = vmatpush1.bf16.msra.mxu0 0
    %542 = vmatprep.subr.bf16.mxu0 0
    %543 = vmatpush1.bf16.msra.mxu0 0
    %544 = vmatprep.subr.bf16.mxu0 0
    %545 = vmatpush1.bf16.msra.mxu0 0
    %546 = vmatprep.subr.bf16.mxu0 0
    %547 = vmatpush1.bf16.msra.mxu0 0
    %548 = vmatprep.subr.bf16.mxu0 0
    %549 = vmatpush1.bf16.msra.mxu0 0
    %550 = vmatprep.subr.bf16.mxu0 0
    %551 = vmatpush1.bf16.msra.mxu0 0
    %552 = vmatprep.mubr.bf16.mxu0 0
    %553 = vmatmul.mubr.bf16.gmra.mrb[0].mxu0 %v409
    %v554 = vpop.f32.mrb[0].mxu0
    %v555 = vadd.f32 0.0, %v554
    %v556 = vpop.f32.mrb[0].mxu0
    %v557 = vadd.f32 0.0, %v556
    %v558 = vpop.f32.mrb[0].mxu0
    %v559 = vadd.f32 0.0, %v558
    %v560 = vpop.f32.mrb[0].mxu0
    %v561 = vadd.f32 0.0, %v560
    %562 = vmatprep.mubr.bf16.mxu0 0
    %563 = vmatmul.mubr.bf16.gmra.mrb[0].mxu0 %v412
    %v564 = vpop.f32.mrb[0].mxu0
    %v565 = vadd.f32 0.0, %v564
    %v566 = vpop.f32.mrb[0].mxu0
    %v567 = vadd.f32 0.0, %v566
    %v568 = vpop.f32.mrb[0].mxu0
    %v569 = vadd.f32 0.0, %v568
    %v570 = vpop.f32.mrb[0].mxu0
    %v571 = vadd.f32 0.0, %v570
    %572 = vdwg.mxu0
    %573 = vmatprep.subr.bf16.mxu0 %v302
    %574 = vmatpush1.bf16.msra.mxu0 %v301
    %575 = vmatprep.subr.bf16.mxu0 %v310
    %576 = vmatpush1.bf16.msra.mxu0 %v309
    %577 = vmatprep.subr.bf16.mxu0 %v318
    %578 = vmatpush1.bf16.msra.mxu0 %v317
    %579 = vmatprep.subr.bf16.mxu0 %v326
    %580 = vmatpush1.bf16.msra.mxu0 %v325
    %581 = vmatprep.subr.bf16.mxu0 %v334
    %582 = vmatpush1.bf16.msra.mxu0 %v333
    %583 = vmatprep.subr.bf16.mxu0 %v342
    %584 = vmatpush1.bf16.msra.mxu0 %v341
    %585 = vmatprep.subr.bf16.mxu0 %v350
    %586 = vmatpush1.bf16.msra.mxu0 %v349
    %587 = vmatprep.subr.bf16.mxu0 0
    %588 = vmatpush1.bf16.msra.mxu0 0
    %589 = vmatprep.subr.bf16.mxu0 0
    %590 = vmatpush1.bf16.msra.mxu0 0
    %591 = vmatprep.subr.bf16.mxu0 0
    %592 = vmatpush1.bf16.msra.mxu0 0
    %593 = vmatprep.subr.bf16.mxu0 0
    %594 = vmatpush1.bf16.msra.mxu0 0
    %595 = vmatprep.subr.bf16.mxu0 0
    %596 = vmatpush1.bf16.msra.mxu0 0
    %597 = vmatprep.subr.bf16.mxu0 0
    %598 = vmatpush1.bf16.msra.mxu0 0
    %599 = vmatprep.subr.bf16.mxu0 0
    %600 = vmatpush1.bf16.msra.mxu0 0
    %601 = vmatprep.subr.bf16.mxu0 0
    %602 = vmatpush1.bf16.msra.mxu0 0
    %603 = vmatprep.subr.bf16.mxu0 0
    %604 = vmatpush1.bf16.msra.mxu0 0
    %605 = vmatprep.mubr.bf16.mxu0 0
    %606 = vmatmul.mubr.bf16.gmra.mrb[0].mxu0 %v409
    %v607 = vpop.f32.mrb[0].mxu0
    %v608 = vadd.f32 0.0, %v607
    %v609 = vpop.f32.mrb[0].mxu0
    %v610 = vadd.f32 0.0, %v609
    %v611 = vpop.f32.mrb[0].mxu0
    %v612 = vadd.f32 0.0, %v611
    %v613 = vpop.f32.mrb[0].mxu0
    %v614 = vadd.f32 0.0, %v613
    %615 = vmatprep.mubr.bf16.mxu0 0
    %616 = vmatmul.mubr.bf16.gmra.mrb[0].mxu0 %v412
    %v617 = vpop.f32.mrb[0].mxu0
    %v618 = vadd.f32 0.0, %v617
    %v619 = vpop.f32.mrb[0].mxu0
    %v620 = vadd.f32 0.0, %v619
    %v621 = vpop.f32.mrb[0].mxu0
    %v622 = vadd.f32 0.0, %v621
    %v623 = vpop.f32.mrb[0].mxu0
    %v624 = vadd.f32 0.0, %v623
    %625 = vdwg.mxu0
    %v626 = vmax.f32 %v449, %v451
    %v627 = vmax.f32 %v453, %v455
    %v628 = vmax.f32 %v459, %v461
    %v629 = vmax.f32 %v463, %v465
    %v630 = vmin.f32 %v449, %v451
    %v631 = vmin.f32 %v453, %v455
    %v632 = vmin.f32 %v459, %v461
    %v633 = vmin.f32 %v463, %v465
    %v634 = vmax.f32 %v626, %v502
    %v635 = vmax.f32 %v627, %v506
    %v636 = vmax.f32 %v628, %v512
    %v637 = vmax.f32 %v629, %v516
    %v638 = vmin.f32 %v630, %v502
    %v639 = vmin.f32 %v631, %v506
    %v640 = vmin.f32 %v632, %v512
    %v641 = vmin.f32 %v633, %v516
    %v642 = vmax.f32 %v634, %v504
    %v643 = vmax.f32 %v635, %v508
    %v644 = vmax.f32 %v636, %v514
    %v645 = vmax.f32 %v637, %v518
    %v646 = vmin.f32 %v638, %v504
    %v647 = vmin.f32 %v639, %v508
    %v648 = vmin.f32 %v640, %v514
    %v649 = vmin.f32 %v641, %v518
    %v650 = vmax.f32 %v642, %v555
    %v651 = vmax.f32 %v643, %v559
    %v652 = vmax.f32 %v644, %v565
    %v653 = vmax.f32 %v645, %v569
    %v654 = vmin.f32 %v646, %v555
    %v655 = vmin.f32 %v647, %v559
    %v656 = vmin.f32 %v648, %v565
    %v657 = vmin.f32 %v649, %v569
    %v658 = vmax.f32 %v650, %v557
    %v659 = vmax.f32 %v651, %v561
    %v660 = vmax.f32 %v652, %v567
    %v661 = vmax.f32 %v653, %v571
    %v662 = vmin.f32 %v654, %v557
    %v663 = vmin.f32 %v655, %v561
    %v664 = vmin.f32 %v656, %v567
    %v665 = vmin.f32 %v657, %v571
    %v666 = vmax.f32 %v658, %v608
    %v667 = vmax.f32 %v659, %v612
    %v668 = vmax.f32 %v660, %v618
    %v669 = vmax.f32 %v661, %v622
    %v670 = vmin.f32 %v662, %v608
    %v671 = vmin.f32 %v663, %v612
    %v672 = vmin.f32 %v664, %v618
    %v673 = vmin.f32 %v665, %v622
    %v674 = vmax.f32 %v666, %v610
    %v675 = vmax.f32 %v667, %v614
    %v676 = vmax.f32 %v668, %v620
    %v677 = vmax.f32 %v669, %v624
    %v678 = vmin.f32 %v670, %v610
    %v679 = vmin.f32 %v671, %v614
    %v680 = vmin.f32 %v672, %v620
    %v681 = vmin.f32 %v673, %v624
    %v682 = vld [vmem:[#allocation7] sm:$0xff]
    %v683 = vld [vmem:[#allocation7 + $0x8] sm:$0xff]
    %v684 = vld [vmem:[#allocation7 + $0x10] sm:$0xff]
    %v685 = vld [vmem:[#allocation7 + $0x18] sm:$0xff]
    %s686 = scalar_lea.vmem [#allocation7], 32
    %v687 = vld [vmem:[%s686] sm:$0xff]
    %v688 = vld [vmem:[%s686 + $0x8] sm:$0xff]
    %v689 = vld [vmem:[%s686 + $0x10] sm:$0xff]
    %v690 = vld [vmem:[%s686 + $0x18] sm:$0xff]
    %s691 = scalar_lea.vmem [#allocation7], 64
    %v692 = vld [vmem:[%s691] sm:$0xff]
    %v693 = vld [vmem:[%s691 + $0x8] sm:$0xff]
    %v694 = vld [vmem:[%s691 + $0x10] sm:$0xff]
    %v695 = vld [vmem:[%s691 + $0x18] sm:$0xff]
    %vm696 = vcmp.ge.f32.partialorder %v687, 0.0
    %vm697 = vcmp.ge.f32.partialorder %v688, 0.0
    %vm698 = vcmp.ge.f32.partialorder %v689, 0.0
    %vm699 = vcmp.ge.f32.partialorder %v690, 0.0
    %v700 = vsel %vm696, 1, 0
    %v701 = vsel %vm697, 1, 0
    %v702 = vsel %vm698, 1, 0
    %v703 = vsel %vm699, 1, 0
    %704 = vset.pattern.permute.xlu0 0
    %705 = vperm.xlu0 %704, %v700
    %v706 = vpop.permute.xlu0 %705
    %707 = vset.pattern.permute.xlu0 0
    %708 = vperm.xlu0 %707, %v701
    %v709 = vpop.permute.xlu0 %708
    %710 = vset.pattern.permute.xlu0 0
    %711 = vperm.xlu0 %710, %v702
    %v712 = vpop.permute.xlu0 %711
    %713 = vset.pattern.permute.xlu0 0
    %714 = vperm.xlu0 %713, %v703
    %v715 = vpop.permute.xlu0 %714
    %vm716 = vcmp.eq.s32.totalorder %v706, 1
    %vm717 = vcmp.eq.s32.totalorder %v709, 1
    %vm718 = vcmp.eq.s32.totalorder %v712, 1
    %vm719 = vcmp.eq.s32.totalorder %v715, 1
    %v720 = vsel %vm716, %v674, %v678
    %v721 = vsel %vm717, %v675, %v679
    %v722 = vsel %vm718, %v676, %v680
    %v723 = vsel %vm719, %v677, %v681
    %725 = vset.pattern.permute.xlu0 0
    %726 = vperm.xlu0 %725, %v682
    %v727 = vpop.permute.xlu0 %726
    %730 = vset.pattern.permute.xlu0 0
    %731 = vperm.xlu0 %730, %v683
    %v732 = vpop.permute.xlu0 %731
    %735 = vset.pattern.permute.xlu0 0
    %736 = vperm.xlu0 %735, %v684
    %v737 = vpop.permute.xlu0 %736
    %740 = vset.pattern.permute.xlu0 0
    %741 = vperm.xlu0 %740, %v685
    %v742 = vpop.permute.xlu0 %741
    %v744 = vadd.f32 %v720, %v727
    %v745 = vadd.f32 %v721, %v732
    %v746 = vadd.f32 %v722, %v737
    %v747 = vadd.f32 %v723, %v742
    %v748 = vmax.f32 %v744, 0.0
    %v749 = vmax.f32 %v745, 0.0
    %v750 = vmax.f32 %v746, 0.0
    %v751 = vmax.f32 %v747, 0.0
    %753 = vset.pattern.permute.xlu0 0
    %754 = vperm.xlu0 %753, %v687
    %v755 = vpop.permute.xlu0 %754
    %758 = vset.pattern.permute.xlu0 0
    %759 = vperm.xlu0 %758, %v688
    %v760 = vpop.permute.xlu0 %759
    %763 = vset.pattern.permute.xlu0 0
    %764 = vperm.xlu0 %763, %v689
    %v765 = vpop.permute.xlu0 %764
    %768 = vset.pattern.permute.xlu0 0
    %769 = vperm.xlu0 %768, %v690
    %v770 = vpop.permute.xlu0 %769
    %v772 = vmul.f32 %v748, %v755
    %v773 = vmul.f32 %v749, %v760
    %v774 = vmul.f32 %v750, %v765
    %v775 = vmul.f32 %v751, %v770
    %777 = vset.pattern.permute.xlu0 0
    %778 = vperm.xlu0 %777, %v692
    %v779 = vpop.permute.xlu0 %778
    %782 = vset.pattern.permute.xlu0 0
    %783 = vperm.xlu0 %782, %v693
    %v784 = vpop.permute.xlu0 %783
    %787 = vset.pattern.permute.xlu0 0
    %788 = vperm.xlu0 %787, %v694
    %v789 = vpop.permute.xlu0 %788
    %792 = vset.pattern.permute.xlu0 0
    %793 = vperm.xlu0 %792, %v695
    %v794 = vpop.permute.xlu0 %793
    %v796 = vadd.f32 %v772, %v779
    %v797 = vadd.f32 %v773, %v784
    %v798 = vadd.f32 %v774, %v789
    %v799 = vadd.f32 %v775, %v794
    %v800 = vpack.c.bf16 %v797, %v796
    %v801 = vpack.c.bf16 %v799, %v798
    %v804 = vunpack.c.l.b16 %v800
    %v805 = vunpack.c.h.b16 %v800
    %v806 = vunpack.c.l.b16 %v801
    %v807 = vunpack.c.h.b16 %v801
    %v808 = vpack.c.b16 %v804, %v804
    %v809 = vpack.c.b16 %v805, %v805
    %v810 = vpack.c.b16 %v806, %v806
    %v811 = vpack.c.b16 %v807, %v807
    %816 = vst [vmem:[#allocation8] sm:$0xf] %v808
    %817 = vst [vmem:[#allocation8 + $0x4] sm:$0xf] %v809
    %818 = vst [vmem:[#allocation8 + $0x8] sm:$0xf] %v810
    %819 = vst [vmem:[#allocation8 + $0xc] sm:$0xf] %v811
    // Predicated region
    $region26: #{net_forward.4} parent=1 // pred_check
      _
    $region27: #{net_forward.4} parent=1 // pred_check_branch
      %821 = sbr.rel (0) target = $region29
    $region28: #{net_forward.4} parent=1 // pred_region
      %s823 = ssub.s32 256, 256
      %824 = vsyncadd [#allocation4], %s823
      %s825 = sshll.u32 [#allocation8], 4
      %s826 = int_to_ptr.vmem [resolvable:$true] %s825
      %831 = dma.vmem_to_hbm [thread:$0]  %s826, 256, %s3, [#allocation4], 64, 64, 4
    $region29: #{net_forward.4} parent=1 // pred_fallthru
      _
    // Predicated region
    $region30: #{net_forward.4} parent=1 // pred_check
      _
    $region31: #{net_forward.4} parent=1 // pred_check_branch
      %833 = sbr.rel (0) target = $region33
    $region32: #{net_forward.4} parent=1 // pred_region
      %834 = dma.done [#allocation4], 256
    $region33: #{net_forward.4} parent=1 // pred_fallthru
      _
    %835 = vsyncpa [#allocation3], 1
    %836 = vsyncpa [#allocation6], 1
    %837 = vsyncpa [#allocation4], 1

// kernel: net_forward.5
$region0: #{net_forward.5}
  #allocation0 [shape = 'u32[]', space=smem, size = 0x4, offset = 0x4, fixed_abs, tag = 'smem constant byte address 0x4 - core index']
  #allocation1 [shape = 'u32[144,128]{1,0:T(1,128)}', space=vmem, size = 0x12000, scoped, tag = 'internal scratch']
  %s0 = inlined_call_operand.vmem [shape: bf16[16,256], index: 0, kind: input, shape index: {}]
  %s1 = inlined_call_operand.vmem [shape: bf16[256,128], index: 1, kind: input, shape index: {}]
  %s2 = inlined_call_operand.vmem [shape: f32[1,128], index: 2, kind: input, shape index: {}]
  %s3 = inlined_call_operand.vmem [shape: bf16[128,128], index: 3, kind: input, shape index: {}]
  %s4 = inlined_call_operand.vmem [shape: f32[1,128], index: 4, kind: input, shape index: {}]
  %s5 = inlined_call_operand.vmem [shape: bf16[128,128], index: 5, kind: input, shape index: {}]
  %s6 = inlined_call_operand.vmem [shape: f32[1,128], index: 6, kind: input, shape index: {}]
  %s7 = inlined_call_operand.hbm [shape: f32[1,128], index: 7, kind: input, shape index: {}]
  %s8 = inlined_call_operand.vmem [shape: f32[16,128], index: 8, kind: output, shape index: {}]
  %s9 = sld [smem:[#allocation0]]
  $region46: #{net_forward.5} parent=0
    _
  %s11 = ssub.s32 1, %s9
  %s12 = scalar_select 0, %s11, %s9
  $region1: #{net_forward.5} parent=0
    #allocation2 [shape = 'u8[512]{0}', space=vmem, size = 0x400, scoped, tag = 'input window, operand 7, single buffered']
    #allocation3 [shape = 's32[1]{0}', space=sflag, size = 0x4, scoped, tag = 'scoped memory for net_forward.5']
    %13 = vsyncpa [#allocation3], 0
    // Predicated region
    $region2: #{net_forward.5} parent=1 // pred_check
      _
    $region3: #{net_forward.5} parent=1 // pred_check_branch
      %15 = sbr.rel (0) target = $region5
    $region4: #{net_forward.5} parent=1 // pred_region
      _
    $region5: #{net_forward.5} parent=1 // pred_fallthru
      _
    // Predicated region
    $region6: #{net_forward.5} parent=1 // pred_check
      _
    $region7: #{net_forward.5} parent=1 // pred_check_branch
      %17 = sbr.rel (0) target = $region9
    $region8: #{net_forward.5} parent=1 // pred_region
      _
    $region9: #{net_forward.5} parent=1 // pred_fallthru
      _
    // Predicated region
    $region10: #{net_forward.5} parent=1 // pred_check
      _
    $region11: #{net_forward.5} parent=1 // pred_check_branch
      %19 = sbr.rel (0) target = $region13
    $region12: #{net_forward.5} parent=1 // pred_region
      _
    $region13: #{net_forward.5} parent=1 // pred_fallthru
      _
    // Predicated region
    $region14: #{net_forward.5} parent=1 // pred_check
      _
    $region15: #{net_forward.5} parent=1 // pred_check_branch
      %21 = sbr.rel (0) target = $region17
    $region16: #{net_forward.5} parent=1 // pred_region
      _
    $region17: #{net_forward.5} parent=1 // pred_fallthru
      _
    // Predicated region
    $region18: #{net_forward.5} parent=1 // pred_check
      _
    $region19: #{net_forward.5} parent=1 // pred_check_branch
      %23 = sbr.rel (0) target = $region21
    $region20: #{net_forward.5} parent=1 // pred_region
      _
    $region21: #{net_forward.5} parent=1 // pred_fallthru
      _
    // Predicated region
    $region22: #{net_forward.5} parent=1 // pred_check
      _
    $region23: #{net_forward.5} parent=1 // pred_check_branch
      %25 = sbr.rel (0) target = $region25
    $region24: #{net_forward.5} parent=1 // pred_region
      _
    $region25: #{net_forward.5} parent=1 // pred_fallthru
      _
    // Predicated region
    $region26: #{net_forward.5} parent=1 // pred_check
      _
    $region27: #{net_forward.5} parent=1 // pred_check_branch
      %27 = sbr.rel (0) target = $region29
    $region28: #{net_forward.5} parent=1 // pred_region
      _
    $region29: #{net_forward.5} parent=1 // pred_fallthru
      _
    // Predicated region
    $region30: #{net_forward.5} parent=1 // pred_check
      _
    $region31: #{net_forward.5} parent=1 // pred_check_branch
      %29 = sbr.rel (0) target = $region33
    $region32: #{net_forward.5} parent=1 // pred_region
      %s31 = ssub.s32 16, 16
      %32 = vsyncadd [#allocation3], %s31
      %s34 = sshll.u32 [#allocation2], 4
      %s35 = int_to_ptr.vmem [resolvable:$true] %s34
      %37 = dma.hbm_to_vmem [thread:$0]  %s7, 16, %s35, [#allocation3]
    $region33: #{net_forward.5} parent=1 // pred_fallthru
      _
    // Predicated region
    $region34: #{net_forward.5} parent=1 // pred_check
      _
    $region35: #{net_forward.5} parent=1 // pred_check_branch
      %39 = sbr.rel (0) target = $region37
    $region36: #{net_forward.5} parent=1 // pred_region
      %40 = dma.done [#allocation3], 16
    $region37: #{net_forward.5} parent=1 // pred_fallthru
      _
    %v42 = vld [vmem:[%s0] sm:$0xff]
    %v43 = vld [vmem:[%s0 + $0x8] sm:$0xff]
    %v44 = vld [vmem:[%s1] sm:$0xf]
    %v45 = vld [vmem:[%s1 + $0x4] sm:$0xf]
    %v46 = vld [vmem:[%s1 + $0x8] sm:$0xf]
    %v47 = vld [vmem:[%s1 + $0xc] sm:$0xf]
    %v48 = vld [vmem:[%s1 + $0x10] sm:$0xf]
    %v49 = vld [vmem:[%s1 + $0x14] sm:$0xf]
    %v50 = vld [vmem:[%s1 + $0x18] sm:$0xf]
    %v51 = vld [vmem:[%s1 + $0x1c] sm:$0xf]
    %v52 = vld [vmem:[%s1 + $0x20] sm:$0xf]
    %v53 = vld [vmem:[%s1 + $0x24] sm:$0xf]
    %v54 = vld [vmem:[%s1 + $0x28] sm:$0xf]
    %v55 = vld [vmem:[%s1 + $0x2c] sm:$0xf]
    %v56 = vld [vmem:[%s1 + $0x30] sm:$0xf]
    %v57 = vld [vmem:[%s1 + $0x34] sm:$0xf]
    %v58 = vld [vmem:[%s1 + $0x38] sm:$0xf]
    %v59 = vld [vmem:[%s1 + $0x3c] sm:$0xf]
    %v60 = vld [vmem:[%s1 + $0x40] sm:$0xf]
    %v61 = vld [vmem:[%s1 + $0x44] sm:$0xf]
    %v62 = vld [vmem:[%s1 + $0x48] sm:$0xf]
    %v63 = vld [vmem:[%s1 + $0x4c] sm:$0xf]
    %v64 = vld [vmem:[%s1 + $0x50] sm:$0xf]
    %v65 = vld [vmem:[%s1 + $0x54] sm:$0xf]
    %v66 = vld [vmem:[%s1 + $0x58] sm:$0xf]
    %v67 = vld [vmem:[%s1 + $0x5c] sm:$0xf]
    %v68 = vld [vmem:[%s1 + $0x60] sm:$0xf]
    %v69 = vld [vmem:[%s1 + $0x64] sm:$0xf]
    %v70 = vld [vmem:[%s1 + $0x68] sm:$0xf]
    %v71 = vld [vmem:[%s1 + $0x6c] sm:$0xf]
    %v72 = vld [vmem:[%s1 + $0x70] sm:$0xf]
    %v73 = vld [vmem:[%s1 + $0x74] sm:$0xf]
    %v74 = vld [vmem:[%s1 + $0x78] sm:$0xf]
    %v75 = vld [vmem:[%s1 + $0x7c] sm:$0xf]
    %v76 = vld [vmem:[%s2] sm:$0x1]
    %v78 = vlaneseq
    %v79 = vshrl.u32 %v78, 7
    %v80 = vsub.s32 0, %v79
    %v81 = vrot.slane %v76, %v80
    %v85 = vunpack.c.l.b16 %v42
    %v86 = vunpack.c.h.b16 %v42
    %v87 = vunpack.c.l.b16 %v43
    %v88 = vunpack.c.h.b16 %v43
    %v89 = vpack.c.b16 %v87, %v85
    %v90 = vpack.c.b16 %v88, %v86
    %v125 = vunpack.c.l.b16 %v44
    %v126 = vunpack.c.l.b16 %v45
    %v127 = vunpack.c.l.b16 %v46
    %v128 = vunpack.c.l.b16 %v47
    %v129 = vunpack.c.l.b16 %v48
    %v130 = vunpack.c.l.b16 %v49
    %v131 = vunpack.c.l.b16 %v50
    %v132 = vunpack.c.l.b16 %v51
    %v133 = vunpack.c.l.b16 %v52
    %v134 = vunpack.c.l.b16 %v53
    %v135 = vunpack.c.l.b16 %v54
    %v136 = vunpack.c.l.b16 %v55
    %v137 = vunpack.c.l.b16 %v56
    %v138 = vunpack.c.l.b16 %v57
    %v139 = vunpack.c.l.b16 %v58
    %v140 = vunpack.c.l.b16 %v59
    %v141 = vunpack.c.l.b16 %v60
    %v142 = vunpack.c.l.b16 %v61
    %v143 = vunpack.c.l.b16 %v62
    %v144 = vunpack.c.l.b16 %v63
    %v145 = vunpack.c.l.b16 %v64
    %v146 = vunpack.c.l.b16 %v65
    %v147 = vunpack.c.l.b16 %v66
    %v148 = vunpack.c.l.b16 %v67
    %v149 = vunpack.c.l.b16 %v68
    %v150 = vunpack.c.l.b16 %v69
    %v151 = vunpack.c.l.b16 %v70
    %v152 = vunpack.c.l.b16 %v71
    %v153 = vunpack.c.l.b16 %v72
    %v154 = vunpack.c.l.b16 %v73
    %v155 = vunpack.c.l.b16 %v74
    %v156 = vunpack.c.l.b16 %v75
    %v157 = vpack.c.b16 %v126, %v125
    %v158 = vpack.c.b16 %v128, %v127
    %v159 = vpack.c.b16 %v130, %v129
    %v160 = vpack.c.b16 %v132, %v131
    %v161 = vpack.c.b16 %v134, %v133
    %v162 = vpack.c.b16 %v136, %v135
    %v163 = vpack.c.b16 %v138, %v137
    %v164 = vpack.c.b16 %v140, %v139
    %v165 = vpack.c.b16 %v142, %v141
    %v166 = vpack.c.b16 %v144, %v143
    %v167 = vpack.c.b16 %v146, %v145
    %v168 = vpack.c.b16 %v148, %v147
    %v169 = vpack.c.b16 %v150, %v149
    %v170 = vpack.c.b16 %v152, %v151
    %v171 = vpack.c.b16 %v154, %v153
    %v172 = vpack.c.b16 %v156, %v155
    %189 = vmatprep.subr.bf16.mxu0 0
    %190 = vmatpush1.bf16.msra.mxu0 %v157
    %191 = vmatprep.subr.bf16.mxu0 0
    %192 = vmatpush1.bf16.msra.mxu0 %v158
    %193 = vmatprep.subr.bf16.mxu0 0
    %194 = vmatpush1.bf16.msra.mxu0 %v159
    %195 = vmatprep.subr.bf16.mxu0 0
    %196 = vmatpush1.bf16.msra.mxu0 %v160
    %197 = vmatprep.subr.bf16.mxu0 0
    %198 = vmatpush1.bf16.msra.mxu0 %v161
    %199 = vmatprep.subr.bf16.mxu0 0
    %200 = vmatpush1.bf16.msra.mxu0 %v162
    %201 = vmatprep.subr.bf16.mxu0 0
    %202 = vmatpush1.bf16.msra.mxu0 %v163
    %203 = vmatprep.subr.bf16.mxu0 0
    %204 = vmatpush1.bf16.msra.mxu0 %v164
    %205 = vmatprep.subr.bf16.mxu0 0
    %206 = vmatpush1.bf16.msra.mxu0 %v165
    %207 = vmatprep.subr.bf16.mxu0 0
    %208 = vmatpush1.bf16.msra.mxu0 %v166
    %209 = vmatprep.subr.bf16.mxu0 0
    %210 = vmatpush1.bf16.msra.mxu0 %v167
    %211 = vmatprep.subr.bf16.mxu0 0
    %212 = vmatpush1.bf16.msra.mxu0 %v168
    %213 = vmatprep.subr.bf16.mxu0 0
    %214 = vmatpush1.bf16.msra.mxu0 %v169
    %215 = vmatprep.subr.bf16.mxu0 0
    %216 = vmatpush1.bf16.msra.mxu0 %v170
    %217 = vmatprep.subr.bf16.mxu0 0
    %218 = vmatpush1.bf16.msra.mxu0 %v171
    %219 = vmatprep.subr.bf16.mxu0 0
    %220 = vmatpush1.bf16.msra.mxu0 %v172
    %221 = vmatprep.mubr.bf16.mxu0 %v90
    %222 = vmatmul.mubr.bf16.gmra.mrb[0].mxu0 %v89
    %v223 = vpop.f32.mrb[0].mxu0
    %v224 = vadd.f32 %v81, %v223
    %v225 = vpop.f32.mrb[0].mxu0
    %v226 = vpop.f32.mrb[0].mxu0
    %v227 = vadd.f32 %v81, %v226
    %v228 = vpop.f32.mrb[0].mxu0
    %229 = vdwg.mxu0
    %v230 = vmax.f32 %v224, 0.0
    %v231 = vmax.f32 %v227, 0.0
    %v232 = vpack.c.bf16 %v231, %v230
    %v233 = vld [vmem:[%s3] sm:$0xf]
    %v234 = vld [vmem:[%s3 + $0x4] sm:$0xf]
    %v235 = vld [vmem:[%s3 + $0x8] sm:$0xf]
    %v236 = vld [vmem:[%s3 + $0xc] sm:$0xf]
    %v237 = vld [vmem:[%s3 + $0x10] sm:$0xf]
    %v238 = vld [vmem:[%s3 + $0x14] sm:$0xf]
    %v239 = vld [vmem:[%s3 + $0x18] sm:$0xf]
    %v240 = vld [vmem:[%s3 + $0x1c] sm:$0xf]
    %v241 = vld [vmem:[%s3 + $0x20] sm:$0xf]
    %v242 = vld [vmem:[%s3 + $0x24] sm:$0xf]
    %v243 = vld [vmem:[%s3 + $0x28] sm:$0xf]
    %v244 = vld [vmem:[%s3 + $0x2c] sm:$0xf]
    %v245 = vld [vmem:[%s3 + $0x30] sm:$0xf]
    %v246 = vld [vmem:[%s3 + $0x34] sm:$0xf]
    %v247 = vld [vmem:[%s3 + $0x38] sm:$0xf]
    %v248 = vld [vmem:[%s3 + $0x3c] sm:$0xf]
    %v249 = vld [vmem:[%s4] sm:$0x1]
    %v251 = vlaneseq
    %v252 = vshrl.u32 %v251, 7
    %v253 = vsub.s32 0, %v252
    %v254 = vrot.slane %v249, %v253
    %v272 = vunpack.c.l.b16 %v233
    %v273 = vunpack.c.l.b16 %v234
    %v274 = vunpack.c.l.b16 %v235
    %v275 = vunpack.c.l.b16 %v236
    %v276 = vunpack.c.l.b16 %v237
    %v277 = vunpack.c.l.b16 %v238
    %v278 = vunpack.c.l.b16 %v239
    %v279 = vunpack.c.l.b16 %v240
    %v280 = vunpack.c.l.b16 %v241
    %v281 = vunpack.c.l.b16 %v242
    %v282 = vunpack.c.l.b16 %v243
    %v283 = vunpack.c.l.b16 %v244
    %v284 = vunpack.c.l.b16 %v245
    %v285 = vunpack.c.l.b16 %v246
    %v286 = vunpack.c.l.b16 %v247
    %v287 = vunpack.c.l.b16 %v248
    %v288 = vpack.c.b16 %v273, %v272
    %v289 = vpack.c.b16 %v275, %v274
    %v290 = vpack.c.b16 %v277, %v276
    %v291 = vpack.c.b16 %v279, %v278
    %v292 = vpack.c.b16 %v281, %v280
    %v293 = vpack.c.b16 %v283, %v282
    %v294 = vpack.c.b16 %v285, %v284
    %v295 = vpack.c.b16 %v287, %v286
    %304 = vmatprep.subr.bf16.mxu0 0
    %305 = vmatpush1.bf16.msra.mxu0 %v288
    %306 = vmatprep.subr.bf16.mxu0 0
    %307 = vmatpush1.bf16.msra.mxu0 %v289
    %308 = vmatprep.subr.bf16.mxu0 0
    %309 = vmatpush1.bf16.msra.mxu0 %v290
    %310 = vmatprep.subr.bf16.mxu0 0
    %311 = vmatpush1.bf16.msra.mxu0 %v291
    %312 = vmatprep.subr.bf16.mxu0 0
    %313 = vmatpush1.bf16.msra.mxu0 %v292
    %314 = vmatprep.subr.bf16.mxu0 0
    %315 = vmatpush1.bf16.msra.mxu0 %v293
    %316 = vmatprep.subr.bf16.mxu0 0
    %317 = vmatpush1.bf16.msra.mxu0 %v294
    %318 = vmatprep.subr.bf16.mxu0 0
    %319 = vmatpush1.bf16.msra.mxu0 %v295
    %320 = vmatprep.subr.bf16.mxu0 0
    %321 = vmatpush1.bf16.msra.mxu0 0
    %322 = vmatprep.subr.bf16.mxu0 0
    %323 = vmatpush1.bf16.msra.mxu0 0
    %324 = vmatprep.subr.bf16.mxu0 0
    %325 = vmatpush1.bf16.msra.mxu0 0
    %326 = vmatprep.subr.bf16.mxu0 0
    %327 = vmatpush1.bf16.msra.mxu0 0
    %328 = vmatprep.subr.bf16.mxu0 0
    %329 = vmatpush1.bf16.msra.mxu0 0
    %330 = vmatprep.subr.bf16.mxu0 0
    %331 = vmatpush1.bf16.msra.mxu0 0
    %332 = vmatprep.subr.bf16.mxu0 0
    %333 = vmatpush1.bf16.msra.mxu0 0
    %334 = vmatprep.subr.bf16.mxu0 0
    %335 = vmatpush1.bf16.msra.mxu0 0
    %336 = vmatprep.mubr.bf16.mxu0 0
    %337 = vmatmul.mubr.bf16.gmra.mrb[0].mxu0 %v232
    %v338 = vpop.f32.mrb[0].mxu0
    %v339 = vadd.f32 %v254, %v338
    %v340 = vpop.f32.mrb[0].mxu0
    %v341 = vpop.f32.mrb[0].mxu0
    %v342 = vadd.f32 %v254, %v341
    %v343 = vpop.f32.mrb[0].mxu0
    %344 = vdwg.mxu0
    %v345 = vmax.f32 %v339, 0.0
    %v346 = vmax.f32 %v342, 0.0
    %v347 = vpack.c.bf16 %v346, %v345
    %v348 = vld [vmem:[%s5] sm:$0xf]
    %v349 = vld [vmem:[%s5 + $0x4] sm:$0xf]
    %v350 = vld [vmem:[%s5 + $0x8] sm:$0xf]
    %v351 = vld [vmem:[%s5 + $0xc] sm:$0xf]
    %v352 = vld [vmem:[%s5 + $0x10] sm:$0xf]
    %v353 = vld [vmem:[%s5 + $0x14] sm:$0xf]
    %v354 = vld [vmem:[%s5 + $0x18] sm:$0xf]
    %v355 = vld [vmem:[%s5 + $0x1c] sm:$0xf]
    %v356 = vld [vmem:[%s5 + $0x20] sm:$0xf]
    %v357 = vld [vmem:[%s5 + $0x24] sm:$0xf]
    %v358 = vld [vmem:[%s5 + $0x28] sm:$0xf]
    %v359 = vld [vmem:[%s5 + $0x2c] sm:$0xf]
    %v360 = vld [vmem:[%s5 + $0x30] sm:$0xf]
    %v361 = vld [vmem:[%s5 + $0x34] sm:$0xf]
    %v362 = vld [vmem:[%s5 + $0x38] sm:$0xf]
    %v363 = vld [vmem:[%s5 + $0x3c] sm:$0xf]
    %v364 = vld [vmem:[%s6] sm:$0x1]
    %v366 = vlaneseq
    %v367 = vshrl.u32 %v366, 7
    %v368 = vsub.s32 0, %v367
    %v369 = vrot.slane %v364, %v368
    %v387 = vunpack.c.l.b16 %v348
    %v388 = vunpack.c.l.b16 %v349
    %v389 = vunpack.c.l.b16 %v350
    %v390 = vunpack.c.l.b16 %v351
    %v391 = vunpack.c.l.b16 %v352
    %v392 = vunpack.c.l.b16 %v353
    %v393 = vunpack.c.l.b16 %v354
    %v394 = vunpack.c.l.b16 %v355
    %v395 = vunpack.c.l.b16 %v356
    %v396 = vunpack.c.l.b16 %v357
    %v397 = vunpack.c.l.b16 %v358
    %v398 = vunpack.c.l.b16 %v359
    %v399 = vunpack.c.l.b16 %v360
    %v400 = vunpack.c.l.b16 %v361
    %v401 = vunpack.c.l.b16 %v362
    %v402 = vunpack.c.l.b16 %v363
    %v403 = vpack.c.b16 %v388, %v387
    %v404 = vpack.c.b16 %v390, %v389
    %v405 = vpack.c.b16 %v392, %v391
    %v406 = vpack.c.b16 %v394, %v393
    %v407 = vpack.c.b16 %v396, %v395
    %v408 = vpack.c.b16 %v398, %v397
    %v409 = vpack.c.b16 %v400, %v399
    %v410 = vpack.c.b16 %v402, %v401
    %419 = vmatprep.subr.bf16.mxu0 0
    %420 = vmatpush1.bf16.msra.mxu0 %v403
    %421 = vmatprep.subr.bf16.mxu0 0
    %422 = vmatpush1.bf16.msra.mxu0 %v404
    %423 = vmatprep.subr.bf16.mxu0 0
    %424 = vmatpush1.bf16.msra.mxu0 %v405
    %425 = vmatprep.subr.bf16.mxu0 0
    %426 = vmatpush1.bf16.msra.mxu0 %v406
    %427 = vmatprep.subr.bf16.mxu0 0
    %428 = vmatpush1.bf16.msra.mxu0 %v407
    %429 = vmatprep.subr.bf16.mxu0 0
    %430 = vmatpush1.bf16.msra.mxu0 %v408
    %431 = vmatprep.subr.bf16.mxu0 0
    %432 = vmatpush1.bf16.msra.mxu0 %v409
    %433 = vmatprep.subr.bf16.mxu0 0
    %434 = vmatpush1.bf16.msra.mxu0 %v410
    %435 = vmatprep.subr.bf16.mxu0 0
    %436 = vmatpush1.bf16.msra.mxu0 0
    %437 = vmatprep.subr.bf16.mxu0 0
    %438 = vmatpush1.bf16.msra.mxu0 0
    %439 = vmatprep.subr.bf16.mxu0 0
    %440 = vmatpush1.bf16.msra.mxu0 0
    %441 = vmatprep.subr.bf16.mxu0 0
    %442 = vmatpush1.bf16.msra.mxu0 0
    %443 = vmatprep.subr.bf16.mxu0 0
    %444 = vmatpush1.bf16.msra.mxu0 0
    %445 = vmatprep.subr.bf16.mxu0 0
    %446 = vmatpush1.bf16.msra.mxu0 0
    %447 = vmatprep.subr.bf16.mxu0 0
    %448 = vmatpush1.bf16.msra.mxu0 0
    %449 = vmatprep.subr.bf16.mxu0 0
    %450 = vmatpush1.bf16.msra.mxu0 0
    %451 = vmatprep.mubr.bf16.mxu0 0
    %452 = vmatmul.mubr.bf16.gmra.mrb[0].mxu0 %v347
    %v453 = vpop.f32.mrb[0].mxu0
    %v454 = vadd.f32 %v369, %v453
    %v455 = vpop.f32.mrb[0].mxu0
    %v456 = vpop.f32.mrb[0].mxu0
    %v457 = vadd.f32 %v369, %v456
    %v458 = vpop.f32.mrb[0].mxu0
    %459 = vdwg.mxu0
    %v460 = vld [vmem:[#allocation2] sm:$0x1]
    %vm461 = vcmp.gt.f32.partialorder %v460, 0.5
    %v462 = vxor.u32 %v454, 2147483648
    %v463 = vxor.u32 %v457, 2147483648
    %v464 = vmul.f32 %v462, 1.442695
    %v465 = vpow.pop %v464
    %v466 = vmul.f32 %v463, 1.442695
    %v467 = vpow.pop %v466
    %v468 = vadd.f32 %v465, 1.0
    %v469 = vadd.f32 %v467, 1.0
    %v470 = vrcp.pop %v468
    %v471 = vmul.f32 1.0, %v470
    %v472 = vrcp.pop %v469
    %v473 = vmul.f32 1.0, %v472
    %v474 = vsel %vm461, 1, 0
    %v475 = vlaneseq
    %v476 = vshrl.u32 %v475, 7
    %v477 = vsub.s32 0, %v476
    %v478 = vrot.slane %v474, %v477
    %vm479 = vcmp.eq.s32.totalorder %v478, 1
    %v480 = vsel %vm479, %v471, %v454
    %v481 = vsel %vm479, %v473, %v457
    %482 = vst [vmem:[%s8] sm:$0xff] %v480
    %483 = vst [vmem:[%s8 + $0x8] sm:$0xff] %v481
    // Predicated region
    $region38: #{net_forward.5} parent=1 // pred_check
      _
    $region39: #{net_forward.5} parent=1 // pred_check_branch
      %485 = sbr.rel (0) target = $region41
    $region40: #{net_forward.5} parent=1 // pred_region
      _
    $region41: #{net_forward.5} parent=1 // pred_fallthru
      _
    // Predicated region
    $region42: #{net_forward.5} parent=1 // pred_check
      _
    $region43: #{net_forward.5} parent=1 // pred_check_branch
      %487 = sbr.rel (0) target = $region45
    $region44: #{net_forward.5} parent=1 // pred_region
      _
    $region45: #{net_forward.5} parent=1 // pred_fallthru
      _
    %488 = vsyncpa [#allocation3], 1

</llo_original>
